<compile_context>
chip_gen: v6e
topology: v6e:2x2x1
jax: 0.10.0
libtpu: 0.0.40
codegen_flags: <defaults>
</compile_context>

<pallas_src>
import jax
import jax.numpy as jnp
from jax import lax
from jax.experimental import pallas as pl
from jax.experimental.pallas import tpu as pltpu


# ----------------------------------------------------------------------------
# Hardware-derived sizing
# ----------------------------------------------------------------------------
def _tpu_vmem_capacity():
    try:
        return int(pltpu.get_tpu_info().vmem_capacity_bytes)
    except Exception:
        return 64 * 1024 * 1024                       # conservative (v7x-sized)


def _vmem_limit_bytes():
    return int(_tpu_vmem_capacity() * 0.8)


def _pick_batch_tile(B, T, E, H):
    """Largest 8-aligned batch tile that fits the VMEM budget, capped so the
    'parallel' grid has >=2 steps when the batch allows it (megacore / pipeline)."""
    if B <= 8:
        return B
    budget = int(_tpu_vmem_capacity() * 0.45)
    # per-batch-row bytes: double-buffered bf16 x block (4*T*E), bf16 gi_f/gi_b
    # (12*T*H), bf16 h1f/h1b (4*T*H), f32 projection temp headroom (12*T*H).
    per_row = 4 * T * E + 28 * T * H + 2048
    bb_mem = max(8, (budget // max(per_row, 1)) // 8 * 8)
    bb_par = (((B + 1) // 2) + 7) // 8 * 8
    return max(8, min(bb_mem, bb_par))


# ----------------------------------------------------------------------------
# Kernels
# ----------------------------------------------------------------------------
def fused_bigru_kernel(x_ref,
                       w_ih1f_ref, b_ih1f_ref, w_ih1b_ref, b_ih1b_ref,
                       w_hh1_ref, b_hh1_ref,
                       w_ih2f_lo_ref, w_ih2f_hi_ref, b_ih2f_ref,
                       w_ih2b_lo_ref, w_ih2b_hi_ref, b_ih2b_ref,
                       w_hh2_ref, b_hh2_ref,
                       out_ref,
                       gif_ref, gib_ref, h1f_ref, h1b_ref):
    """Fused bidirectional GRU x2 + online mean/max pooling for one batch tile.

    x_ref:     (T, Bb, E)  bf16 embedded input tile
    w_hh*_ref: (2H, 6H)    bf16 block-diagonal recurrent weights, gate columns
                           ordered [rf | rb | zf | zb | nf | nb]
    out_ref:   (Bb, 6H)    f32 packed [hn_f | hn_b | max_f | max_b | avg_f | avg_b]
    gif/gib:   (T, Bb, 3H) bf16 scratch with the hoisted input projections
                           (reused by layer 2); columns [r | z | n]
    h1f/h1b:   (T, Bb, H)  bf16 layer-1 per-direction outputs (VMEM-resident only)
    """
    T, Bb, _ = x_ref.shape
    H2 = w_hh1_ref.shape[0]          # 2H
    H = H2 // 2
    H4, H6 = 4 * H, 6 * H
    f32 = jnp.float32

    # ---- layer-1 input projection: bulk MXU, hoisted out of the recurrence ----
    x = x_ref[...]
    gif_ref[...] = (jnp.einsum("tbe,eg->tbg", x, w_ih1f_ref[...],
                               preferred_element_type=f32)
                    + b_ih1f_ref[...]).astype(gif_ref.dtype)
    gib_ref[...] = (jnp.einsum("tbe,eg->tbg", x, w_ih1b_ref[...],
                               preferred_element_type=f32)
                    + b_ih1b_ref[...]).astype(gib_ref.dtype)

    def make_step(w_blk_ref, b_blk_ref):
        # Hoist weight load / bias broadcast out of the loop body.
        w_blk = w_blk_ref[...]
        b_blk = jnp.broadcast_to(b_blk_ref[...].astype(f32), (Bb, H6))

        def step(i, h):
            # h: (Bb, 2H) f32 carry, [h_fwd | h_bwd]; fwd walks t=i, bwd t=T-1-i.
            tb = T - 1 - i
            gif = gif_ref[i].astype(f32)      # (Bb, 3H) [r z n], fwd, time i
            gib = gib_ref[tb].astype(f32)     # (Bb, 3H) [r z n], bwd, time T-1-i
            # One block-diagonal recurrent matmul for both directions.
            gh = jnp.dot(h.astype(w_blk.dtype), w_blk,
                         preferred_element_type=f32) + b_blk       # (Bb, 6H)
            # gh columns: [rf | rb | zf | zb | nf | nb]
            rz_in = jnp.concatenate(
                [gif[:, :H], gib[:, :H], gif[:, H:H2], gib[:, H:H2]], axis=-1)
            rz = jax.nn.sigmoid(rz_in + gh[:, :H4])   # one lane-dense (Bb,4H) sigmoid
            r = rz[:, :H2]                            # [rf | rb]
            z = rz[:, H2:]                            # [zf | zb]
            n_in = jnp.concatenate([gif[:, H2:], gib[:, H2:]], axis=-1)
            n = jnp.tanh(n_in + r * gh[:, H4:])       # one (Bb,2H) tanh
            return (1.0 - z) * n + z * h              # (Bb,2H) blend

        return step

    unroll = True if T <= 16 else 4
    h0 = jnp.zeros((Bb, H2), f32)

    # ---- layer-1 recurrence: interleaved fwd/bwd, outputs stay in VMEM ----
    step1 = make_step(w_hh1_ref, b_hh1_ref)

    def l1_body(i, h):
        h = step1(i, h)
        h1f_ref[i] = h[:, :H].astype(h1f_ref.dtype)
        h1b_ref[T - 1 - i] = h[:, H:].astype(h1b_ref.dtype)
        return h

    lax.fori_loop(0, T, l1_body, h0, unroll=unroll)

    # ---- layer-2 input projection from the VMEM-resident layer-1 output ----
    # gi2 = [h1_fwd | h1_bwd] @ W_ih2 = h1_fwd @ W_ih2[:H] + h1_bwd @ W_ih2[H:]
    h1f = h1f_ref[...]
    h1b = h1b_ref[...]
    gif_ref[...] = (jnp.einsum("tbh,hg->tbg", h1f, w_ih2f_lo_ref[...],
                               preferred_element_type=f32)
                    + jnp.einsum("tbh,hg->tbg", h1b, w_ih2f_hi_ref[...],
                                 preferred_element_type=f32)
                    + b_ih2f_ref[...]).astype(gif_ref.dtype)
    gib_ref[...] = (jnp.einsum("tbh,hg->tbg", h1f, w_ih2b_lo_ref[...],
                               preferred_element_type=f32)
                    + jnp.einsum("tbh,hg->tbg", h1b, w_ih2b_hi_ref[...],
                                 preferred_element_type=f32)
                    + b_ih2b_ref[...]).astype(gib_ref.dtype)

    # ---- layer-2 recurrence with fused online mean/max pooling ----
    step2 = make_step(w_hh2_ref, b_hh2_ref)

    def l2_body(i, carry):
        h, s, m = carry
        h = step2(i, h)
        return h, s + h, jnp.maximum(m, h)

    h, s, m = lax.fori_loop(
        0, T, l2_body,
        (h0, jnp.zeros((Bb, H2), f32), jnp.full((Bb, H2), -jnp.inf, f32)),
        unroll=unroll)

    # Packed per-tile epilogue: [hn_f | hn_b | max_f | max_b | avg_f | avg_b]
    out_ref[...] = jnp.concatenate([h, m, s * jnp.float32(1.0 / T)], axis=-1)


def head_kernel(hc_ref, w1_ref, b1_ref, w2_ref, b2_ref, out_ref):
    """Fused classifier heads: relu((B,6H)@(6H,144)+b) @ block-diag(144,1+aux)+b."""
    z = jnp.maximum(
        jnp.dot(hc_ref[...].astype(w1_ref.dtype), w1_ref[...],
                preferred_element_type=jnp.float32) + b1_ref[...], 0.0)
    out_ref[...] = (jnp.dot(z.astype(w2_ref.dtype), w2_ref[...],
                            preferred_element_type=jnp.float32) + b2_ref[...])


# ----------------------------------------------------------------------------
# Weight preparation (hoisted out of the jitted forward; call once and cache)
# ----------------------------------------------------------------------------
def _build_whh_blk(whh_f, whh_b, bhh_f, bhh_b, dtype=jnp.bfloat16):
    """Block-diagonal recurrent weight (2H, 6H) with gate columns
    [rf | rb | zf | zb | nf | nb]; rows [:H] act on h_fwd, [H:] on h_bwd."""
    H = whh_f.shape[0]
    blk = jnp.zeros((2 * H, 6 * H), jnp.float32)
    blk = blk.at[:H, 0 * H:1 * H].set(whh_f[:, 0 * H:1 * H])   # r fwd
    blk = blk.at[H:, 1 * H:2 * H].set(whh_b[:, 0 * H:1 * H])   # r bwd
    blk = blk.at[:H, 2 * H:3 * H].set(whh_f[:, 1 * H:2 * H])   # z fwd
    blk = blk.at[H:, 3 * H:4 * H].set(whh_b[:, 1 * H:2 * H])   # z bwd
    blk = blk.at[:H, 4 * H:5 * H].set(whh_f[:, 2 * H:3 * H])   # n fwd
    blk = blk.at[H:, 5 * H:6 * H].set(whh_b[:, 2 * H:3 * H])   # n bwd
    bias = jnp.concatenate(
        [bhh_f[:, 0 * H:1 * H], bhh_b[:, 0 * H:1 * H],
         bhh_f[:, 1 * H:2 * H], bhh_b[:, 1 * H:2 * H],
         bhh_f[:, 2 * H:3 * H], bhh_b[:, 2 * H:3 * H]], axis=1)
    return blk.astype(dtype), bias.astype(jnp.float32)


def prepare_params(params, dtype=jnp.bfloat16):
    g1, g2, hp = params["gru1"], params["gru2"], params["head"]
    H = g1["w_hh_f"].shape[0]
    f32 = jnp.float32

    whh1, bhh1 = _build_whh_blk(g1["w_hh_f"], g1["w_hh_b"], g1["b_hh_f"], g1["b_hh_b"], dtype)
    whh2, bhh2 = _build_whh_blk(g2["w_hh_f"], g2["w_hh_b"], g2["b_hh_f"], g2["b_hh_b"], dtype)

    d1 = hp["w_h1"].shape[1]                                   # 72
    n_aux = hp["w_out_aux"].shape[1]
    w_out_blk = jnp.zeros((2 * d1, 1 + n_aux), f32)
    w_out_blk = w_out_blk.at[:d1, :1].set(hp["w_out"])
    w_out_blk = w_out_blk.at[d1:, 1:].set(hp["w_out_aux"])

    return {
        "embedding": params["embedding"].astype(f32),
        # GRU1 input projection (per direction, gate order [r z n])
        "w_ih1_f": g1["w_ih_f"].astype(dtype), "b_ih1_f": g1["b_ih_f"].astype(f32),
        "w_ih1_b": g1["w_ih_b"].astype(dtype), "b_ih1_b": g1["b_ih_b"].astype(f32),
        "w_hh1_blk": whh1, "b_hh1_blk": bhh1,
        # GRU2 input projection, split by which half of [h1_fwd | h1_bwd] it consumes
        "w_ih2_f_lo": g2["w_ih_f"][:H].astype(dtype),
        "w_ih2_f_hi": g2["w_ih_f"][H:].astype(dtype),
        "b_ih2_f": g2["b_ih_f"].astype(f32),
        "w_ih2_b_lo": g2["w_ih_b"][:H].astype(dtype),
        "w_ih2_b_hi": g2["w_ih_b"][H:].astype(dtype),
        "b_ih2_b": g2["b_ih_b"].astype(f32),
        "w_hh2_blk": whh2, "b_hh2_blk": bhh2,
        # Fused classifier heads
        "w_h1_cat": jnp.concatenate([hp["w_h1"], hp["w_h1_aux"]], axis=1).astype(dtype),
        "b_h1_cat": jnp.concatenate([hp["b_h1"], hp["b_h1_aux"]], axis=1).astype(f32),
        "w_out_blk": w_out_blk.astype(dtype),
        "b_out_cat": jnp.concatenate([hp["b_out"], hp["b_out_aux"]], axis=1).astype(f32),
    }


# ----------------------------------------------------------------------------
# Pallas wrappers
# ----------------------------------------------------------------------------
_GRU_WEIGHT_NAMES = (
    "w_ih1_f", "b_ih1_f", "w_ih1_b", "b_ih1_b", "w_hh1_blk", "b_hh1_blk",
    "w_ih2_f_lo", "w_ih2_f_hi", "b_ih2_f",
    "w_ih2_b_lo", "w_ih2_b_hi", "b_ih2_b",
    "w_hh2_blk", "b_hh2_blk",
)


def fused_bigru(x_tbe, prep):
    """Batch-tiled fused GRU1+GRU2+pooling. Returns (B, 6H) f32 packed
    [hn_f | hn_b | max_f | max_b | avg_f | avg_b]."""
    T, B, E = x_tbe.shape
    H = prep["w_hh1_blk"].shape[0] // 2
    Bb = _pick_batch_tile(B, T, E, H)
    grid = (pl.cdiv(B, Bb),)

    def wspec(name):
        arr = prep[name]
        zeros = (0,) * arr.ndim
        return pl.BlockSpec(arr.shape, lambda b, z=zeros: z)

    in_specs = [pl.BlockSpec((T, Bb, E), lambda b: (0, b, 0))]
    in_specs += [wspec(n) for n in _GRU_WEIGHT_NAMES]

    return pl.pallas_call(
        fused_bigru_kernel,
        out_shape=jax.ShapeDtypeStruct((B, 6 * H), jnp.float32),
        grid_spec=pltpu.PrefetchScalarGridSpec(
            num_scalar_prefetch=0,
            grid=grid,
            in_specs=in_specs,
            out_specs=pl.BlockSpec((Bb, 6 * H), lambda b: (b, 0)),
            scratch_shapes=[
                pltpu.VMEM((T, Bb, 3 * H), jnp.bfloat16),   # gi fwd (reused per layer)
                pltpu.VMEM((T, Bb, 3 * H), jnp.bfloat16),   # gi bwd (reused per layer)
                pltpu.VMEM((T, Bb, H), jnp.bfloat16),       # layer-1 fwd outputs
                pltpu.VMEM((T, Bb, H), jnp.bfloat16),       # layer-1 bwd outputs
            ]),
        compiler_params=pltpu.CompilerParams(
            dimension_semantics=("parallel",),
            vmem_limit_bytes=_vmem_limit_bytes()),
    )(x_tbe, *[prep[n] for n in _GRU_WEIGHT_NAMES])


def classifier_heads(h_conc, prep):
    B = h_conc.shape[0]
    n_out = prep["w_out_blk"].shape[1]
    vspec = pl.BlockSpec(memory_space=pltpu.MemorySpace.VMEM)
    return pl.pallas_call(
        head_kernel,
        out_shape=jax.ShapeDtypeStruct((B, n_out), jnp.float32),
        in_specs=[vspec] * 5,
        out_specs=vspec,
        compiler_params=pltpu.CompilerParams(
            vmem_limit_bytes=_vmem_limit_bytes()),
    )(h_conc, prep["w_h1_cat"], prep["b_h1_cat"],
      prep["w_out_blk"], prep["b_out_cat"])


@jax.jit
def bi_gru_forward(x_tokens, features, prep):
    del features                                     # never used in BiGru.forward
    B = x_tokens.shape[0]
    H = prep["w_hh1_blk"].shape[0] // 2

    # Embedding lookup stays in XLA (data-dependent gather glue); transpose the
    # small token matrix so the kernel gets time-major (T, B, E) directly.
    tok_t = jnp.transpose(x_tokens)                                   # (T, B)
    x_tbe = jnp.take(prep["embedding"], tok_t, axis=0).astype(jnp.bfloat16)

    # Fused GRU1 + GRU2 + online pooling (batch-tiled Pallas kernel).
    packed = fused_bigru(x_tbe, prep)                                 # (B, 6H)

    # torch: hn.view(-1, 2H) on the (2, B, H) final-state tensor (mixes batch
    # rows, so it cannot live inside a batch tile).  Pure layout glue in XLA.
    hn_view = jnp.stack([packed[:, :H], packed[:, H:2 * H]],
                        axis=0).reshape(B, 2 * H)
    h_conc = jnp.concatenate([hn_view, packed[:, 2 * H:]], axis=1)    # (B, 6H)

    # Both MLP heads fused in one tiny Pallas kernel.
    return classifier_heads(h_conc, prep)


# ----------------------------------------------------------------------------
# Deterministic parameter init (synthetic; mirrors the module's shapes)
# ----------------------------------------------------------------------------
def init_params(key, max_features, embed_size, lstm_units, num_aux_targets):
    H = lstm_units
    ks = iter(jax.random.split(key, 40))

    def rnd(shape, scale=0.1):
        return (jax.random.normal(next(ks), shape) * scale).astype(jnp.float32)

    def gru_params(in_dim):
        return {
            "w_ih_f": rnd((in_dim, 3 * H)), "w_hh_f": rnd((H, 3 * H)),
            "b_ih_f": rnd((1, 3 * H)),      "b_hh_f": rnd((1, 3 * H)),
            "w_ih_b": rnd((in_dim, 3 * H)), "w_hh_b": rnd((H, 3 * H)),
            "b_ih_b": rnd((1, 3 * H)),      "b_hh_b": rnd((1, 3 * H)),
        }

    return {
        "embedding": rnd((max_features, embed_size), scale=1.0),
        "gru1": gru_params(embed_size),
        "gru2": gru_params(2 * H),
        "head": {
            "w_h1": rnd((6 * H, 72)),      "b_h1": rnd((1, 72)),
            "w_out": rnd((72, 1)),         "b_out": rnd((1, 1)),
            "w_h1_aux": rnd((6 * H, 72)),  "b_h1_aux": rnd((1, 72)),
            "w_out_aux": rnd((72, num_aux_targets)),
            "b_out_aux": rnd((1, num_aux_targets)),
        },
    }


# ----------------------------------------------------------------------------
if __name__ == "__main__":
    B, T = 2, 8
    max_features, embed_size = 128, 64
    lstm_units = 32
    num_aux_targets = 6
    features_size = 4

    key = jax.random.PRNGKey(0)
    k_tok, k_feat, k_par = jax.random.split(key, 3)

    x_tokens = jax.random.randint(k_tok, (B, T), 0, max_features, dtype=jnp.int32)
    features = jax.random.normal(k_feat, (B, features_size), dtype=jnp.float32)
    params = init_params(k_par, max_features, embed_size, lstm_units, num_aux_targets)

    # Weight preparation is hoisted out of the jitted forward and cached.
    prep = prepare_params(params)

    out = bi_gru_forward(x_tokens, features, prep)
    out = jax.block_until_ready(out)
    assert out.shape == (B, 1 + num_aux_targets), out.shape
    assert out.dtype == jnp.float32
    print("KERNEL_OK")
</pallas_src>

<mosaic_0001>
module attributes {stable_mosaic.version = 11 : i64} {
  func.func @head_kernel(%arg0: memref<2x192xf32, #tpu.memory_space<vmem>>, %arg1: memref<192x144xbf16, #tpu.memory_space<vmem>>, %arg2: memref<1x144xf32, #tpu.memory_space<vmem>>, %arg3: memref<144x7xbf16, #tpu.memory_space<vmem>>, %arg4: memref<1x7xf32, #tpu.memory_space<vmem>>, %arg5: memref<2x7xf32, #tpu.memory_space<vmem>>) attributes {dimension_semantics = [], scalar_prefetch = 0 : i64, scratch_operands = 0 : i64, tpu.core_type = #tpu.core_type<tc>} {
    %c0 = arith.constant 0 : index
    %c0_0 = arith.constant 0 : index
    %0 = vector.load %arg0[%c0, %c0_0] : memref<2x192xf32, #tpu.memory_space<vmem>>, vector<2x192xf32>
    %1 = arith.truncf %0 : vector<2x192xf32> to vector<2x192xbf16>
    %c0_1 = arith.constant 0 : index
    %c0_2 = arith.constant 0 : index
    %2 = vector.load %arg1[%c0_1, %c0_2] : memref<192x144xbf16, #tpu.memory_space<vmem>>, vector<192x144xbf16>
    %cst = arith.constant dense<0.000000e+00> : vector<2x144xf32>
    %3 = tpu.matmul %1, %2, %cst {dimension_numbers = #tpu.dot_dimension_numbers<[1], [0], [0], [1], [0, 0, 1, 1], [], []>} : vector<2x192xbf16>, vector<192x144xbf16>, vector<2x144xf32> -> vector<2x144xf32>
    %c0_3 = arith.constant 0 : index
    %c0_4 = arith.constant 0 : index
    %4 = vector.load %arg2[%c0_3, %c0_4] : memref<1x144xf32, #tpu.memory_space<vmem>>, vector<1x144xf32>
    %5 = vector.broadcast %4 : vector<1x144xf32> to vector<2x144xf32>
    %6 = arith.addf %3, %5 : vector<2x144xf32>
    %cst_5 = arith.constant 0.000000e+00 : f32
    %7 = vector.broadcast %cst_5 : f32 to vector<2x144xf32>
    %8 = arith.maximumf %6, %7 : vector<2x144xf32>
    %9 = arith.truncf %8 : vector<2x144xf32> to vector<2x144xbf16>
    %c0_6 = arith.constant 0 : index
    %c0_7 = arith.constant 0 : index
    %10 = vector.load %arg3[%c0_6, %c0_7] : memref<144x7xbf16, #tpu.memory_space<vmem>>, vector<144x7xbf16>
    %cst_8 = arith.constant dense<0.000000e+00> : vector<2x7xf32>
    %11 = tpu.matmul %9, %10, %cst_8 {dimension_numbers = #tpu.dot_dimension_numbers<[1], [0], [0], [1], [0, 0, 1, 1], [], []>} : vector<2x144xbf16>, vector<144x7xbf16>, vector<2x7xf32> -> vector<2x7xf32>
    %c0_9 = arith.constant 0 : index
    %c0_10 = arith.constant 0 : index
    %12 = vector.load %arg4[%c0_9, %c0_10] : memref<1x7xf32, #tpu.memory_space<vmem>>, vector<1x7xf32>
    %13 = vector.broadcast %12 : vector<1x7xf32> to vector<2x7xf32>
    %14 = arith.addf %11, %13 : vector<2x7xf32>
    %c0_11 = arith.constant 0 : index
    %c0_12 = arith.constant 0 : index
    %15 = vector.load %arg5[%c0_11, %c0_12] : memref<2x7xf32, #tpu.memory_space<vmem>>, vector<2x7xf32>
    tpu.vector_store %arg5[%c0_11, %c0_12], %14 {strides = array<i32>} : memref<2x7xf32, #tpu.memory_space<vmem>>, vector<2x7xf32>,
    return
  }
}

module attributes {stable_mosaic.version = 11 : i64} {
  func.func @fused_bigru_kernel(%arg0: i32, %arg1: memref<8x2x64xbf16, #tpu.memory_space<vmem>>, %arg2: memref<64x96xbf16, #tpu.memory_space<vmem>>, %arg3: memref<1x96xf32, #tpu.memory_space<vmem>>, %arg4: memref<64x96xbf16, #tpu.memory_space<vmem>>, %arg5: memref<1x96xf32, #tpu.memory_space<vmem>>, %arg6: memref<64x192xbf16, #tpu.memory_space<vmem>>, %arg7: memref<1x192xf32, #tpu.memory_space<vmem>>, %arg8: memref<32x96xbf16, #tpu.memory_space<vmem>>, %arg9: memref<32x96xbf16, #tpu.memory_space<vmem>>, %arg10: memref<1x96xf32, #tpu.memory_space<vmem>>, %arg11: memref<32x96xbf16, #tpu.memory_space<vmem>>, %arg12: memref<32x96xbf16, #tpu.memory_space<vmem>>, %arg13: memref<1x96xf32, #tpu.memory_space<vmem>>, %arg14: memref<64x192xbf16, #tpu.memory_space<vmem>>, %arg15: memref<1x192xf32, #tpu.memory_space<vmem>>, %arg16: memref<2x192xf32, #tpu.memory_space<vmem>>, %arg17: memref<8x2x96xbf16, #tpu.memory_space<vmem>>, %arg18: memref<8x2x96xbf16, #tpu.memory_space<vmem>>, %arg19: memref<8x2x32xbf16, #tpu.memory_space<vmem>>, %arg20: memref<8x2x32xbf16, #tpu.memory_space<vmem>>) attributes {dimension_semantics = [#tpu.dimension_semantics<parallel>], iteration_bounds = array<i64: 1>, scalar_prefetch = 0 : i64, scratch_operands = 4 : i64, tpu.core_type = #tpu.core_type<tc>, window_params = [{transform_indices = @transform_0, window_bounds = array<i64: 8, 2, 64>}, {pipeline_mode = #tpu.pipeline_mode<synchronous>, transform_indices = @transform_1, window_bounds = array<i64: 64, 96>}, {pipeline_mode = #tpu.pipeline_mode<synchronous>, transform_indices = @transform_2, window_bounds = array<i64: 1, 96>}, {pipeline_mode = #tpu.pipeline_mode<synchronous>, transform_indices = @transform_3, window_bounds = array<i64: 64, 96>}, {pipeline_mode = #tpu.pipeline_mode<synchronous>, transform_indices = @transform_4, window_bounds = array<i64: 1, 96>}, {pipeline_mode = #tpu.pipeline_mode<synchronous>, transform_indices = @transform_5, window_bounds = array<i64: 64, 192>}, {pipeline_mode = #tpu.pipeline_mode<synchronous>, transform_indices = @transform_6, window_bounds = array<i64: 1, 192>}, {pipeline_mode = #tpu.pipeline_mode<synchronous>, transform_indices = @transform_7, window_bounds = array<i64: 32, 96>}, {pipeline_mode = #tpu.pipeline_mode<synchronous>, transform_indices = @transform_8, window_bounds = array<i64: 32, 96>}, {pipeline_mode = #tpu.pipeline_mode<synchronous>, transform_indices = @transform_9, window_bounds = array<i64: 1, 96>}, {pipeline_mode = #tpu.pipeline_mode<synchronous>, transform_indices = @transform_10, window_bounds = array<i64: 32, 96>}, {pipeline_mode = #tpu.pipeline_mode<synchronous>, transform_indices = @transform_11, window_bounds = array<i64: 32, 96>}, {pipeline_mode = #tpu.pipeline_mode<synchronous>, transform_indices = @transform_12, window_bounds = array<i64: 1, 96>}, {pipeline_mode = #tpu.pipeline_mode<synchronous>, transform_indices = @transform_13, window_bounds = array<i64: 64, 192>}, {pipeline_mode = #tpu.pipeline_mode<synchronous>, transform_indices = @transform_14, window_bounds = array<i64: 1, 192>}, {transform_indices = @transform_15, window_bounds = array<i64: 2, 192>}]} {
    %c0 = arith.constant 0 : index
    %c0_0 = arith.constant 0 : index
    %c0_1 = arith.constant 0 : index
    %0 = vector.load %arg1[%c0, %c0_0, %c0_1] : memref<8x2x64xbf16, #tpu.memory_space<vmem>>, vector<8x2x64xbf16>
    %c0_2 = arith.constant 0 : index
    %c0_3 = arith.constant 0 : index
    %1 = vector.load %arg2[%c0_2, %c0_3] : memref<64x96xbf16, #tpu.memory_space<vmem>>, vector<64x96xbf16>
    "tpu.trace_start"() <{level = 10 : i32, message = "tbe,eg->tbg"}> : () -> ()
    %cst = arith.constant dense<0.000000e+00> : vector<8x2x96xf32>
    %2 = tpu.matmul %0, %1, %cst {dimension_numbers = #tpu.dot_dimension_numbers<[2], [0], [0, 1], [1], [0, 0, 0, 1, 1, 1], [], []>} : vector<8x2x64xbf16>, vector<64x96xbf16>, vector<8x2x96xf32> -> vector<8x2x96xf32>
    "tpu.trace_stop"() : () -> ()
    %c0_4 = arith.constant 0 : index
    %c0_5 = arith.constant 0 : index
    %3 = vector.load %arg3[%c0_4, %c0_5] : memref<1x96xf32, #tpu.memory_space<vmem>>, vector<1x96xf32>
    %4 = vector.shape_cast %3 : vector<1x96xf32> to vector<1x1x96xf32>
    %5 = vector.broadcast %4 : vector<1x1x96xf32> to vector<8x2x96xf32>
    %6 = arith.addf %2, %5 : vector<8x2x96xf32>
    %7 = arith.truncf %6 : vector<8x2x96xf32> to vector<8x2x96xbf16>
    %c0_6 = arith.constant 0 : index
    %c0_7 = arith.constant 0 : index
    %c0_8 = arith.constant 0 : index
    %8 = vector.load %arg17[%c0_6, %c0_7, %c0_8] : memref<8x2x96xbf16, #tpu.memory_space<vmem>>, vector<8x2x96xbf16>
    tpu.vector_store %arg17[%c0_6, %c0_7, %c0_8], %7 {strides = array<i32>} : memref<8x2x96xbf16, #tpu.memory_space<vmem>>, vector<8x2x96xbf16>,
    %c0_9 = arith.constant 0 : index
    %c0_10 = arith.constant 0 : index
    %9 = vector.load %arg4[%c0_9, %c0_10] : memref<64x96xbf16, #tpu.memory_space<vmem>>, vector<64x96xbf16>
    "tpu.trace_start"() <{level = 10 : i32, message = "tbe,eg->tbg"}> : () -> ()
    %cst_11 = arith.constant dense<0.000000e+00> : vector<8x2x96xf32>
    %10 = tpu.matmul %0, %9, %cst_11 {dimension_numbers = #tpu.dot_dimension_numbers<[2], [0], [0, 1], [1], [0, 0, 0, 1, 1, 1], [], []>} : vector<8x2x64xbf16>, vector<64x96xbf16>, vector<8x2x96xf32> -> vector<8x2x96xf32>
    "tpu.trace_stop"() : () -> ()
    %c0_12 = arith.constant 0 : index
    %c0_13 = arith.constant 0 : index
    %11 = vector.load %arg5[%c0_12, %c0_13] : memref<1x96xf32, #tpu.memory_space<vmem>>, vector<1x96xf32>
    %12 = vector.shape_cast %11 : vector<1x96xf32> to vector<1x1x96xf32>
    %13 = vector.broadcast %12 : vector<1x1x96xf32> to vector<8x2x96xf32>
    %14 = arith.addf %10, %13 : vector<8x2x96xf32>
    %15 = arith.truncf %14 : vector<8x2x96xf32> to vector<8x2x96xbf16>
    %c0_14 = arith.constant 0 : index
    %c0_15 = arith.constant 0 : index
    %c0_16 = arith.constant 0 : index
    %16 = vector.load %arg18[%c0_14, %c0_15, %c0_16] : memref<8x2x96xbf16, #tpu.memory_space<vmem>>, vector<8x2x96xbf16>
    tpu.vector_store %arg18[%c0_14, %c0_15, %c0_16], %15 {strides = array<i32>} : memref<8x2x96xbf16, #tpu.memory_space<vmem>>, vector<8x2x96xbf16>,
    %cst_17 = arith.constant 0.000000e+00 : f32
    %17 = vector.broadcast %cst_17 : f32 to vector<2x64xf32>
    %c0_18 = arith.constant 0 : index
    %c0_19 = arith.constant 0 : index
    %18 = vector.load %arg6[%c0_18, %c0_19] : memref<64x192xbf16, #tpu.memory_space<vmem>>, vector<64x192xbf16>
    %c0_20 = arith.constant 0 : index
    %c0_21 = arith.constant 0 : index
    %19 = vector.load %arg7[%c0_20, %c0_21] : memref<1x192xf32, #tpu.memory_space<vmem>>, vector<1x192xf32>
    %20 = vector.shape_cast %19 : vector<1x192xf32> to vector<1x192xf32>
    %21 = vector.broadcast %20 : vector<1x192xf32> to vector<2x192xf32>
    %c0_i32 = arith.constant 0 : i32
    %c7_i32 = arith.constant 7 : i32
    %22 = arith.subi %c7_i32, %c0_i32 : i32
    %23 = arith.index_cast %c0_i32 : i32 to index
    %c0_22 = arith.constant 0 : index
    %c0_23 = arith.constant 0 : index
    %24 = vector.load %arg17[%23, %c0_22, %c0_23] : memref<8x2x96xbf16, #tpu.memory_space<vmem>>, vector<1x2x96xbf16>
    %25 = vector.shape_cast %24 : vector<1x2x96xbf16> to vector<2x96xbf16>
    %26 = arith.extf %25 : vector<2x96xbf16> to vector<2x96xf32>
    %27 = arith.index_cast %22 : i32 to index
    %c0_24 = arith.constant 0 : index
    %c0_25 = arith.constant 0 : index
    %28 = vector.load %arg18[%27, %c0_24, %c0_25] : memref<8x2x96xbf16, #tpu.memory_space<vmem>>, vector<1x2x96xbf16>
    %29 = vector.shape_cast %28 : vector<1x2x96xbf16> to vector<2x96xbf16>
    %30 = arith.extf %29 : vector<2x96xbf16> to vector<2x96xf32>
    %31 = arith.truncf %17 : vector<2x64xf32> to vector<2x64xbf16>
    %cst_26 = arith.constant dense<0.000000e+00> : vector<2x192xf32>
    %32 = tpu.matmul %31, %18, %cst_26 {dimension_numbers = #tpu.dot_dimension_numbers<[1], [0], [0], [1], [0, 0, 1, 1], [], []>} : vector<2x64xbf16>, vector<64x192xbf16>, vector<2x192xf32> -> vector<2x192xf32>
    %33 = arith.addf %32, %21 : vector<2x192xf32>
    %34 = vector.extract_strided_slice %26 {offsets = [0, 0], sizes = [2, 32], strides = [1, 1]} : vector<2x96xf32> to vector<2x32xf32>
    %35 = vector.extract_strided_slice %30 {offsets = [0, 0], sizes = [2, 32], strides = [1, 1]} : vector<2x96xf32> to vector<2x32xf32>
    %36 = vector.extract_strided_slice %26 {offsets = [0, 32], sizes = [2, 32], strides = [1, 1]} : vector<2x96xf32> to vector<2x32xf32>
    %37 = vector.extract_strided_slice %30 {offsets = [0, 32], sizes = [2, 32], strides = [1, 1]} : vector<2x96xf32> to vector<2x32xf32>
    %38 = tpu.concatenate %34, %35, %36, %37 in 1 : vector<2x32xf32>, vector<2x32xf32>, vector<2x32xf32>, vector<2x32xf32> -> vector<2x128xf32>
    %39 = vector.extract_strided_slice %33 {offsets = [0, 0], sizes = [2, 128], strides = [1, 1]} : vector<2x192xf32> to vector<2x128xf32>
    %40 = arith.addf %38, %39 : vector<2x128xf32>
    %41 = arith.negf %40 : vector<2x128xf32>
    %42 = math.exp %41 : vector<2x128xf32>
    %cst_27 = arith.constant 1.000000e+00 : f32
    %43 = vector.broadcast %cst_27 : f32 to vector<2x128xf32>
    %44 = arith.addf %43, %42 : vector<2x128xf32>
    %45 = arith.divf %43, %44 : vector<2x128xf32>
    %46 = vector.extract_strided_slice %45 {offsets = [0, 0], sizes = [2, 64], strides = [1, 1]} : vector<2x128xf32> to vector<2x64xf32>
    %47 = vector.extract_strided_slice %45 {offsets = [0, 64], sizes = [2, 64], strides = [1, 1]} : vector<2x128xf32> to vector<2x64xf32>
    %48 = vector.extract_strided_slice %26 {offsets = [0, 64], sizes = [2, 32], strides = [1, 1]} : vector<2x96xf32> to vector<2x32xf32>
    %49 = vector.extract_strided_slice %30 {offsets = [0, 64], sizes = [2, 32], strides = [1, 1]} : vector<2x96xf32> to vector<2x32xf32>
    %50 = tpu.concatenate %48, %49 in 1 : vector<2x32xf32>, vector<2x32xf32> -> vector<2x64xf32>
    %51 = vector.extract_strided_slice %33 {offsets = [0, 128], sizes = [2, 64], strides = [1, 1]} : vector<2x192xf32> to vector<2x64xf32>
    %52 = arith.mulf %46, %51 : vector<2x64xf32>
    %53 = arith.addf %50, %52 : vector<2x64xf32>
    %54 = math.tanh %53 : vector<2x64xf32>
    %cst_28 = arith.constant 1.000000e+00 : f32
    %55 = vector.broadcast %cst_28 : f32 to vector<2x64xf32>
    %56 = arith.subf %55, %47 : vector<2x64xf32>
    %57 = arith.mulf %56, %54 : vector<2x64xf32>
    %58 = arith.mulf %47, %17 : vector<2x64xf32>
    %59 = arith.addf %57, %58 : vector<2x64xf32>
    %60 = vector.extract_strided_slice %59 {offsets = [0, 0], sizes = [2, 32], strides = [1, 1]} : vector<2x64xf32> to vector<2x32xf32>
    %61 = arith.truncf %60 : vector<2x32xf32> to vector<2x32xbf16>
    %62 = arith.index_cast %c0_i32 : i32 to index
    %c0_29 = arith.constant 0 : index
    %c0_30 = arith.constant 0 : index
    %63 = vector.load %arg19[%62, %c0_29, %c0_30] : memref<8x2x32xbf16, #tpu.memory_space<vmem>>, vector<1x2x32xbf16>
    %64 = vector.shape_cast %63 : vector<1x2x32xbf16> to vector<2x32xbf16>
    %65 = vector.shape_cast %61 : vector<2x32xbf16> to vector<1x2x32xbf16>
    tpu.vector_store %arg19[%62, %c0_29, %c0_30], %65 {strides = array<i32>} : memref<8x2x32xbf16, #tpu.memory_space<vmem>>, vector<1x2x32xbf16>,
    %66 = vector.extract_strided_slice %59 {offsets = [0, 32], sizes = [2, 32], strides = [1, 1]} : vector<2x64xf32> to vector<2x32xf32>
    %67 = arith.truncf %66 : vector<2x32xf32> to vector<2x32xbf16>
    %c7_i32_31 = arith.constant 7 : i32
    %68 = arith.subi %c7_i32_31, %c0_i32 : i32
    %69 = arith.index_cast %68 : i32 to index
    %c0_32 = arith.constant 0 : index
    %c0_33 = arith.constant 0 : index
    %70 = vector.load %arg20[%69, %c0_32, %c0_33] : memref<8x2x32xbf16, #tpu.memory_space<vmem>>, vector<1x2x32xbf16>
    %71 = vector.shape_cast %70 : vector<1x2x32xbf16> to vector<2x32xbf16>
    %72 = vector.shape_cast %67 : vector<2x32xbf16> to vector<1x2x32xbf16>
    tpu.vector_store %arg20[%69, %c0_32, %c0_33], %72 {strides = array<i32>} : memref<8x2x32xbf16, #tpu.memory_space<vmem>>, vector<1x2x32xbf16>,
    %c1_i32 = arith.constant 1 : i32
    %c7_i32_34 = arith.constant 7 : i32
    %73 = arith.subi %c7_i32_34, %c1_i32 : i32
    %74 = arith.index_cast %c1_i32 : i32 to index
    %c0_35 = arith.constant 0 : index
    %c0_36 = arith.constant 0 : index
    %75 = vector.load %arg17[%74, %c0_35, %c0_36] : memref<8x2x96xbf16, #tpu.memory_space<vmem>>, vector<1x2x96xbf16>
    %76 = vector.shape_cast %75 : vector<1x2x96xbf16> to vector<2x96xbf16>
    %77 = arith.extf %76 : vector<2x96xbf16> to vector<2x96xf32>
    %78 = arith.index_cast %73 : i32 to index
    %c0_37 = arith.constant 0 : index
    %c0_38 = arith.constant 0 : index
    %79 = vector.load %arg18[%78, %c0_37, %c0_38] : memref<8x2x96xbf16, #tpu.memory_space<vmem>>, vector<1x2x96xbf16>
    %80 = vector.shape_cast %79 : vector<1x2x96xbf16> to vector<2x96xbf16>
    %81 = arith.extf %80 : vector<2x96xbf16> to vector<2x96xf32>
    %82 = arith.truncf %59 : vector<2x64xf32> to vector<2x64xbf16>
    %cst_39 = arith.constant dense<0.000000e+00> : vector<2x192xf32>
    %83 = tpu.matmul %82, %18, %cst_39 {dimension_numbers = #tpu.dot_dimension_numbers<[1], [0], [0], [1], [0, 0, 1, 1], [], []>} : vector<2x64xbf16>, vector<64x192xbf16>, vector<2x192xf32> -> vector<2x192xf32>
    %84 = arith.addf %83, %21 : vector<2x192xf32>
    %85 = vector.extract_strided_slice %77 {offsets = [0, 0], sizes = [2, 32], strides = [1, 1]} : vector<2x96xf32> to vector<2x32xf32>
    %86 = vector.extract_strided_slice %81 {offsets = [0, 0], sizes = [2, 32], strides = [1, 1]} : vector<2x96xf32> to vector<2x32xf32>
    %87 = vector.extract_strided_slice %77 {offsets = [0, 32], sizes = [2, 32], strides = [1, 1]} : vector<2x96xf32> to vector<2x32xf32>
    %88 = vector.extract_strided_slice %81 {offsets = [0, 32], sizes = [2, 32], strides = [1, 1]} : vector<2x96xf32> to vector<2x32xf32>
    %89 = tpu.concatenate %85, %86, %87, %88 in 1 : vector<2x32xf32>, vector<2x32xf32>, vector<2x32xf32>, vector<2x32xf32> -> vector<2x128xf32>
    %90 = vector.extract_strided_slice %84 {offsets = [0, 0], sizes = [2, 128], strides = [1, 1]} : vector<2x192xf32> to vector<2x128xf32>
    %91 = arith.addf %89, %90 : vector<2x128xf32>
    %92 = arith.negf %91 : vector<2x128xf32>
    %93 = math.exp %92 : vector<2x128xf32>
    %cst_40 = arith.constant 1.000000e+00 : f32
    %94 = vector.broadcast %cst_40 : f32 to vector<2x128xf32>
    %95 = arith.addf %94, %93 : vector<2x128xf32>
    %96 = arith.divf %94, %95 : vector<2x128xf32>
    %97 = vector.extract_strided_slice %96 {offsets = [0, 0], sizes = [2, 64], strides = [1, 1]} : vector<2x128xf32> to vector<2x64xf32>
    %98 = vector.extract_strided_slice %96 {offsets = [0, 64], sizes = [2, 64], strides = [1, 1]} : vector<2x128xf32> to vector<2x64xf32>
    %99 = vector.extract_strided_slice %77 {offsets = [0, 64], sizes = [2, 32], strides = [1, 1]} : vector<2x96xf32> to vector<2x32xf32>
    %100 = vector.extract_strided_slice %81 {offsets = [0, 64], sizes = [2, 32], strides = [1, 1]} : vector<2x96xf32> to vector<2x32xf32>
    %101 = tpu.concatenate %99, %100 in 1 : vector<2x32xf32>, vector<2x32xf32> -> vector<2x64xf32>
    %102 = vector.extract_strided_slice %84 {offsets = [0, 128], sizes = [2, 64], strides = [1, 1]} : vector<2x192xf32> to vector<2x64xf32>
    %103 = arith.mulf %97, %102 : vector<2x64xf32>
    %104 = arith.addf %101, %103 : vector<2x64xf32>
    %105 = math.tanh %104 : vector<2x64xf32>
    %cst_41 = arith.constant 1.000000e+00 : f32
    %106 = vector.broadcast %cst_41 : f32 to vector<2x64xf32>
    %107 = arith.subf %106, %98 : vector<2x64xf32>
    %108 = arith.mulf %107, %105 : vector<2x64xf32>
    %109 = arith.mulf %98, %59 : vector<2x64xf32>
    %110 = arith.addf %108, %109 : vector<2x64xf32>
    %111 = vector.extract_strided_slice %110 {offsets = [0, 0], sizes = [2, 32], strides = [1, 1]} : vector<2x64xf32> to vector<2x32xf32>
    %112 = arith.truncf %111 : vector<2x32xf32> to vector<2x32xbf16>
    %113 = arith.index_cast %c1_i32 : i32 to index
    %c0_42 = arith.constant 0 : index
    %c0_43 = arith.constant 0 : index
    %114 = vector.load %arg19[%113, %c0_42, %c0_43] : memref<8x2x32xbf16, #tpu.memory_space<vmem>>, vector<1x2x32xbf16>
    %115 = vector.shape_cast %114 : vector<1x2x32xbf16> to vector<2x32xbf16>
    %116 = vector.shape_cast %112 : vector<2x32xbf16> to vector<1x2x32xbf16>
    tpu.vector_store %arg19[%113, %c0_42, %c0_43], %116 {strides = array<i32>} : memref<8x2x32xbf16, #tpu.memory_space<vmem>>, vector<1x2x32xbf16>,
    %117 = vector.extract_strided_slice %110 {offsets = [0, 32], sizes = [2, 32], strides = [1, 1]} : vector<2x64xf32> to vector<2x32xf32>
    %118 = arith.truncf %117 : vector<2x32xf32> to vector<2x32xbf16>
    %c7_i32_44 = arith.constant 7 : i32
    %119 = arith.subi %c7_i32_44, %c1_i32 : i32
    %120 = arith.index_cast %119 : i32 to index
    %c0_45 = arith.constant 0 : index
    %c0_46 = arith.constant 0 : index
    %121 = vector.load %arg20[%120, %c0_45, %c0_46] : memref<8x2x32xbf16, #tpu.memory_space<vmem>>, vector<1x2x32xbf16>
    %122 = vector.shape_cast %121 : vector<1x2x32xbf16> to vector<2x32xbf16>
    %123 = vector.shape_cast %118 : vector<2x32xbf16> to vector<1x2x32xbf16>
    tpu.vector_store %arg20[%120, %c0_45, %c0_46], %123 {strides = array<i32>} : memref<8x2x32xbf16, #tpu.memory_space<vmem>>, vector<1x2x32xbf16>,
    %c2_i32 = arith.constant 2 : i32
    %c7_i32_47 = arith.constant 7 : i32
    %124 = arith.subi %c7_i32_47, %c2_i32 : i32
    %125 = arith.index_cast %c2_i32 : i32 to index
    %c0_48 = arith.constant 0 : index
    %c0_49 = arith.constant 0 : index
    %126 = vector.load %arg17[%125, %c0_48, %c0_49] : memref<8x2x96xbf16, #tpu.memory_space<vmem>>, vector<1x2x96xbf16>
    %127 = vector.shape_cast %126 : vector<1x2x96xbf16> to vector<2x96xbf16>
    %128 = arith.extf %127 : vector<2x96xbf16> to vector<2x96xf32>
    %129 = arith.index_cast %124 : i32 to index
    %c0_50 = arith.constant 0 : index
    %c0_51 = arith.constant 0 : index
    %130 = vector.load %arg18[%129, %c0_50, %c0_51] : memref<8x2x96xbf16, #tpu.memory_space<vmem>>, vector<1x2x96xbf16>
    %131 = vector.shape_cast %130 : vector<1x2x96xbf16> to vector<2x96xbf16>
    %132 = arith.extf %131 : vector<2x96xbf16> to vector<2x96xf32>
    %133 = arith.truncf %110 : vector<2x64xf32> to vector<2x64xbf16>
    %cst_52 = arith.constant dense<0.000000e+00> : vector<2x192xf32>
    %134 = tpu.matmul %133, %18, %cst_52 {dimension_numbers = #tpu.dot_dimension_numbers<[1], [0], [0], [1], [0, 0, 1, 1], [], []>} : vector<2x64xbf16>, vector<64x192xbf16>, vector<2x192xf32> -> vector<2x192xf32>
    %135 = arith.addf %134, %21 : vector<2x192xf32>
    %136 = vector.extract_strided_slice %128 {offsets = [0, 0], sizes = [2, 32], strides = [1, 1]} : vector<2x96xf32> to vector<2x32xf32>
    %137 = vector.extract_strided_slice %132 {offsets = [0, 0], sizes = [2, 32], strides = [1, 1]} : vector<2x96xf32> to vector<2x32xf32>
    %138 = vector.extract_strided_slice %128 {offsets = [0, 32], sizes = [2, 32], strides = [1, 1]} : vector<2x96xf32> to vector<2x32xf32>
    %139 = vector.extract_strided_slice %132 {offsets = [0, 32], sizes = [2, 32], strides = [1, 1]} : vector<2x96xf32> to vector<2x32xf32>
    %140 = tpu.concatenate %136, %137, %138, %139 in 1 : vector<2x32xf32>, vector<2x32xf32>, vector<2x32xf32>, vector<2x32xf32> -> vector<2x128xf32>
    %141 = vector.extract_strided_slice %135 {offsets = [0, 0], sizes = [2, 128], strides = [1, 1]} : vector<2x192xf32> to vector<2x128xf32>
    %142 = arith.addf %140, %141 : vector<2x128xf32>
    %143 = arith.negf %142 : vector<2x128xf32>
    %144 = math.exp %143 : vector<2x128xf32>
    %cst_53 = arith.constant 1.000000e+00 : f32
    %145 = vector.broadcast %cst_53 : f32 to vector<2x128xf32>
    %146 = arith.addf %145, %144 : vector<2x128xf32>
    %147 = arith.divf %145, %146 : vector<2x128xf32>
    %148 = vector.extract_strided_slice %147 {offsets = [0, 0], sizes = [2, 64], strides = [1, 1]} : vector<2x128xf32> to vector<2x64xf32>
    %149 = vector.extract_strided_slice %147 {offsets = [0, 64], sizes = [2, 64], strides = [1, 1]} : vector<2x128xf32> to vector<2x64xf32>
    %150 = vector.extract_strided_slice %128 {offsets = [0, 64], sizes = [2, 32], strides = [1, 1]} : vector<2x96xf32> to vector<2x32xf32>
    %151 = vector.extract_strided_slice %132 {offsets = [0, 64], sizes = [2, 32], strides = [1, 1]} : vector<2x96xf32> to vector<2x32xf32>
    %152 = tpu.concatenate %150, %151 in 1 : vector<2x32xf32>, vector<2x32xf32> -> vector<2x64xf32>
    %153 = vector.extract_strided_slice %135 {offsets = [0, 128], sizes = [2, 64], strides = [1, 1]} : vector<2x192xf32> to vector<2x64xf32>
    %154 = arith.mulf %148, %153 : vector<2x64xf32>
    %155 = arith.addf %152, %154 : vector<2x64xf32>
    %156 = math.tanh %155 : vector<2x64xf32>
    %cst_54 = arith.constant 1.000000e+00 : f32
    %157 = vector.broadcast %cst_54 : f32 to vector<2x64xf32>
    %158 = arith.subf %157, %149 : vector<2x64xf32>
    %159 = arith.mulf %158, %156 : vector<2x64xf32>
    %160 = arith.mulf %149, %110 : vector<2x64xf32>
    %161 = arith.addf %159, %160 : vector<2x64xf32>
    %162 = vector.extract_strided_slice %161 {offsets = [0, 0], sizes = [2, 32], strides = [1, 1]} : vector<2x64xf32> to vector<2x32xf32>
    %163 = arith.truncf %162 : vector<2x32xf32> to vector<2x32xbf16>
    %164 = arith.index_cast %c2_i32 : i32 to index
    %c0_55 = arith.constant 0 : index
    %c0_56 = arith.constant 0 : index
    %165 = vector.load %arg19[%164, %c0_55, %c0_56] : memref<8x2x32xbf16, #tpu.memory_space<vmem>>, vector<1x2x32xbf16>
    %166 = vector.shape_cast %165 : vector<1x2x32xbf16> to vector<2x32xbf16>
    %167 = vector.shape_cast %163 : vector<2x32xbf16> to vector<1x2x32xbf16>
    tpu.vector_store %arg19[%164, %c0_55, %c0_56], %167 {strides = array<i32>} : memref<8x2x32xbf16, #tpu.memory_space<vmem>>, vector<1x2x32xbf16>,
    %168 = vector.extract_strided_slice %161 {offsets = [0, 32], sizes = [2, 32], strides = [1, 1]} : vector<2x64xf32> to vector<2x32xf32>
    %169 = arith.truncf %168 : vector<2x32xf32> to vector<2x32xbf16>
    %c7_i32_57 = arith.constant 7 : i32
    %170 = arith.subi %c7_i32_57, %c2_i32 : i32
    %171 = arith.index_cast %170 : i32 to index
    %c0_58 = arith.constant 0 : index
    %c0_59 = arith.constant 0 : index
    %172 = vector.load %arg20[%171, %c0_58, %c0_59] : memref<8x2x32xbf16, #tpu.memory_space<vmem>>, vector<1x2x32xbf16>
    %173 = vector.shape_cast %172 : vector<1x2x32xbf16> to vector<2x32xbf16>
    %174 = vector.shape_cast %169 : vector<2x32xbf16> to vector<1x2x32xbf16>
    tpu.vector_store %arg20[%171, %c0_58, %c0_59], %174 {strides = array<i32>} : memref<8x2x32xbf16, #tpu.memory_space<vmem>>, vector<1x2x32xbf16>,
    %c3_i32 = arith.constant 3 : i32
    %c7_i32_60 = arith.constant 7 : i32
    %175 = arith.subi %c7_i32_60, %c3_i32 : i32
    %176 = arith.index_cast %c3_i32 : i32 to index
    %c0_61 = arith.constant 0 : index
    %c0_62 = arith.constant 0 : index
    %177 = vector.load %arg17[%176, %c0_61, %c0_62] : memref<8x2x96xbf16, #tpu.memory_space<vmem>>, vector<1x2x96xbf16>
    %178 = vector.shape_cast %177 : vector<1x2x96xbf16> to vector<2x96xbf16>
    %179 = arith.extf %178 : vector<2x96xbf16> to vector<2x96xf32>
    %180 = arith.index_cast %175 : i32 to index
    %c0_63 = arith.constant 0 : index
    %c0_64 = arith.constant 0 : index
    %181 = vector.load %arg18[%180, %c0_63, %c0_64] : memref<8x2x96xbf16, #tpu.memory_space<vmem>>, vector<1x2x96xbf16>
    %182 = vector.shape_cast %181 : vector<1x2x96xbf16> to vector<2x96xbf16>
    %183 = arith.extf %182 : vector<2x96xbf16> to vector<2x96xf32>
    %184 = arith.truncf %161 : vector<2x64xf32> to vector<2x64xbf16>
    %cst_65 = arith.constant dense<0.000000e+00> : vector<2x192xf32>
    %185 = tpu.matmul %184, %18, %cst_65 {dimension_numbers = #tpu.dot_dimension_numbers<[1], [0], [0], [1], [0, 0, 1, 1], [], []>} : vector<2x64xbf16>, vector<64x192xbf16>, vector<2x192xf32> -> vector<2x192xf32>
    %186 = arith.addf %185, %21 : vector<2x192xf32>
    %187 = vector.extract_strided_slice %179 {offsets = [0, 0], sizes = [2, 32], strides = [1, 1]} : vector<2x96xf32> to vector<2x32xf32>
    %188 = vector.extract_strided_slice %183 {offsets = [0, 0], sizes = [2, 32], strides = [1, 1]} : vector<2x96xf32> to vector<2x32xf32>
    %189 = vector.extract_strided_slice %179 {offsets = [0, 32], sizes = [2, 32], strides = [1, 1]} : vector<2x96xf32> to vector<2x32xf32>
    %190 = vector.extract_strided_slice %183 {offsets = [0, 32], sizes = [2, 32], strides = [1, 1]} : vector<2x96xf32> to vector<2x32xf32>
    %191 = tpu.concatenate %187, %188, %189, %190 in 1 : vector<2x32xf32>, vector<2x32xf32>, vector<2x32xf32>, vector<2x32xf32> -> vector<2x128xf32>
    %192 = vector.extract_strided_slice %186 {offsets = [0, 0], sizes = [2, 128], strides = [1, 1]} : vector<2x192xf32> to vector<2x128xf32>
    %193 = arith.addf %191, %192 : vector<2x128xf32>
    %194 = arith.negf %193 : vector<2x128xf32>
    %195 = math.exp %194 : vector<2x128xf32>
    %cst_66 = arith.constant 1.000000e+00 : f32
    %196 = vector.broadcast %cst_66 : f32 to vector<2x128xf32>
    %197 = arith.addf %196, %195 : vector<2x128xf32>
    %198 = arith.divf %196, %197 : vector<2x128xf32>
    %199 = vector.extract_strided_slice %198 {offsets = [0, 0], sizes = [2, 64], strides = [1, 1]} : vector<2x128xf32> to vector<2x64xf32>
    %200 = vector.extract_strided_slice %198 {offsets = [0, 64], sizes = [2, 64], strides = [1, 1]} : vector<2x128xf32> to vector<2x64xf32>
    %201 = vector.extract_strided_slice %179 {offsets = [0, 64], sizes = [2, 32], strides = [1, 1]} : vector<2x96xf32> to vector<2x32xf32>
    %202 = vector.extract_strided_slice %183 {offsets = [0, 64], sizes = [2, 32], strides = [1, 1]} : vector<2x96xf32> to vector<2x32xf32>
    %203 = tpu.concatenate %201, %202 in 1 : vector<2x32xf32>, vector<2x32xf32> -> vector<2x64xf32>
    %204 = vector.extract_strided_slice %186 {offsets = [0, 128], sizes = [2, 64], strides = [1, 1]} : vector<2x192xf32> to vector<2x64xf32>
    %205 = arith.mulf %199, %204 : vector<2x64xf32>
    %206 = arith.addf %203, %205 : vector<2x64xf32>
    %207 = math.tanh %206 : vector<2x64xf32>
    %cst_67 = arith.constant 1.000000e+00 : f32
    %208 = vector.broadcast %cst_67 : f32 to vector<2x64xf32>
    %209 = arith.subf %208, %200 : vector<2x64xf32>
    %210 = arith.mulf %209, %207 : vector<2x64xf32>
    %211 = arith.mulf %200, %161 : vector<2x64xf32>
    %212 = arith.addf %210, %211 : vector<2x64xf32>
    %213 = vector.extract_strided_slice %212 {offsets = [0, 0], sizes = [2, 32], strides = [1, 1]} : vector<2x64xf32> to vector<2x32xf32>
    %214 = arith.truncf %213 : vector<2x32xf32> to vector<2x32xbf16>
    %215 = arith.index_cast %c3_i32 : i32 to index
    %c0_68 = arith.constant 0 : index
    %c0_69 = arith.constant 0 : index
    %216 = vector.load %arg19[%215, %c0_68, %c0_69] : memref<8x2x32xbf16, #tpu.memory_space<vmem>>, vector<1x2x32xbf16>
    %217 = vector.shape_cast %216 : vector<1x2x32xbf16> to vector<2x32xbf16>
    %218 = vector.shape_cast %214 : vector<2x32xbf16> to vector<1x2x32xbf16>
    tpu.vector_store %arg19[%215, %c0_68, %c0_69], %218 {strides = array<i32>} : memref<8x2x32xbf16, #tpu.memory_space<vmem>>, vector<1x2x32xbf16>,
    %219 = vector.extract_strided_slice %212 {offsets = [0, 32], sizes = [2, 32], strides = [1, 1]} : vector<2x64xf32> to vector<2x32xf32>
    %220 = arith.truncf %219 : vector<2x32xf32> to vector<2x32xbf16>
    %c7_i32_70 = arith.constant 7 : i32
    %221 = arith.subi %c7_i32_70, %c3_i32 : i32
    %222 = arith.index_cast %221 : i32 to index
    %c0_71 = arith.constant 0 : index
    %c0_72 = arith.constant 0 : index
    %223 = vector.load %arg20[%222, %c0_71, %c0_72] : memref<8x2x32xbf16, #tpu.memory_space<vmem>>, vector<1x2x32xbf16>
    %224 = vector.shape_cast %223 : vector<1x2x32xbf16> to vector<2x32xbf16>
    %225 = vector.shape_cast %220 : vector<2x32xbf16> to vector<1x2x32xbf16>
    tpu.vector_store %arg20[%222, %c0_71, %c0_72], %225 {strides = array<i32>} : memref<8x2x32xbf16, #tpu.memory_space<vmem>>, vector<1x2x32xbf16>,
    %c4_i32 = arith.constant 4 : i32
    %c7_i32_73 = arith.constant 7 : i32
    %226 = arith.subi %c7_i32_73, %c4_i32 : i32
    %227 = arith.index_cast %c4_i32 : i32 to index
    %c0_74 = arith.constant 0 : index
    %c0_75 = arith.constant 0 : index
    %228 = vector.load %arg17[%227, %c0_74, %c0_75] : memref<8x2x96xbf16, #tpu.memory_space<vmem>>, vector<1x2x96xbf16>
    %229 = vector.shape_cast %228 : vector<1x2x96xbf16> to vector<2x96xbf16>
    %230 = arith.extf %229 : vector<2x96xbf16> to vector<2x96xf32>
    %231 = arith.index_cast %226 : i32 to index
    %c0_76 = arith.constant 0 : index
    %c0_77 = arith.constant 0 : index
    %232 = vector.load %arg18[%231, %c0_76, %c0_77] : memref<8x2x96xbf16, #tpu.memory_space<vmem>>, vector<1x2x96xbf16>
    %233 = vector.shape_cast %232 : vector<1x2x96xbf16> to vector<2x96xbf16>
    %234 = arith.extf %233 : vector<2x96xbf16> to vector<2x96xf32>
    %235 = arith.truncf %212 : vector<2x64xf32> to vector<2x64xbf16>
    %cst_78 = arith.constant dense<0.000000e+00> : vector<2x192xf32>
    %236 = tpu.matmul %235, %18, %cst_78 {dimension_numbers = #tpu.dot_dimension_numbers<[1], [0], [0], [1], [0, 0, 1, 1], [], []>} : vector<2x64xbf16>, vector<64x192xbf16>, vector<2x192xf32> -> vector<2x192xf32>
    %237 = arith.addf %236, %21 : vector<2x192xf32>
    %238 = vector.extract_strided_slice %230 {offsets = [0, 0], sizes = [2, 32], strides = [1, 1]} : vector<2x96xf32> to vector<2x32xf32>
    %239 = vector.extract_strided_slice %234 {offsets = [0, 0], sizes = [2, 32], strides = [1, 1]} : vector<2x96xf32> to vector<2x32xf32>
    %240 = vector.extract_strided_slice %230 {offsets = [0, 32], sizes = [2, 32], strides = [1, 1]} : vector<2x96xf32> to vector<2x32xf32>
    %241 = vector.extract_strided_slice %234 {offsets = [0, 32], sizes = [2, 32], strides = [1, 1]} : vector<2x96xf32> to vector<2x32xf32>
    %242 = tpu.concatenate %238, %239, %240, %241 in 1 : vector<2x32xf32>, vector<2x32xf32>, vector<2x32xf32>, vector<2x32xf32> -> vector<2x128xf32>
    %243 = vector.extract_strided_slice %237 {offsets = [0, 0], sizes = [2, 128], strides = [1, 1]} : vector<2x192xf32> to vector<2x128xf32>
    %244 = arith.addf %242, %243 : vector<2x128xf32>
    %245 = arith.negf %244 : vector<2x128xf32>
    %246 = math.exp %245 : vector<2x128xf32>
    %cst_79 = arith.constant 1.000000e+00 : f32
    %247 = vector.broadcast %cst_79 : f32 to vector<2x128xf32>
    %248 = arith.addf %247, %246 : vector<2x128xf32>
    %249 = arith.divf %247, %248 : vector<2x128xf32>
    %250 = vector.extract_strided_slice %249 {offsets = [0, 0], sizes = [2, 64], strides = [1, 1]} : vector<2x128xf32> to vector<2x64xf32>
    %251 = vector.extract_strided_slice %249 {offsets = [0, 64], sizes = [2, 64], strides = [1, 1]} : vector<2x128xf32> to vector<2x64xf32>
    %252 = vector.extract_strided_slice %230 {offsets = [0, 64], sizes = [2, 32], strides = [1, 1]} : vector<2x96xf32> to vector<2x32xf32>
    %253 = vector.extract_strided_slice %234 {offsets = [0, 64], sizes = [2, 32], strides = [1, 1]} : vector<2x96xf32> to vector<2x32xf32>
    %254 = tpu.concatenate %252, %253 in 1 : vector<2x32xf32>, vector<2x32xf32> -> vector<2x64xf32>
    %255 = vector.extract_strided_slice %237 {offsets = [0, 128], sizes = [2, 64], strides = [1, 1]} : vector<2x192xf32> to vector<2x64xf32>
    %256 = arith.mulf %250, %255 : vector<2x64xf32>
    %257 = arith.addf %254, %256 : vector<2x64xf32>
    %258 = math.tanh %257 : vector<2x64xf32>
    %cst_80 = arith.constant 1.000000e+00 : f32
    %259 = vector.broadcast %cst_80 : f32 to vector<2x64xf32>
    %260 = arith.subf %259, %251 : vector<2x64xf32>
    %261 = arith.mulf %260, %258 : vector<2x64xf32>
    %262 = arith.mulf %251, %212 : vector<2x64xf32>
    %263 = arith.addf %261, %262 : vector<2x64xf32>
    %264 = vector.extract_strided_slice %263 {offsets = [0, 0], sizes = [2, 32], strides = [1, 1]} : vector<2x64xf32> to vector<2x32xf32>
    %265 = arith.truncf %264 : vector<2x32xf32> to vector<2x32xbf16>
    %266 = arith.index_cast %c4_i32 : i32 to index
    %c0_81 = arith.constant 0 : index
    %c0_82 = arith.constant 0 : index
    %267 = vector.load %arg19[%266, %c0_81, %c0_82] : memref<8x2x32xbf16, #tpu.memory_space<vmem>>, vector<1x2x32xbf16>
    %268 = vector.shape_cast %267 : vector<1x2x32xbf16> to vector<2x32xbf16>
    %269 = vector.shape_cast %265 : vector<2x32xbf16> to vector<1x2x32xbf16>
    tpu.vector_store %arg19[%266, %c0_81, %c0_82], %269 {strides = array<i32>} : memref<8x2x32xbf16, #tpu.memory_space<vmem>>, vector<1x2x32xbf16>,
    %270 = vector.extract_strided_slice %263 {offsets = [0, 32], sizes = [2, 32], strides = [1, 1]} : vector<2x64xf32> to vector<2x32xf32>
    %271 = arith.truncf %270 : vector<2x32xf32> to vector<2x32xbf16>
    %c7_i32_83 = arith.constant 7 : i32
    %272 = arith.subi %c7_i32_83, %c4_i32 : i32
    %273 = arith.index_cast %272 : i32 to index
    %c0_84 = arith.constant 0 : index
    %c0_85 = arith.constant 0 : index
    %274 = vector.load %arg20[%273, %c0_84, %c0_85] : memref<8x2x32xbf16, #tpu.memory_space<vmem>>, vector<1x2x32xbf16>
    %275 = vector.shape_cast %274 : vector<1x2x32xbf16> to vector<2x32xbf16>
    %276 = vector.shape_cast %271 : vector<2x32xbf16> to vector<1x2x32xbf16>
    tpu.vector_store %arg20[%273, %c0_84, %c0_85], %276 {strides = array<i32>} : memref<8x2x32xbf16, #tpu.memory_space<vmem>>, vector<1x2x32xbf16>,
    %c5_i32 = arith.constant 5 : i32
    %c7_i32_86 = arith.constant 7 : i32
    %277 = arith.subi %c7_i32_86, %c5_i32 : i32
    %278 = arith.index_cast %c5_i32 : i32 to index
    %c0_87 = arith.constant 0 : index
    %c0_88 = arith.constant 0 : index
    %279 = vector.load %arg17[%278, %c0_87, %c0_88] : memref<8x2x96xbf16, #tpu.memory_space<vmem>>, vector<1x2x96xbf16>
    %280 = vector.shape_cast %279 : vector<1x2x96xbf16> to vector<2x96xbf16>
    %281 = arith.extf %280 : vector<2x96xbf16> to vector<2x96xf32>
    %282 = arith.index_cast %277 : i32 to index
    %c0_89 = arith.constant 0 : index
    %c0_90 = arith.constant 0 : index
    %283 = vector.load %arg18[%282, %c0_89, %c0_90] : memref<8x2x96xbf16, #tpu.memory_space<vmem>>, vector<1x2x96xbf16>
    %284 = vector.shape_cast %283 : vector<1x2x96xbf16> to vector<2x96xbf16>
    %285 = arith.extf %284 : vector<2x96xbf16> to vector<2x96xf32>
    %286 = arith.truncf %263 : vector<2x64xf32> to vector<2x64xbf16>
    %cst_91 = arith.constant dense<0.000000e+00> : vector<2x192xf32>
    %287 = tpu.matmul %286, %18, %cst_91 {dimension_numbers = #tpu.dot_dimension_numbers<[1], [0], [0], [1], [0, 0, 1, 1], [], []>} : vector<2x64xbf16>, vector<64x192xbf16>, vector<2x192xf32> -> vector<2x192xf32>
    %288 = arith.addf %287, %21 : vector<2x192xf32>
    %289 = vector.extract_strided_slice %281 {offsets = [0, 0], sizes = [2, 32], strides = [1, 1]} : vector<2x96xf32> to vector<2x32xf32>
    %290 = vector.extract_strided_slice %285 {offsets = [0, 0], sizes = [2, 32], strides = [1, 1]} : vector<2x96xf32> to vector<2x32xf32>
    %291 = vector.extract_strided_slice %281 {offsets = [0, 32], sizes = [2, 32], strides = [1, 1]} : vector<2x96xf32> to vector<2x32xf32>
    %292 = vector.extract_strided_slice %285 {offsets = [0, 32], sizes = [2, 32], strides = [1, 1]} : vector<2x96xf32> to vector<2x32xf32>
    %293 = tpu.concatenate %289, %290, %291, %292 in 1 : vector<2x32xf32>, vector<2x32xf32>, vector<2x32xf32>, vector<2x32xf32> -> vector<2x128xf32>
    %294 = vector.extract_strided_slice %288 {offsets = [0, 0], sizes = [2, 128], strides = [1, 1]} : vector<2x192xf32> to vector<2x128xf32>
    %295 = arith.addf %293, %294 : vector<2x128xf32>
    %296 = arith.negf %295 : vector<2x128xf32>
    %297 = math.exp %296 : vector<2x128xf32>
    %cst_92 = arith.constant 1.000000e+00 : f32
    %298 = vector.broadcast %cst_92 : f32 to vector<2x128xf32>
    %299 = arith.addf %298, %297 : vector<2x128xf32>
    %300 = arith.divf %298, %299 : vector<2x128xf32>
    %301 = vector.extract_strided_slice %300 {offsets = [0, 0], sizes = [2, 64], strides = [1, 1]} : vector<2x128xf32> to vector<2x64xf32>
    %302 = vector.extract_strided_slice %300 {offsets = [0, 64], sizes = [2, 64], strides = [1, 1]} : vector<2x128xf32> to vector<2x64xf32>
    %303 = vector.extract_strided_slice %281 {offsets = [0, 64], sizes = [2, 32], strides = [1, 1]} : vector<2x96xf32> to vector<2x32xf32>
    %304 = vector.extract_strided_slice %285 {offsets = [0, 64], sizes = [2, 32], strides = [1, 1]} : vector<2x96xf32> to vector<2x32xf32>
    %305 = tpu.concatenate %303, %304 in 1 : vector<2x32xf32>, vector<2x32xf32> -> vector<2x64xf32>
    %306 = vector.extract_strided_slice %288 {offsets = [0, 128], sizes = [2, 64], strides = [1, 1]} : vector<2x192xf32> to vector<2x64xf32>
    %307 = arith.mulf %301, %306 : vector<2x64xf32>
    %308 = arith.addf %305, %307 : vector<2x64xf32>
    %309 = math.tanh %308 : vector<2x64xf32>
    %cst_93 = arith.constant 1.000000e+00 : f32
    %310 = vector.broadcast %cst_93 : f32 to vector<2x64xf32>
    %311 = arith.subf %310, %302 : vector<2x64xf32>
    %312 = arith.mulf %311, %309 : vector<2x64xf32>
    %313 = arith.mulf %302, %263 : vector<2x64xf32>
    %314 = arith.addf %312, %313 : vector<2x64xf32>
    %315 = vector.extract_strided_slice %314 {offsets = [0, 0], sizes = [2, 32], strides = [1, 1]} : vector<2x64xf32> to vector<2x32xf32>
    %316 = arith.truncf %315 : vector<2x32xf32> to vector<2x32xbf16>
    %317 = arith.index_cast %c5_i32 : i32 to index
    %c0_94 = arith.constant 0 : index
    %c0_95 = arith.constant 0 : index
    %318 = vector.load %arg19[%317, %c0_94, %c0_95] : memref<8x2x32xbf16, #tpu.memory_space<vmem>>, vector<1x2x32xbf16>
    %319 = vector.shape_cast %318 : vector<1x2x32xbf16> to vector<2x32xbf16>
    %320 = vector.shape_cast %316 : vector<2x32xbf16> to vector<1x2x32xbf16>
    tpu.vector_store %arg19[%317, %c0_94, %c0_95], %320 {strides = array<i32>} : memref<8x2x32xbf16, #tpu.memory_space<vmem>>, vector<1x2x32xbf16>,
    %321 = vector.extract_strided_slice %314 {offsets = [0, 32], sizes = [2, 32], strides = [1, 1]} : vector<2x64xf32> to vector<2x32xf32>
    %322 = arith.truncf %321 : vector<2x32xf32> to vector<2x32xbf16>
    %c7_i32_96 = arith.constant 7 : i32
    %323 = arith.subi %c7_i32_96, %c5_i32 : i32
    %324 = arith.index_cast %323 : i32 to index
    %c0_97 = arith.constant 0 : index
    %c0_98 = arith.constant 0 : index
    %325 = vector.load %arg20[%324, %c0_97, %c0_98] : memref<8x2x32xbf16, #tpu.memory_space<vmem>>, vector<1x2x32xbf16>
    %326 = vector.shape_cast %325 : vector<1x2x32xbf16> to vector<2x32xbf16>
    %327 = vector.shape_cast %322 : vector<2x32xbf16> to vector<1x2x32xbf16>
    tpu.vector_store %arg20[%324, %c0_97, %c0_98], %327 {strides = array<i32>} : memref<8x2x32xbf16, #tpu.memory_space<vmem>>, vector<1x2x32xbf16>,
    %c6_i32 = arith.constant 6 : i32
    %c7_i32_99 = arith.constant 7 : i32
    %328 = arith.subi %c7_i32_99, %c6_i32 : i32
    %329 = arith.index_cast %c6_i32 : i32 to index
    %c0_100 = arith.constant 0 : index
    %c0_101 = arith.constant 0 : index
    %330 = vector.load %arg17[%329, %c0_100, %c0_101] : memref<8x2x96xbf16, #tpu.memory_space<vmem>>, vector<1x2x96xbf16>
    %331 = vector.shape_cast %330 : vector<1x2x96xbf16> to vector<2x96xbf16>
    %332 = arith.extf %331 : vector<2x96xbf16> to vector<2x96xf32>
    %333 = arith.index_cast %328 : i32 to index
    %c0_102 = arith.constant 0 : index
    %c0_103 = arith.constant 0 : index
    %334 = vector.load %arg18[%333, %c0_102, %c0_103] : memref<8x2x96xbf16, #tpu.memory_space<vmem>>, vector<1x2x96xbf16>
    %335 = vector.shape_cast %334 : vector<1x2x96xbf16> to vector<2x96xbf16>
    %336 = arith.extf %335 : vector<2x96xbf16> to vector<2x96xf32>
    %337 = arith.truncf %314 : vector<2x64xf32> to vector<2x64xbf16>
    %cst_104 = arith.constant dense<0.000000e+00> : vector<2x192xf32>
    %338 = tpu.matmul %337, %18, %cst_104 {dimension_numbers = #tpu.dot_dimension_numbers<[1], [0], [0], [1], [0, 0, 1, 1], [], []>} : vector<2x64xbf16>, vector<64x192xbf16>, vector<2x192xf32> -> vector<2x192xf32>
    %339 = arith.addf %338, %21 : vector<2x192xf32>
    %340 = vector.extract_strided_slice %332 {offsets = [0, 0], sizes = [2, 32], strides = [1, 1]} : vector<2x96xf32> to vector<2x32xf32>
    %341 = vector.extract_strided_slice %336 {offsets = [0, 0], sizes = [2, 32], strides = [1, 1]} : vector<2x96xf32> to vector<2x32xf32>
    %342 = vector.extract_strided_slice %332 {offsets = [0, 32], sizes = [2, 32], strides = [1, 1]} : vector<2x96xf32> to vector<2x32xf32>
    %343 = vector.extract_strided_slice %336 {offsets = [0, 32], sizes = [2, 32], strides = [1, 1]} : vector<2x96xf32> to vector<2x32xf32>
    %344 = tpu.concatenate %340, %341, %342, %343 in 1 : vector<2x32xf32>, vector<2x32xf32>, vector<2x32xf32>, vector<2x32xf32> -> vector<2x128xf32>
    %345 = vector.extract_strided_slice %339 {offsets = [0, 0], sizes = [2, 128], strides = [1, 1]} : vector<2x192xf32> to vector<2x128xf32>
    %346 = arith.addf %344, %345 : vector<2x128xf32>
    %347 = arith.negf %346 : vector<2x128xf32>
    %348 = math.exp %347 : vector<2x128xf32>
    %cst_105 = arith.constant 1.000000e+00 : f32
    %349 = vector.broadcast %cst_105 : f32 to vector<2x128xf32>
    %350 = arith.addf %349, %348 : vector<2x128xf32>
    %351 = arith.divf %349, %350 : vector<2x128xf32>
    %352 = vector.extract_strided_slice %351 {offsets = [0, 0], sizes = [2, 64], strides = [1, 1]} : vector<2x128xf32> to vector<2x64xf32>
    %353 = vector.extract_strided_slice %351 {offsets = [0, 64], sizes = [2, 64], strides = [1, 1]} : vector<2x128xf32> to vector<2x64xf32>
    %354 = vector.extract_strided_slice %332 {offsets = [0, 64], sizes = [2, 32], strides = [1, 1]} : vector<2x96xf32> to vector<2x32xf32>
    %355 = vector.extract_strided_slice %336 {offsets = [0, 64], sizes = [2, 32], strides = [1, 1]} : vector<2x96xf32> to vector<2x32xf32>
    %356 = tpu.concatenate %354, %355 in 1 : vector<2x32xf32>, vector<2x32xf32> -> vector<2x64xf32>
    %357 = vector.extract_strided_slice %339 {offsets = [0, 128], sizes = [2, 64], strides = [1, 1]} : vector<2x192xf32> to vector<2x64xf32>
    %358 = arith.mulf %352, %357 : vector<2x64xf32>
    %359 = arith.addf %356, %358 : vector<2x64xf32>
    %360 = math.tanh %359 : vector<2x64xf32>
    %cst_106 = arith.constant 1.000000e+00 : f32
    %361 = vector.broadcast %cst_106 : f32 to vector<2x64xf32>
    %362 = arith.subf %361, %353 : vector<2x64xf32>
    %363 = arith.mulf %362, %360 : vector<2x64xf32>
    %364 = arith.mulf %353, %314 : vector<2x64xf32>
    %365 = arith.addf %363, %364 : vector<2x64xf32>
    %366 = vector.extract_strided_slice %365 {offsets = [0, 0], sizes = [2, 32], strides = [1, 1]} : vector<2x64xf32> to vector<2x32xf32>
    %367 = arith.truncf %366 : vector<2x32xf32> to vector<2x32xbf16>
    %368 = arith.index_cast %c6_i32 : i32 to index
    %c0_107 = arith.constant 0 : index
    %c0_108 = arith.constant 0 : index
    %369 = vector.load %arg19[%368, %c0_107, %c0_108] : memref<8x2x32xbf16, #tpu.memory_space<vmem>>, vector<1x2x32xbf16>
    %370 = vector.shape_cast %369 : vector<1x2x32xbf16> to vector<2x32xbf16>
    %371 = vector.shape_cast %367 : vector<2x32xbf16> to vector<1x2x32xbf16>
    tpu.vector_store %arg19[%368, %c0_107, %c0_108], %371 {strides = array<i32>} : memref<8x2x32xbf16, #tpu.memory_space<vmem>>, vector<1x2x32xbf16>,
    %372 = vector.extract_strided_slice %365 {offsets = [0, 32], sizes = [2, 32], strides = [1, 1]} : vector<2x64xf32> to vector<2x32xf32>
    %373 = arith.truncf %372 : vector<2x32xf32> to vector<2x32xbf16>
    %c7_i32_109 = arith.constant 7 : i32
    %374 = arith.subi %c7_i32_109, %c6_i32 : i32
    %375 = arith.index_cast %374 : i32 to index
    %c0_110 = arith.constant 0 : index
    %c0_111 = arith.constant 0 : index
    %376 = vector.load %arg20[%375, %c0_110, %c0_111] : memref<8x2x32xbf16, #tpu.memory_space<vmem>>, vector<1x2x32xbf16>
    %377 = vector.shape_cast %376 : vector<1x2x32xbf16> to vector<2x32xbf16>
    %378 = vector.shape_cast %373 : vector<2x32xbf16> to vector<1x2x32xbf16>
    tpu.vector_store %arg20[%375, %c0_110, %c0_111], %378 {strides = array<i32>} : memref<8x2x32xbf16, #tpu.memory_space<vmem>>, vector<1x2x32xbf16>,
    %c7_i32_112 = arith.constant 7 : i32
    %c7_i32_113 = arith.constant 7 : i32
    %379 = arith.subi %c7_i32_113, %c7_i32_112 : i32
    %380 = arith.index_cast %c7_i32_112 : i32 to index
    %c0_114 = arith.constant 0 : index
    %c0_115 = arith.constant 0 : index
    %381 = vector.load %arg17[%380, %c0_114, %c0_115] : memref<8x2x96xbf16, #tpu.memory_space<vmem>>, vector<1x2x96xbf16>
    %382 = vector.shape_cast %381 : vector<1x2x96xbf16> to vector<2x96xbf16>
    %383 = arith.extf %382 : vector<2x96xbf16> to vector<2x96xf32>
    %384 = arith.index_cast %379 : i32 to index
    %c0_116 = arith.constant 0 : index
    %c0_117 = arith.constant 0 : index
    %385 = vector.load %arg18[%384, %c0_116, %c0_117] : memref<8x2x96xbf16, #tpu.memory_space<vmem>>, vector<1x2x96xbf16>
    %386 = vector.shape_cast %385 : vector<1x2x96xbf16> to vector<2x96xbf16>
    %387 = arith.extf %386 : vector<2x96xbf16> to vector<2x96xf32>
    %388 = arith.truncf %365 : vector<2x64xf32> to vector<2x64xbf16>
    %cst_118 = arith.constant dense<0.000000e+00> : vector<2x192xf32>
    %389 = tpu.matmul %388, %18, %cst_118 {dimension_numbers = #tpu.dot_dimension_numbers<[1], [0], [0], [1], [0, 0, 1, 1], [], []>} : vector<2x64xbf16>, vector<64x192xbf16>, vector<2x192xf32> -> vector<2x192xf32>
    %390 = arith.addf %389, %21 : vector<2x192xf32>
    %391 = vector.extract_strided_slice %383 {offsets = [0, 0], sizes = [2, 32], strides = [1, 1]} : vector<2x96xf32> to vector<2x32xf32>
    %392 = vector.extract_strided_slice %387 {offsets = [0, 0], sizes = [2, 32], strides = [1, 1]} : vector<2x96xf32> to vector<2x32xf32>
    %393 = vector.extract_strided_slice %383 {offsets = [0, 32], sizes = [2, 32], strides = [1, 1]} : vector<2x96xf32> to vector<2x32xf32>
    %394 = vector.extract_strided_slice %387 {offsets = [0, 32], sizes = [2, 32], strides = [1, 1]} : vector<2x96xf32> to vector<2x32xf32>
    %395 = tpu.concatenate %391, %392, %393, %394 in 1 : vector<2x32xf32>, vector<2x32xf32>, vector<2x32xf32>, vector<2x32xf32> -> vector<2x128xf32>
    %396 = vector.extract_strided_slice %390 {offsets = [0, 0], sizes = [2, 128], strides = [1, 1]} : vector<2x192xf32> to vector<2x128xf32>
    %397 = arith.addf %395, %396 : vector<2x128xf32>
    %398 = arith.negf %397 : vector<2x128xf32>
    %399 = math.exp %398 : vector<2x128xf32>
    %cst_119 = arith.constant 1.000000e+00 : f32
    %400 = vector.broadcast %cst_119 : f32 to vector<2x128xf32>
    %401 = arith.addf %400, %399 : vector<2x128xf32>
    %402 = arith.divf %400, %401 : vector<2x128xf32>
    %403 = vector.extract_strided_slice %402 {offsets = [0, 0], sizes = [2, 64], strides = [1, 1]} : vector<2x128xf32> to vector<2x64xf32>
    %404 = vector.extract_strided_slice %402 {offsets = [0, 64], sizes = [2, 64], strides = [1, 1]} : vector<2x128xf32> to vector<2x64xf32>
    %405 = vector.extract_strided_slice %383 {offsets = [0, 64], sizes = [2, 32], strides = [1, 1]} : vector<2x96xf32> to vector<2x32xf32>
    %406 = vector.extract_strided_slice %387 {offsets = [0, 64], sizes = [2, 32], strides = [1, 1]} : vector<2x96xf32> to vector<2x32xf32>
    %407 = tpu.concatenate %405, %406 in 1 : vector<2x32xf32>, vector<2x32xf32> -> vector<2x64xf32>
    %408 = vector.extract_strided_slice %390 {offsets = [0, 128], sizes = [2, 64], strides = [1, 1]} : vector<2x192xf32> to vector<2x64xf32>
    %409 = arith.mulf %403, %408 : vector<2x64xf32>
    %410 = arith.addf %407, %409 : vector<2x64xf32>
    %411 = math.tanh %410 : vector<2x64xf32>
    %cst_120 = arith.constant 1.000000e+00 : f32
    %412 = vector.broadcast %cst_120 : f32 to vector<2x64xf32>
    %413 = arith.subf %412, %404 : vector<2x64xf32>
    %414 = arith.mulf %413, %411 : vector<2x64xf32>
    %415 = arith.mulf %404, %365 : vector<2x64xf32>
    %416 = arith.addf %414, %415 : vector<2x64xf32>
    %417 = vector.extract_strided_slice %416 {offsets = [0, 0], sizes = [2, 32], strides = [1, 1]} : vector<2x64xf32> to vector<2x32xf32>
    %418 = arith.truncf %417 : vector<2x32xf32> to vector<2x32xbf16>
    %419 = arith.index_cast %c7_i32_112 : i32 to index
    %c0_121 = arith.constant 0 : index
    %c0_122 = arith.constant 0 : index
    %420 = vector.load %arg19[%419, %c0_121, %c0_122] : memref<8x2x32xbf16, #tpu.memory_space<vmem>>, vector<1x2x32xbf16>
    %421 = vector.shape_cast %420 : vector<1x2x32xbf16> to vector<2x32xbf16>
    %422 = vector.shape_cast %418 : vector<2x32xbf16> to vector<1x2x32xbf16>
    tpu.vector_store %arg19[%419, %c0_121, %c0_122], %422 {strides = array<i32>} : memref<8x2x32xbf16, #tpu.memory_space<vmem>>, vector<1x2x32xbf16>,
    %423 = vector.extract_strided_slice %416 {offsets = [0, 32], sizes = [2, 32], strides = [1, 1]} : vector<2x64xf32> to vector<2x32xf32>
    %424 = arith.truncf %423 : vector<2x32xf32> to vector<2x32xbf16>
    %c7_i32_123 = arith.constant 7 : i32
    %425 = arith.subi %c7_i32_123, %c7_i32_112 : i32
    %426 = arith.index_cast %425 : i32 to index
    %c0_124 = arith.constant 0 : index
    %c0_125 = arith.constant 0 : index
    %427 = vector.load %arg20[%426, %c0_124, %c0_125] : memref<8x2x32xbf16, #tpu.memory_space<vmem>>, vector<1x2x32xbf16>
    %428 = vector.shape_cast %427 : vector<1x2x32xbf16> to vector<2x32xbf16>
    %429 = vector.shape_cast %424 : vector<2x32xbf16> to vector<1x2x32xbf16>
    tpu.vector_store %arg20[%426, %c0_124, %c0_125], %429 {strides = array<i32>} : memref<8x2x32xbf16, #tpu.memory_space<vmem>>, vector<1x2x32xbf16>,
    %c8_i32 = arith.constant 8 : i32
    %c0_126 = arith.constant 0 : index
    %c0_127 = arith.constant 0 : index
    %c0_128 = arith.constant 0 : index
    %430 = vector.load %arg19[%c0_126, %c0_127, %c0_128] : memref<8x2x32xbf16, #tpu.memory_space<vmem>>, vector<8x2x32xbf16>
    %c0_129 = arith.constant 0 : index
    %c0_130 = arith.constant 0 : index
    %c0_131 = arith.constant 0 : index
    %431 = vector.load %arg20[%c0_129, %c0_130, %c0_131] : memref<8x2x32xbf16, #tpu.memory_space<vmem>>, vector<8x2x32xbf16>
    %c0_132 = arith.constant 0 : index
    %c0_133 = arith.constant 0 : index
    %432 = vector.load %arg8[%c0_132, %c0_133] : memref<32x96xbf16, #tpu.memory_space<vmem>>, vector<32x96xbf16>
    "tpu.trace_start"() <{level = 10 : i32, message = "tbh,hg->tbg"}> : () -> ()
    %cst_134 = arith.constant dense<0.000000e+00> : vector<8x2x96xf32>
    %433 = tpu.matmul %430, %432, %cst_134 {dimension_numbers = #tpu.dot_dimension_numbers<[2], [0], [0, 1], [1], [0, 0, 0, 1, 1, 1], [], []>} : vector<8x2x32xbf16>, vector<32x96xbf16>, vector<8x2x96xf32> -> vector<8x2x96xf32>
    "tpu.trace_stop"() : () -> ()
    %c0_135 = arith.constant 0 : index
    %c0_136 = arith.constant 0 : index
    %434 = vector.load %arg9[%c0_135, %c0_136] : memref<32x96xbf16, #tpu.memory_space<vmem>>, vector<32x96xbf16>
    "tpu.trace_start"() <{level = 10 : i32, message = "tbh,hg->tbg"}> : () -> ()
    %cst_137 = arith.constant dense<0.000000e+00> : vector<8x2x96xf32>
    %435 = tpu.matmul %431, %434, %cst_137 {dimension_numbers = #tpu.dot_dimension_numbers<[2], [0], [0, 1], [1], [0, 0, 0, 1, 1, 1], [], []>} : vector<8x2x32xbf16>, vector<32x96xbf16>, vector<8x2x96xf32> -> vector<8x2x96xf32>
    "tpu.trace_stop"() : () -> ()
    %436 = arith.addf %433, %435 : vector<8x2x96xf32>
    %c0_138 = arith.constant 0 : index
    %c0_139 = arith.constant 0 : index
    %437 = vector.load %arg10[%c0_138, %c0_139] : memref<1x96xf32, #tpu.memory_space<vmem>>, vector<1x96xf32>
    %438 = vector.shape_cast %437 : vector<1x96xf32> to vector<1x1x96xf32>
    %439 = vector.broadcast %438 : vector<1x1x96xf32> to vector<8x2x96xf32>
    %440 = arith.addf %436, %439 : vector<8x2x96xf32>
    %441 = arith.truncf %440 : vector<8x2x96xf32> to vector<8x2x96xbf16>
    %c0_140 = arith.constant 0 : index
    %c0_141 = arith.constant 0 : index
    %c0_142 = arith.constant 0 : index
    %442 = vector.load %arg17[%c0_140, %c0_141, %c0_142] : memref<8x2x96xbf16, #tpu.memory_space<vmem>>, vector<8x2x96xbf16>
    tpu.vector_store %arg17[%c0_140, %c0_141, %c0_142], %441 {strides = array<i32>} : memref<8x2x96xbf16, #tpu.memory_space<vmem>>, vector<8x2x96xbf16>,
    %c0_143 = arith.constant 0 : index
    %c0_144 = arith.constant 0 : index
    %443 = vector.load %arg11[%c0_143, %c0_144] : memref<32x96xbf16, #tpu.memory_space<vmem>>, vector<32x96xbf16>
    "tpu.trace_start"() <{level = 10 : i32, message = "tbh,hg->tbg"}> : () -> ()
    %cst_145 = arith.constant dense<0.000000e+00> : vector<8x2x96xf32>
    %444 = tpu.matmul %430, %443, %cst_145 {dimension_numbers = #tpu.dot_dimension_numbers<[2], [0], [0, 1], [1], [0, 0, 0, 1, 1, 1], [], []>} : vector<8x2x32xbf16>, vector<32x96xbf16>, vector<8x2x96xf32> -> vector<8x2x96xf32>
    "tpu.trace_stop"() : () -> ()
    %c0_146 = arith.constant 0 : index
    %c0_147 = arith.constant 0 : index
    %445 = vector.load %arg12[%c0_146, %c0_147] : memref<32x96xbf16, #tpu.memory_space<vmem>>, vector<32x96xbf16>
    "tpu.trace_start"() <{level = 10 : i32, message = "tbh,hg->tbg"}> : () -> ()
    %cst_148 = arith.constant dense<0.000000e+00> : vector<8x2x96xf32>
    %446 = tpu.matmul %431, %445, %cst_148 {dimension_numbers = #tpu.dot_dimension_numbers<[2], [0], [0, 1], [1], [0, 0, 0, 1, 1, 1], [], []>} : vector<8x2x32xbf16>, vector<32x96xbf16>, vector<8x2x96xf32> -> vector<8x2x96xf32>
    "tpu.trace_stop"() : () -> ()
    %447 = arith.addf %444, %446 : vector<8x2x96xf32>
    %c0_149 = arith.constant 0 : index
    %c0_150 = arith.constant 0 : index
    %448 = vector.load %arg13[%c0_149, %c0_150] : memref<1x96xf32, #tpu.memory_space<vmem>>, vector<1x96xf32>
    %449 = vector.shape_cast %448 : vector<1x96xf32> to vector<1x1x96xf32>
    %450 = vector.broadcast %449 : vector<1x1x96xf32> to vector<8x2x96xf32>
    %451 = arith.addf %447, %450 : vector<8x2x96xf32>
    %452 = arith.truncf %451 : vector<8x2x96xf32> to vector<8x2x96xbf16>
    %c0_151 = arith.constant 0 : index
    %c0_152 = arith.constant 0 : index
    %c0_153 = arith.constant 0 : index
    %453 = vector.load %arg18[%c0_151, %c0_152, %c0_153] : memref<8x2x96xbf16, #tpu.memory_space<vmem>>, vector<8x2x96xbf16>
    tpu.vector_store %arg18[%c0_151, %c0_152, %c0_153], %452 {strides = array<i32>} : memref<8x2x96xbf16, #tpu.memory_space<vmem>>, vector<8x2x96xbf16>,
    %c0_154 = arith.constant 0 : index
    %c0_155 = arith.constant 0 : index
    %454 = vector.load %arg14[%c0_154, %c0_155] : memref<64x192xbf16, #tpu.memory_space<vmem>>, vector<64x192xbf16>
    %c0_156 = arith.constant 0 : index
    %c0_157 = arith.constant 0 : index
    %455 = vector.load %arg15[%c0_156, %c0_157] : memref<1x192xf32, #tpu.memory_space<vmem>>, vector<1x192xf32>
    %456 = vector.shape_cast %455 : vector<1x192xf32> to vector<1x192xf32>
    %457 = vector.broadcast %456 : vector<1x192xf32> to vector<2x192xf32>
    %cst_158 = arith.constant 0.000000e+00 : f32
    %458 = vector.broadcast %cst_158 : f32 to vector<2x64xf32>
    %cst_159 = arith.constant 0xFF800000 : f32
    %459 = vector.broadcast %cst_159 : f32 to vector<2x64xf32>
    %c0_i32_160 = arith.constant 0 : i32
    %c7_i32_161 = arith.constant 7 : i32
    %460 = arith.subi %c7_i32_161, %c0_i32_160 : i32
    %461 = arith.index_cast %c0_i32_160 : i32 to index
    %c0_162 = arith.constant 0 : index
    %c0_163 = arith.constant 0 : index
    %462 = vector.load %arg17[%461, %c0_162, %c0_163] : memref<8x2x96xbf16, #tpu.memory_space<vmem>>, vector<1x2x96xbf16>
    %463 = vector.shape_cast %462 : vector<1x2x96xbf16> to vector<2x96xbf16>
    %464 = arith.extf %463 : vector<2x96xbf16> to vector<2x96xf32>
    %465 = arith.index_cast %460 : i32 to index
    %c0_164 = arith.constant 0 : index
    %c0_165 = arith.constant 0 : index
    %466 = vector.load %arg18[%465, %c0_164, %c0_165] : memref<8x2x96xbf16, #tpu.memory_space<vmem>>, vector<1x2x96xbf16>
    %467 = vector.shape_cast %466 : vector<1x2x96xbf16> to vector<2x96xbf16>
    %468 = arith.extf %467 : vector<2x96xbf16> to vector<2x96xf32>
    %469 = arith.truncf %17 : vector<2x64xf32> to vector<2x64xbf16>
    %cst_166 = arith.constant dense<0.000000e+00> : vector<2x192xf32>
    %470 = tpu.matmul %469, %454, %cst_166 {dimension_numbers = #tpu.dot_dimension_numbers<[1], [0], [0], [1], [0, 0, 1, 1], [], []>} : vector<2x64xbf16>, vector<64x192xbf16>, vector<2x192xf32> -> vector<2x192xf32>
    %471 = arith.addf %470, %457 : vector<2x192xf32>
    %472 = vector.extract_strided_slice %464 {offsets = [0, 0], sizes = [2, 32], strides = [1, 1]} : vector<2x96xf32> to vector<2x32xf32>
    %473 = vector.extract_strided_slice %468 {offsets = [0, 0], sizes = [2, 32], strides = [1, 1]} : vector<2x96xf32> to vector<2x32xf32>
    %474 = vector.extract_strided_slice %464 {offsets = [0, 32], sizes = [2, 32], strides = [1, 1]} : vector<2x96xf32> to vector<2x32xf32>
    %475 = vector.extract_strided_slice %468 {offsets = [0, 32], sizes = [2, 32], strides = [1, 1]} : vector<2x96xf32> to vector<2x32xf32>
    %476 = tpu.concatenate %472, %473, %474, %475 in 1 : vector<2x32xf32>, vector<2x32xf32>, vector<2x32xf32>, vector<2x32xf32> -> vector<2x128xf32>
    %477 = vector.extract_strided_slice %471 {offsets = [0, 0], sizes = [2, 128], strides = [1, 1]} : vector<2x192xf32> to vector<2x128xf32>
    %478 = arith.addf %476, %477 : vector<2x128xf32>
    %479 = arith.negf %478 : vector<2x128xf32>
    %480 = math.exp %479 : vector<2x128xf32>
    %cst_167 = arith.constant 1.000000e+00 : f32
    %481 = vector.broadcast %cst_167 : f32 to vector<2x128xf32>
    %482 = arith.addf %481, %480 : vector<2x128xf32>
    %483 = arith.divf %481, %482 : vector<2x128xf32>
    %484 = vector.extract_strided_slice %483 {offsets = [0, 0], sizes = [2, 64], strides = [1, 1]} : vector<2x128xf32> to vector<2x64xf32>
    %485 = vector.extract_strided_slice %483 {offsets = [0, 64], sizes = [2, 64], strides = [1, 1]} : vector<2x128xf32> to vector<2x64xf32>
    %486 = vector.extract_strided_slice %464 {offsets = [0, 64], sizes = [2, 32], strides = [1, 1]} : vector<2x96xf32> to vector<2x32xf32>
    %487 = vector.extract_strided_slice %468 {offsets = [0, 64], sizes = [2, 32], strides = [1, 1]} : vector<2x96xf32> to vector<2x32xf32>
    %488 = tpu.concatenate %486, %487 in 1 : vector<2x32xf32>, vector<2x32xf32> -> vector<2x64xf32>
    %489 = vector.extract_strided_slice %471 {offsets = [0, 128], sizes = [2, 64], strides = [1, 1]} : vector<2x192xf32> to vector<2x64xf32>
    %490 = arith.mulf %484, %489 : vector<2x64xf32>
    %491 = arith.addf %488, %490 : vector<2x64xf32>
    %492 = math.tanh %491 : vector<2x64xf32>
    %cst_168 = arith.constant 1.000000e+00 : f32
    %493 = vector.broadcast %cst_168 : f32 to vector<2x64xf32>
    %494 = arith.subf %493, %485 : vector<2x64xf32>
    %495 = arith.mulf %494, %492 : vector<2x64xf32>
    %496 = arith.mulf %485, %17 : vector<2x64xf32>
    %497 = arith.addf %495, %496 : vector<2x64xf32>
    %498 = arith.addf %458, %497 : vector<2x64xf32>
    %499 = arith.maximumf %459, %497 : vector<2x64xf32>
    %c1_i32_169 = arith.constant 1 : i32
    %c7_i32_170 = arith.constant 7 : i32
    %500 = arith.subi %c7_i32_170, %c1_i32_169 : i32
    %501 = arith.index_cast %c1_i32_169 : i32 to index
    %c0_171 = arith.constant 0 : index
    %c0_172 = arith.constant 0 : index
    %502 = vector.load %arg17[%501, %c0_171, %c0_172] : memref<8x2x96xbf16, #tpu.memory_space<vmem>>, vector<1x2x96xbf16>
    %503 = vector.shape_cast %502 : vector<1x2x96xbf16> to vector<2x96xbf16>
    %504 = arith.extf %503 : vector<2x96xbf16> to vector<2x96xf32>
    %505 = arith.index_cast %500 : i32 to index
    %c0_173 = arith.constant 0 : index
    %c0_174 = arith.constant 0 : index
    %506 = vector.load %arg18[%505, %c0_173, %c0_174] : memref<8x2x96xbf16, #tpu.memory_space<vmem>>, vector<1x2x96xbf16>
    %507 = vector.shape_cast %506 : vector<1x2x96xbf16> to vector<2x96xbf16>
    %508 = arith.extf %507 : vector<2x96xbf16> to vector<2x96xf32>
    %509 = arith.truncf %497 : vector<2x64xf32> to vector<2x64xbf16>
    %cst_175 = arith.constant dense<0.000000e+00> : vector<2x192xf32>
    %510 = tpu.matmul %509, %454, %cst_175 {dimension_numbers = #tpu.dot_dimension_numbers<[1], [0], [0], [1], [0, 0, 1, 1], [], []>} : vector<2x64xbf16>, vector<64x192xbf16>, vector<2x192xf32> -> vector<2x192xf32>
    %511 = arith.addf %510, %457 : vector<2x192xf32>
    %512 = vector.extract_strided_slice %504 {offsets = [0, 0], sizes = [2, 32], strides = [1, 1]} : vector<2x96xf32> to vector<2x32xf32>
    %513 = vector.extract_strided_slice %508 {offsets = [0, 0], sizes = [2, 32], strides = [1, 1]} : vector<2x96xf32> to vector<2x32xf32>
    %514 = vector.extract_strided_slice %504 {offsets = [0, 32], sizes = [2, 32], strides = [1, 1]} : vector<2x96xf32> to vector<2x32xf32>
    %515 = vector.extract_strided_slice %508 {offsets = [0, 32], sizes = [2, 32], strides = [1, 1]} : vector<2x96xf32> to vector<2x32xf32>
    %516 = tpu.concatenate %512, %513, %514, %515 in 1 : vector<2x32xf32>, vector<2x32xf32>, vector<2x32xf32>, vector<2x32xf32> -> vector<2x128xf32>
    %517 = vector.extract_strided_slice %511 {offsets = [0, 0], sizes = [2, 128], strides = [1, 1]} : vector<2x192xf32> to vector<2x128xf32>
    %518 = arith.addf %516, %517 : vector<2x128xf32>
    %519 = arith.negf %518 : vector<2x128xf32>
    %520 = math.exp %519 : vector<2x128xf32>
    %cst_176 = arith.constant 1.000000e+00 : f32
    %521 = vector.broadcast %cst_176 : f32 to vector<2x128xf32>
    %522 = arith.addf %521, %520 : vector<2x128xf32>
    %523 = arith.divf %521, %522 : vector<2x128xf32>
    %524 = vector.extract_strided_slice %523 {offsets = [0, 0], sizes = [2, 64], strides = [1, 1]} : vector<2x128xf32> to vector<2x64xf32>
    %525 = vector.extract_strided_slice %523 {offsets = [0, 64], sizes = [2, 64], strides = [1, 1]} : vector<2x128xf32> to vector<2x64xf32>
    %526 = vector.extract_strided_slice %504 {offsets = [0, 64], sizes = [2, 32], strides = [1, 1]} : vector<2x96xf32> to vector<2x32xf32>
    %527 = vector.extract_strided_slice %508 {offsets = [0, 64], sizes = [2, 32], strides = [1, 1]} : vector<2x96xf32> to vector<2x32xf32>
    %528 = tpu.concatenate %526, %527 in 1 : vector<2x32xf32>, vector<2x32xf32> -> vector<2x64xf32>
    %529 = vector.extract_strided_slice %511 {offsets = [0, 128], sizes = [2, 64], strides = [1, 1]} : vector<2x192xf32> to vector<2x64xf32>
    %530 = arith.mulf %524, %529 : vector<2x64xf32>
    %531 = arith.addf %528, %530 : vector<2x64xf32>
    %532 = math.tanh %531 : vector<2x64xf32>
    %cst_177 = arith.constant 1.000000e+00 : f32
    %533 = vector.broadcast %cst_177 : f32 to vector<2x64xf32>
    %534 = arith.subf %533, %525 : vector<2x64xf32>
    %535 = arith.mulf %534, %532 : vector<2x64xf32>
    %536 = arith.mulf %525, %497 : vector<2x64xf32>
    %537 = arith.addf %535, %536 : vector<2x64xf32>
    %538 = arith.addf %498, %537 : vector<2x64xf32>
    %539 = arith.maximumf %499, %537 : vector<2x64xf32>
    %c2_i32_178 = arith.constant 2 : i32
    %c7_i32_179 = arith.constant 7 : i32
    %540 = arith.subi %c7_i32_179, %c2_i32_178 : i32
    %541 = arith.index_cast %c2_i32_178 : i32 to index
    %c0_180 = arith.constant 0 : index
    %c0_181 = arith.constant 0 : index
    %542 = vector.load %arg17[%541, %c0_180, %c0_181] : memref<8x2x96xbf16, #tpu.memory_space<vmem>>, vector<1x2x96xbf16>
    %543 = vector.shape_cast %542 : vector<1x2x96xbf16> to vector<2x96xbf16>
    %544 = arith.extf %543 : vector<2x96xbf16> to vector<2x96xf32>
    %545 = arith.index_cast %540 : i32 to index
    %c0_182 = arith.constant 0 : index
    %c0_183 = arith.constant 0 : index
    %546 = vector.load %arg18[%545, %c0_182, %c0_183] : memref<8x2x96xbf16, #tpu.memory_space<vmem>>, vector<1x2x96xbf16>
    %547 = vector.shape_cast %546 : vector<1x2x96xbf16> to vector<2x96xbf16>
    %548 = arith.extf %547 : vector<2x96xbf16> to vector<2x96xf32>
    %549 = arith.truncf %537 : vector<2x64xf32> to vector<2x64xbf16>
    %cst_184 = arith.constant dense<0.000000e+00> : vector<2x192xf32>
    %550 = tpu.matmul %549, %454, %cst_184 {dimension_numbers = #tpu.dot_dimension_numbers<[1], [0], [0], [1], [0, 0, 1, 1], [], []>} : vector<2x64xbf16>, vector<64x192xbf16>, vector<2x192xf32> -> vector<2x192xf32>
    %551 = arith.addf %550, %457 : vector<2x192xf32>
    %552 = vector.extract_strided_slice %544 {offsets = [0, 0], sizes = [2, 32], strides = [1, 1]} : vector<2x96xf32> to vector<2x32xf32>
    %553 = vector.extract_strided_slice %548 {offsets = [0, 0], sizes = [2, 32], strides = [1, 1]} : vector<2x96xf32> to vector<2x32xf32>
    %554 = vector.extract_strided_slice %544 {offsets = [0, 32], sizes = [2, 32], strides = [1, 1]} : vector<2x96xf32> to vector<2x32xf32>
    %555 = vector.extract_strided_slice %548 {offsets = [0, 32], sizes = [2, 32], strides = [1, 1]} : vector<2x96xf32> to vector<2x32xf32>
    %556 = tpu.concatenate %552, %553, %554, %555 in 1 : vector<2x32xf32>, vector<2x32xf32>, vector<2x32xf32>, vector<2x32xf32> -> vector<2x128xf32>
    %557 = vector.extract_strided_slice %551 {offsets = [0, 0], sizes = [2, 128], strides = [1, 1]} : vector<2x192xf32> to vector<2x128xf32>
    %558 = arith.addf %556, %557 : vector<2x128xf32>
    %559 = arith.negf %558 : vector<2x128xf32>
    %560 = math.exp %559 : vector<2x128xf32>
    %cst_185 = arith.constant 1.000000e+00 : f32
    %561 = vector.broadcast %cst_185 : f32 to vector<2x128xf32>
    %562 = arith.addf %561, %560 : vector<2x128xf32>
    %563 = arith.divf %561, %562 : vector<2x128xf32>
    %564 = vector.extract_strided_slice %563 {offsets = [0, 0], sizes = [2, 64], strides = [1, 1]} : vector<2x128xf32> to vector<2x64xf32>
    %565 = vector.extract_strided_slice %563 {offsets = [0, 64], sizes = [2, 64], strides = [1, 1]} : vector<2x128xf32> to vector<2x64xf32>
    %566 = vector.extract_strided_slice %544 {offsets = [0, 64], sizes = [2, 32], strides = [1, 1]} : vector<2x96xf32> to vector<2x32xf32>
    %567 = vector.extract_strided_slice %548 {offsets = [0, 64], sizes = [2, 32], strides = [1, 1]} : vector<2x96xf32> to vector<2x32xf32>
    %568 = tpu.concatenate %566, %567 in 1 : vector<2x32xf32>, vector<2x32xf32> -> vector<2x64xf32>
    %569 = vector.extract_strided_slice %551 {offsets = [0, 128], sizes = [2, 64], strides = [1, 1]} : vector<2x192xf32> to vector<2x64xf32>
    %570 = arith.mulf %564, %569 : vector<2x64xf32>
    %571 = arith.addf %568, %570 : vector<2x64xf32>
    %572 = math.tanh %571 : vector<2x64xf32>
    %cst_186 = arith.constant 1.000000e+00 : f32
    %573 = vector.broadcast %cst_186 : f32 to vector<2x64xf32>
    %574 = arith.subf %573, %565 : vector<2x64xf32>
    %575 = arith.mulf %574, %572 : vector<2x64xf32>
    %576 = arith.mulf %565, %537 : vector<2x64xf32>
    %577 = arith.addf %575, %576 : vector<2x64xf32>
    %578 = arith.addf %538, %577 : vector<2x64xf32>
    %579 = arith.maximumf %539, %577 : vector<2x64xf32>
    %c3_i32_187 = arith.constant 3 : i32
    %c7_i32_188 = arith.constant 7 : i32
    %580 = arith.subi %c7_i32_188, %c3_i32_187 : i32
    %581 = arith.index_cast %c3_i32_187 : i32 to index
    %c0_189 = arith.constant 0 : index
    %c0_190 = arith.constant 0 : index
    %582 = vector.load %arg17[%581, %c0_189, %c0_190] : memref<8x2x96xbf16, #tpu.memory_space<vmem>>, vector<1x2x96xbf16>
    %583 = vector.shape_cast %582 : vector<1x2x96xbf16> to vector<2x96xbf16>
    %584 = arith.extf %583 : vector<2x96xbf16> to vector<2x96xf32>
    %585 = arith.index_cast %580 : i32 to index
    %c0_191 = arith.constant 0 : index
    %c0_192 = arith.constant 0 : index
    %586 = vector.load %arg18[%585, %c0_191, %c0_192] : memref<8x2x96xbf16, #tpu.memory_space<vmem>>, vector<1x2x96xbf16>
    %587 = vector.shape_cast %586 : vector<1x2x96xbf16> to vector<2x96xbf16>
    %588 = arith.extf %587 : vector<2x96xbf16> to vector<2x96xf32>
    %589 = arith.truncf %577 : vector<2x64xf32> to vector<2x64xbf16>
    %cst_193 = arith.constant dense<0.000000e+00> : vector<2x192xf32>
    %590 = tpu.matmul %589, %454, %cst_193 {dimension_numbers = #tpu.dot_dimension_numbers<[1], [0], [0], [1], [0, 0, 1, 1], [], []>} : vector<2x64xbf16>, vector<64x192xbf16>, vector<2x192xf32> -> vector<2x192xf32>
    %591 = arith.addf %590, %457 : vector<2x192xf32>
    %592 = vector.extract_strided_slice %584 {offsets = [0, 0], sizes = [2, 32], strides = [1, 1]} : vector<2x96xf32> to vector<2x32xf32>
    %593 = vector.extract_strided_slice %588 {offsets = [0, 0], sizes = [2, 32], strides = [1, 1]} : vector<2x96xf32> to vector<2x32xf32>
    %594 = vector.extract_strided_slice %584 {offsets = [0, 32], sizes = [2, 32], strides = [1, 1]} : vector<2x96xf32> to vector<2x32xf32>
    %595 = vector.extract_strided_slice %588 {offsets = [0, 32], sizes = [2, 32], strides = [1, 1]} : vector<2x96xf32> to vector<2x32xf32>
    %596 = tpu.concatenate %592, %593, %594, %595 in 1 : vector<2x32xf32>, vector<2x32xf32>, vector<2x32xf32>, vector<2x32xf32> -> vector<2x128xf32>
    %597 = vector.extract_strided_slice %591 {offsets = [0, 0], sizes = [2, 128], strides = [1, 1]} : vector<2x192xf32> to vector<2x128xf32>
    %598 = arith.addf %596, %597 : vector<2x128xf32>
    %599 = arith.negf %598 : vector<2x128xf32>
    %600 = math.exp %599 : vector<2x128xf32>
    %cst_194 = arith.constant 1.000000e+00 : f32
    %601 = vector.broadcast %cst_194 : f32 to vector<2x128xf32>
    %602 = arith.addf %601, %600 : vector<2x128xf32>
    %603 = arith.divf %601, %602 : vector<2x128xf32>
    %604 = vector.extract_strided_slice %603 {offsets = [0, 0], sizes = [2, 64], strides = [1, 1]} : vector<2x128xf32> to vector<2x64xf32>
    %605 = vector.extract_strided_slice %603 {offsets = [0, 64], sizes = [2, 64], strides = [1, 1]} : vector<2x128xf32> to vector<2x64xf32>
    %606 = vector.extract_strided_slice %584 {offsets = [0, 64], sizes = [2, 32], strides = [1, 1]} : vector<2x96xf32> to vector<2x32xf32>
    %607 = vector.extract_strided_slice %588 {offsets = [0, 64], sizes = [2, 32], strides = [1, 1]} : vector<2x96xf32> to vector<2x32xf32>
    %608 = tpu.concatenate %606, %607 in 1 : vector<2x32xf32>, vector<2x32xf32> -> vector<2x64xf32>
    %609 = vector.extract_strided_slice %591 {offsets = [0, 128], sizes = [2, 64], strides = [1, 1]} : vector<2x192xf32> to vector<2x64xf32>
    %610 = arith.mulf %604, %609 : vector<2x64xf32>
    %611 = arith.addf %608, %610 : vector<2x64xf32>
    %612 = math.tanh %611 : vector<2x64xf32>
    %cst_195 = arith.constant 1.000000e+00 : f32
    %613 = vector.broadcast %cst_195 : f32 to vector<2x64xf32>
    %614 = arith.subf %613, %605 : vector<2x64xf32>
    %615 = arith.mulf %614, %612 : vector<2x64xf32>
    %616 = arith.mulf %605, %577 : vector<2x64xf32>
    %617 = arith.addf %615, %616 : vector<2x64xf32>
    %618 = arith.addf %578, %617 : vector<2x64xf32>
    %619 = arith.maximumf %579, %617 : vector<2x64xf32>
    %c4_i32_196 = arith.constant 4 : i32
    %c7_i32_197 = arith.constant 7 : i32
    %620 = arith.subi %c7_i32_197, %c4_i32_196 : i32
    %621 = arith.index_cast %c4_i32_196 : i32 to index
    %c0_198 = arith.constant 0 : index
    %c0_199 = arith.constant 0 : index
    %622 = vector.load %arg17[%621, %c0_198, %c0_199] : memref<8x2x96xbf16, #tpu.memory_space<vmem>>, vector<1x2x96xbf16>
    %623 = vector.shape_cast %622 : vector<1x2x96xbf16> to vector<2x96xbf16>
    %624 = arith.extf %623 : vector<2x96xbf16> to vector<2x96xf32>
    %625 = arith.index_cast %620 : i32 to index
    %c0_200 = arith.constant 0 : index
    %c0_201 = arith.constant 0 : index
    %626 = vector.load %arg18[%625, %c0_200, %c0_201] : memref<8x2x96xbf16, #tpu.memory_space<vmem>>, vector<1x2x96xbf16>
    %627 = vector.shape_cast %626 : vector<1x2x96xbf16> to vector<2x96xbf16>
    %628 = arith.extf %627 : vector<2x96xbf16> to vector<2x96xf32>
    %629 = arith.truncf %617 : vector<2x64xf32> to vector<2x64xbf16>
    %cst_202 = arith.constant dense<0.000000e+00> : vector<2x192xf32>
    %630 = tpu.matmul %629, %454, %cst_202 {dimension_numbers = #tpu.dot_dimension_numbers<[1], [0], [0], [1], [0, 0, 1, 1], [], []>} : vector<2x64xbf16>, vector<64x192xbf16>, vector<2x192xf32> -> vector<2x192xf32>
    %631 = arith.addf %630, %457 : vector<2x192xf32>
    %632 = vector.extract_strided_slice %624 {offsets = [0, 0], sizes = [2, 32], strides = [1, 1]} : vector<2x96xf32> to vector<2x32xf32>
    %633 = vector.extract_strided_slice %628 {offsets = [0, 0], sizes = [2, 32], strides = [1, 1]} : vector<2x96xf32> to vector<2x32xf32>
    %634 = vector.extract_strided_slice %624 {offsets = [0, 32], sizes = [2, 32], strides = [1, 1]} : vector<2x96xf32> to vector<2x32xf32>
    %635 = vector.extract_strided_slice %628 {offsets = [0, 32], sizes = [2, 32], strides = [1, 1]} : vector<2x96xf32> to vector<2x32xf32>
    %636 = tpu.concatenate %632, %633, %634, %635 in 1 : vector<2x32xf32>, vector<2x32xf32>, vector<2x32xf32>, vector<2x32xf32> -> vector<2x128xf32>
    %637 = vector.extract_strided_slice %631 {offsets = [0, 0], sizes = [2, 128], strides = [1, 1]} : vector<2x192xf32> to vector<2x128xf32>
    %638 = arith.addf %636, %637 : vector<2x128xf32>
    %639 = arith.negf %638 : vector<2x128xf32>
    %640 = math.exp %639 : vector<2x128xf32>
    %cst_203 = arith.constant 1.000000e+00 : f32
    %641 = vector.broadcast %cst_203 : f32 to vector<2x128xf32>
    %642 = arith.addf %641, %640 : vector<2x128xf32>
    %643 = arith.divf %641, %642 : vector<2x128xf32>
    %644 = vector.extract_strided_slice %643 {offsets = [0, 0], sizes = [2, 64], strides = [1, 1]} : vector<2x128xf32> to vector<2x64xf32>
    %645 = vector.extract_strided_slice %643 {offsets = [0, 64], sizes = [2, 64], strides = [1, 1]} : vector<2x128xf32> to vector<2x64xf32>
    %646 = vector.extract_strided_slice %624 {offsets = [0, 64], sizes = [2, 32], strides = [1, 1]} : vector<2x96xf32> to vector<2x32xf32>
    %647 = vector.extract_strided_slice %628 {offsets = [0, 64], sizes = [2, 32], strides = [1, 1]} : vector<2x96xf32> to vector<2x32xf32>
    %648 = tpu.concatenate %646, %647 in 1 : vector<2x32xf32>, vector<2x32xf32> -> vector<2x64xf32>
    %649 = vector.extract_strided_slice %631 {offsets = [0, 128], sizes = [2, 64], strides = [1, 1]} : vector<2x192xf32> to vector<2x64xf32>
    %650 = arith.mulf %644, %649 : vector<2x64xf32>
    %651 = arith.addf %648, %650 : vector<2x64xf32>
    %652 = math.tanh %651 : vector<2x64xf32>
    %cst_204 = arith.constant 1.000000e+00 : f32
    %653 = vector.broadcast %cst_204 : f32 to vector<2x64xf32>
    %654 = arith.subf %653, %645 : vector<2x64xf32>
    %655 = arith.mulf %654, %652 : vector<2x64xf32>
    %656 = arith.mulf %645, %617 : vector<2x64xf32>
    %657 = arith.addf %655, %656 : vector<2x64xf32>
    %658 = arith.addf %618, %657 : vector<2x64xf32>
    %659 = arith.maximumf %619, %657 : vector<2x64xf32>
    %c5_i32_205 = arith.constant 5 : i32
    %c7_i32_206 = arith.constant 7 : i32
    %660 = arith.subi %c7_i32_206, %c5_i32_205 : i32
    %661 = arith.index_cast %c5_i32_205 : i32 to index
    %c0_207 = arith.constant 0 : index
    %c0_208 = arith.constant 0 : index
    %662 = vector.load %arg17[%661, %c0_207, %c0_208] : memref<8x2x96xbf16, #tpu.memory_space<vmem>>, vector<1x2x96xbf16>
    %663 = vector.shape_cast %662 : vector<1x2x96xbf16> to vector<2x96xbf16>
    %664 = arith.extf %663 : vector<2x96xbf16> to vector<2x96xf32>
    %665 = arith.index_cast %660 : i32 to index
    %c0_209 = arith.constant 0 : index
    %c0_210 = arith.constant 0 : index
    %666 = vector.load %arg18[%665, %c0_209, %c0_210] : memref<8x2x96xbf16, #tpu.memory_space<vmem>>, vector<1x2x96xbf16>
    %667 = vector.shape_cast %666 : vector<1x2x96xbf16> to vector<2x96xbf16>
    %668 = arith.extf %667 : vector<2x96xbf16> to vector<2x96xf32>
    %669 = arith.truncf %657 : vector<2x64xf32> to vector<2x64xbf16>
    %cst_211 = arith.constant dense<0.000000e+00> : vector<2x192xf32>
    %670 = tpu.matmul %669, %454, %cst_211 {dimension_numbers = #tpu.dot_dimension_numbers<[1], [0], [0], [1], [0, 0, 1, 1], [], []>} : vector<2x64xbf16>, vector<64x192xbf16>, vector<2x192xf32> -> vector<2x192xf32>
    %671 = arith.addf %670, %457 : vector<2x192xf32>
    %672 = vector.extract_strided_slice %664 {offsets = [0, 0], sizes = [2, 32], strides = [1, 1]} : vector<2x96xf32> to vector<2x32xf32>
    %673 = vector.extract_strided_slice %668 {offsets = [0, 0], sizes = [2, 32], strides = [1, 1]} : vector<2x96xf32> to vector<2x32xf32>
    %674 = vector.extract_strided_slice %664 {offsets = [0, 32], sizes = [2, 32], strides = [1, 1]} : vector<2x96xf32> to vector<2x32xf32>
    %675 = vector.extract_strided_slice %668 {offsets = [0, 32], sizes = [2, 32], strides = [1, 1]} : vector<2x96xf32> to vector<2x32xf32>
    %676 = tpu.concatenate %672, %673, %674, %675 in 1 : vector<2x32xf32>, vector<2x32xf32>, vector<2x32xf32>, vector<2x32xf32> -> vector<2x128xf32>
    %677 = vector.extract_strided_slice %671 {offsets = [0, 0], sizes = [2, 128], strides = [1, 1]} : vector<2x192xf32> to vector<2x128xf32>
    %678 = arith.addf %676, %677 : vector<2x128xf32>
    %679 = arith.negf %678 : vector<2x128xf32>
    %680 = math.exp %679 : vector<2x128xf32>
    %cst_212 = arith.constant 1.000000e+00 : f32
    %681 = vector.broadcast %cst_212 : f32 to vector<2x128xf32>
    %682 = arith.addf %681, %680 : vector<2x128xf32>
    %683 = arith.divf %681, %682 : vector<2x128xf32>
    %684 = vector.extract_strided_slice %683 {offsets = [0, 0], sizes = [2, 64], strides = [1, 1]} : vector<2x128xf32> to vector<2x64xf32>
    %685 = vector.extract_strided_slice %683 {offsets = [0, 64], sizes = [2, 64], strides = [1, 1]} : vector<2x128xf32> to vector<2x64xf32>
    %686 = vector.extract_strided_slice %664 {offsets = [0, 64], sizes = [2, 32], strides = [1, 1]} : vector<2x96xf32> to vector<2x32xf32>
    %687 = vector.extract_strided_slice %668 {offsets = [0, 64], sizes = [2, 32], strides = [1, 1]} : vector<2x96xf32> to vector<2x32xf32>
    %688 = tpu.concatenate %686, %687 in 1 : vector<2x32xf32>, vector<2x32xf32> -> vector<2x64xf32>
    %689 = vector.extract_strided_slice %671 {offsets = [0, 128], sizes = [2, 64], strides = [1, 1]} : vector<2x192xf32> to vector<2x64xf32>
    %690 = arith.mulf %684, %689 : vector<2x64xf32>
    %691 = arith.addf %688, %690 : vector<2x64xf32>
    %692 = math.tanh %691 : vector<2x64xf32>
    %cst_213 = arith.constant 1.000000e+00 : f32
    %693 = vector.broadcast %cst_213 : f32 to vector<2x64xf32>
    %694 = arith.subf %693, %685 : vector<2x64xf32>
    %695 = arith.mulf %694, %692 : vector<2x64xf32>
    %696 = arith.mulf %685, %657 : vector<2x64xf32>
    %697 = arith.addf %695, %696 : vector<2x64xf32>
    %698 = arith.addf %658, %697 : vector<2x64xf32>
    %699 = arith.maximumf %659, %697 : vector<2x64xf32>
    %c6_i32_214 = arith.constant 6 : i32
    %c7_i32_215 = arith.constant 7 : i32
    %700 = arith.subi %c7_i32_215, %c6_i32_214 : i32
    %701 = arith.index_cast %c6_i32_214 : i32 to index
    %c0_216 = arith.constant 0 : index
    %c0_217 = arith.constant 0 : index
    %702 = vector.load %arg17[%701, %c0_216, %c0_217] : memref<8x2x96xbf16, #tpu.memory_space<vmem>>, vector<1x2x96xbf16>
    %703 = vector.shape_cast %702 : vector<1x2x96xbf16> to vector<2x96xbf16>
    %704 = arith.extf %703 : vector<2x96xbf16> to vector<2x96xf32>
    %705 = arith.index_cast %700 : i32 to index
    %c0_218 = arith.constant 0 : index
    %c0_219 = arith.constant 0 : index
    %706 = vector.load %arg18[%705, %c0_218, %c0_219] : memref<8x2x96xbf16, #tpu.memory_space<vmem>>, vector<1x2x96xbf16>
    %707 = vector.shape_cast %706 : vector<1x2x96xbf16> to vector<2x96xbf16>
    %708 = arith.extf %707 : vector<2x96xbf16> to vector<2x96xf32>
    %709 = arith.truncf %697 : vector<2x64xf32> to vector<2x64xbf16>
    %cst_220 = arith.constant dense<0.000000e+00> : vector<2x192xf32>
    %710 = tpu.matmul %709, %454, %cst_220 {dimension_numbers = #tpu.dot_dimension_numbers<[1], [0], [0], [1], [0, 0, 1, 1], [], []>} : vector<2x64xbf16>, vector<64x192xbf16>, vector<2x192xf32> -> vector<2x192xf32>
    %711 = arith.addf %710, %457 : vector<2x192xf32>
    %712 = vector.extract_strided_slice %704 {offsets = [0, 0], sizes = [2, 32], strides = [1, 1]} : vector<2x96xf32> to vector<2x32xf32>
    %713 = vector.extract_strided_slice %708 {offsets = [0, 0], sizes = [2, 32], strides = [1, 1]} : vector<2x96xf32> to vector<2x32xf32>
    %714 = vector.extract_strided_slice %704 {offsets = [0, 32], sizes = [2, 32], strides = [1, 1]} : vector<2x96xf32> to vector<2x32xf32>
    %715 = vector.extract_strided_slice %708 {offsets = [0, 32], sizes = [2, 32], strides = [1, 1]} : vector<2x96xf32> to vector<2x32xf32>
    %716 = tpu.concatenate %712, %713, %714, %715 in 1 : vector<2x32xf32>, vector<2x32xf32>, vector<2x32xf32>, vector<2x32xf32> -> vector<2x128xf32>
    %717 = vector.extract_strided_slice %711 {offsets = [0, 0], sizes = [2, 128], strides = [1, 1]} : vector<2x192xf32> to vector<2x128xf32>
    %718 = arith.addf %716, %717 : vector<2x128xf32>
    %719 = arith.negf %718 : vector<2x128xf32>
    %720 = math.exp %719 : vector<2x128xf32>
    %cst_221 = arith.constant 1.000000e+00 : f32
    %721 = vector.broadcast %cst_221 : f32 to vector<2x128xf32>
    %722 = arith.addf %721, %720 : vector<2x128xf32>
    %723 = arith.divf %721, %722 : vector<2x128xf32>
    %724 = vector.extract_strided_slice %723 {offsets = [0, 0], sizes = [2, 64], strides = [1, 1]} : vector<2x128xf32> to vector<2x64xf32>
    %725 = vector.extract_strided_slice %723 {offsets = [0, 64], sizes = [2, 64], strides = [1, 1]} : vector<2x128xf32> to vector<2x64xf32>
    %726 = vector.extract_strided_slice %704 {offsets = [0, 64], sizes = [2, 32], strides = [1, 1]} : vector<2x96xf32> to vector<2x32xf32>
    %727 = vector.extract_strided_slice %708 {offsets = [0, 64], sizes = [2, 32], strides = [1, 1]} : vector<2x96xf32> to vector<2x32xf32>
    %728 = tpu.concatenate %726, %727 in 1 : vector<2x32xf32>, vector<2x32xf32> -> vector<2x64xf32>
    %729 = vector.extract_strided_slice %711 {offsets = [0, 128], sizes = [2, 64], strides = [1, 1]} : vector<2x192xf32> to vector<2x64xf32>
    %730 = arith.mulf %724, %729 : vector<2x64xf32>
    %731 = arith.addf %728, %730 : vector<2x64xf32>
    %732 = math.tanh %731 : vector<2x64xf32>
    %cst_222 = arith.constant 1.000000e+00 : f32
    %733 = vector.broadcast %cst_222 : f32 to vector<2x64xf32>
    %734 = arith.subf %733, %725 : vector<2x64xf32>
    %735 = arith.mulf %734, %732 : vector<2x64xf32>
    %736 = arith.mulf %725, %697 : vector<2x64xf32>
    %737 = arith.addf %735, %736 : vector<2x64xf32>
    %738 = arith.addf %698, %737 : vector<2x64xf32>
    %739 = arith.maximumf %699, %737 : vector<2x64xf32>
    %c7_i32_223 = arith.constant 7 : i32
    %c7_i32_224 = arith.constant 7 : i32
    %740 = arith.subi %c7_i32_224, %c7_i32_223 : i32
    %741 = arith.index_cast %c7_i32_223 : i32 to index
    %c0_225 = arith.constant 0 : index
    %c0_226 = arith.constant 0 : index
    %742 = vector.load %arg17[%741, %c0_225, %c0_226] : memref<8x2x96xbf16, #tpu.memory_space<vmem>>, vector<1x2x96xbf16>
    %743 = vector.shape_cast %742 : vector<1x2x96xbf16> to vector<2x96xbf16>
    %744 = arith.extf %743 : vector<2x96xbf16> to vector<2x96xf32>
    %745 = arith.index_cast %740 : i32 to index
    %c0_227 = arith.constant 0 : index
    %c0_228 = arith.constant 0 : index
    %746 = vector.load %arg18[%745, %c0_227, %c0_228] : memref<8x2x96xbf16, #tpu.memory_space<vmem>>, vector<1x2x96xbf16>
    %747 = vector.shape_cast %746 : vector<1x2x96xbf16> to vector<2x96xbf16>
    %748 = arith.extf %747 : vector<2x96xbf16> to vector<2x96xf32>
    %749 = arith.truncf %737 : vector<2x64xf32> to vector<2x64xbf16>
    %cst_229 = arith.constant dense<0.000000e+00> : vector<2x192xf32>
    %750 = tpu.matmul %749, %454, %cst_229 {dimension_numbers = #tpu.dot_dimension_numbers<[1], [0], [0], [1], [0, 0, 1, 1], [], []>} : vector<2x64xbf16>, vector<64x192xbf16>, vector<2x192xf32> -> vector<2x192xf32>
    %751 = arith.addf %750, %457 : vector<2x192xf32>
    %752 = vector.extract_strided_slice %744 {offsets = [0, 0], sizes = [2, 32], strides = [1, 1]} : vector<2x96xf32> to vector<2x32xf32>
    %753 = vector.extract_strided_slice %748 {offsets = [0, 0], sizes = [2, 32], strides = [1, 1]} : vector<2x96xf32> to vector<2x32xf32>
    %754 = vector.extract_strided_slice %744 {offsets = [0, 32], sizes = [2, 32], strides = [1, 1]} : vector<2x96xf32> to vector<2x32xf32>
    %755 = vector.extract_strided_slice %748 {offsets = [0, 32], sizes = [2, 32], strides = [1, 1]} : vector<2x96xf32> to vector<2x32xf32>
    %756 = tpu.concatenate %752, %753, %754, %755 in 1 : vector<2x32xf32>, vector<2x32xf32>, vector<2x32xf32>, vector<2x32xf32> -> vector<2x128xf32>
    %757 = vector.extract_strided_slice %751 {offsets = [0, 0], sizes = [2, 128], strides = [1, 1]} : vector<2x192xf32> to vector<2x128xf32>
    %758 = arith.addf %756, %757 : vector<2x128xf32>
    %759 = arith.negf %758 : vector<2x128xf32>
    %760 = math.exp %759 : vector<2x128xf32>
    %cst_230 = arith.constant 1.000000e+00 : f32
    %761 = vector.broadcast %cst_230 : f32 to vector<2x128xf32>
    %762 = arith.addf %761, %760 : vector<2x128xf32>
    %763 = arith.divf %761, %762 : vector<2x128xf32>
    %764 = vector.extract_strided_slice %763 {offsets = [0, 0], sizes = [2, 64], strides = [1, 1]} : vector<2x128xf32> to vector<2x64xf32>
    %765 = vector.extract_strided_slice %763 {offsets = [0, 64], sizes = [2, 64], strides = [1, 1]} : vector<2x128xf32> to vector<2x64xf32>
    %766 = vector.extract_strided_slice %744 {offsets = [0, 64], sizes = [2, 32], strides = [1, 1]} : vector<2x96xf32> to vector<2x32xf32>
    %767 = vector.extract_strided_slice %748 {offsets = [0, 64], sizes = [2, 32], strides = [1, 1]} : vector<2x96xf32> to vector<2x32xf32>
    %768 = tpu.concatenate %766, %767 in 1 : vector<2x32xf32>, vector<2x32xf32> -> vector<2x64xf32>
    %769 = vector.extract_strided_slice %751 {offsets = [0, 128], sizes = [2, 64], strides = [1, 1]} : vector<2x192xf32> to vector<2x64xf32>
    %770 = arith.mulf %764, %769 : vector<2x64xf32>
    %771 = arith.addf %768, %770 : vector<2x64xf32>
    %772 = math.tanh %771 : vector<2x64xf32>
    %cst_231 = arith.constant 1.000000e+00 : f32
    %773 = vector.broadcast %cst_231 : f32 to vector<2x64xf32>
    %774 = arith.subf %773, %765 : vector<2x64xf32>
    %775 = arith.mulf %774, %772 : vector<2x64xf32>
    %776 = arith.mulf %765, %737 : vector<2x64xf32>
    %777 = arith.addf %775, %776 : vector<2x64xf32>
    %778 = arith.addf %738, %777 : vector<2x64xf32>
    %779 = arith.maximumf %739, %777 : vector<2x64xf32>
    %c8_i32_232 = arith.constant 8 : i32
    %cst_233 = arith.constant 1.250000e-01 : f32
    %780 = vector.broadcast %cst_233 : f32 to vector<2x64xf32>
    %781 = arith.mulf %778, %780 : vector<2x64xf32>
    %782 = tpu.concatenate %777, %779, %781 in 1 : vector<2x64xf32>, vector<2x64xf32>, vector<2x64xf32> -> vector<2x192xf32>
    %c0_234 = arith.constant 0 : index
    %c0_235 = arith.constant 0 : index
    %783 = vector.load %arg16[%c0_234, %c0_235] : memref<2x192xf32, #tpu.memory_space<vmem>>, vector<2x192xf32>
    tpu.vector_store %arg16[%c0_234, %c0_235], %782 {strides = array<i32>} : memref<2x192xf32, #tpu.memory_space<vmem>>, vector<2x192xf32>,
    return
  }
  func.func @transform_0(%arg0: i32) -> (i32, i32, i32) {
    %c0_i32 = arith.constant 0 : i32
    %c0_i32_0 = arith.constant 0 : i32
    %c0_i32_1 = arith.constant 0 : i32
    return %c0_i32, %arg0, %c0_i32_0 : i32, i32, i32
  }
  func.func @transform_1(%arg0: i32) -> (i32, i32) {
    %c0_i32 = arith.constant 0 : i32
    %c0_i32_0 = arith.constant 0 : i32
    %c0_i32_1 = arith.constant 0 : i32
    return %c0_i32, %c0_i32_0 : i32, i32
  }
  func.func @transform_2(%arg0: i32) -> (i32, i32) {
    %c0_i32 = arith.constant 0 : i32
    %c0_i32_0 = arith.constant 0 : i32
    %c0_i32_1 = arith.constant 0 : i32
    return %c0_i32, %c0_i32_0 : i32, i32
  }
  func.func @transform_3(%arg0: i32) -> (i32, i32) {
    %c0_i32 = arith.constant 0 : i32
    %c0_i32_0 = arith.constant 0 : i32
    %c0_i32_1 = arith.constant 0 : i32
    return %c0_i32, %c0_i32_0 : i32, i32
  }
  func.func @transform_4(%arg0: i32) -> (i32, i32) {
    %c0_i32 = arith.constant 0 : i32
    %c0_i32_0 = arith.constant 0 : i32
    %c0_i32_1 = arith.constant 0 : i32
    return %c0_i32, %c0_i32_0 : i32, i32
  }
  func.func @transform_5(%arg0: i32) -> (i32, i32) {
    %c0_i32 = arith.constant 0 : i32
    %c0_i32_0 = arith.constant 0 : i32
    %c0_i32_1 = arith.constant 0 : i32
    return %c0_i32, %c0_i32_0 : i32, i32
  }
  func.func @transform_6(%arg0: i32) -> (i32, i32) {
    %c0_i32 = arith.constant 0 : i32
    %c0_i32_0 = arith.constant 0 : i32
    %c0_i32_1 = arith.constant 0 : i32
    return %c0_i32, %c0_i32_0 : i32, i32
  }
  func.func @transform_7(%arg0: i32) -> (i32, i32) {
    %c0_i32 = arith.constant 0 : i32
    %c0_i32_0 = arith.constant 0 : i32
    %c0_i32_1 = arith.constant 0 : i32
    return %c0_i32, %c0_i32_0 : i32, i32
  }
  func.func @transform_8(%arg0: i32) -> (i32, i32) {
    %c0_i32 = arith.constant 0 : i32
    %c0_i32_0 = arith.constant 0 : i32
    %c0_i32_1 = arith.constant 0 : i32
    return %c0_i32, %c0_i32_0 : i32, i32
  }
  func.func @transform_9(%arg0: i32) -> (i32, i32) {
    %c0_i32 = arith.constant 0 : i32
    %c0_i32_0 = arith.constant 0 : i32
    %c0_i32_1 = arith.constant 0 : i32
    return %c0_i32, %c0_i32_0 : i32, i32
  }
  func.func @transform_10(%arg0: i32) -> (i32, i32) {
    %c0_i32 = arith.constant 0 : i32
    %c0_i32_0 = arith.constant 0 : i32
    %c0_i32_1 = arith.constant 0 : i32
    return %c0_i32, %c0_i32_0 : i32, i32
  }
  func.func @transform_11(%arg0: i32) -> (i32, i32) {
    %c0_i32 = arith.constant 0 : i32
    %c0_i32_0 = arith.constant 0 : i32
    %c0_i32_1 = arith.constant 0 : i32
    return %c0_i32, %c0_i32_0 : i32, i32
  }
  func.func @transform_12(%arg0: i32) -> (i32, i32) {
    %c0_i32 = arith.constant 0 : i32
    %c0_i32_0 = arith.constant 0 : i32
    %c0_i32_1 = arith.constant 0 : i32
    return %c0_i32, %c0_i32_0 : i32, i32
  }
  func.func @transform_13(%arg0: i32) -> (i32, i32) {
    %c0_i32 = arith.constant 0 : i32
    %c0_i32_0 = arith.constant 0 : i32
    %c0_i32_1 = arith.constant 0 : i32
    return %c0_i32, %c0_i32_0 : i32, i32
  }
  func.func @transform_14(%arg0: i32) -> (i32, i32) {
    %c0_i32 = arith.constant 0 : i32
    %c0_i32_0 = arith.constant 0 : i32
    %c0_i32_1 = arith.constant 0 : i32
    return %c0_i32, %c0_i32_0 : i32, i32
  }
  func.func @transform_15(%arg0: i32) -> (i32, i32) {
    %c0_i32 = arith.constant 0 : i32
    %c0_i32_0 = arith.constant 0 : i32
    return %arg0, %c0_i32 : i32, i32
  }
}

</mosaic_0001>

<llo_original>
// kernel: bi_gru_forward.3
$region0: #{bi_gru_forward.3}
  #allocation0 [shape = 'u32[]', space=smem, size = 0x4, offset = 0x4, fixed_abs, tag = 'smem constant byte address 0x4 - core index']
  #allocation1 [shape = 'u32[144,128]{1,0:T(1,128)}', space=vmem, size = 0x12000, scoped, tag = 'internal scratch']
  %s0 = inlined_call_operand.vmem [shape: f32[2,192], index: 0, kind: input, shape index: {}]
  %s1 = inlined_call_operand.vmem [shape: bf16[192,144], index: 1, kind: input, shape index: {}]
  %s2 = inlined_call_operand.vmem [shape: f32[1,144], index: 2, kind: input, shape index: {}]
  %s3 = inlined_call_operand.vmem [shape: bf16[144,7], index: 3, kind: input, shape index: {}]
  %s4 = inlined_call_operand.vmem [shape: f32[1,7], index: 4, kind: input, shape index: {}]
  %s5 = inlined_call_operand.hbm [shape: f32[2,7], index: 5, kind: output, shape index: {}]
  %s6 = sld [smem:[#allocation0]]
  $region30: #{bi_gru_forward.3} parent=0
    _
  %s8 = ssub.s32 1, %s6
  %s9 = scalar_select 0, %s8, %s6
  $region1: #{bi_gru_forward.3} parent=0
    #allocation2 [shape = 'u8[1024]{0}', space=vmem, size = 0x400, scoped, tag = 'output window, operand 0, single buffered']
    #allocation3 [shape = 's32[1]{0}', space=sflag, size = 0x4, scoped, tag = 'scoped memory for bi_gru_forward.3']
    %10 = vsyncpa [#allocation3], 0
    // Predicated region
    $region2: #{bi_gru_forward.3} parent=1 // pred_check
      _
    $region3: #{bi_gru_forward.3} parent=1 // pred_check_branch
      %12 = sbr.rel (0) target = $region5
    $region4: #{bi_gru_forward.3} parent=1 // pred_region
      _
    $region5: #{bi_gru_forward.3} parent=1 // pred_fallthru
      _
    // Predicated region
    $region6: #{bi_gru_forward.3} parent=1 // pred_check
      _
    $region7: #{bi_gru_forward.3} parent=1 // pred_check_branch
      %14 = sbr.rel (0) target = $region9
    $region8: #{bi_gru_forward.3} parent=1 // pred_region
      _
    $region9: #{bi_gru_forward.3} parent=1 // pred_fallthru
      _
    // Predicated region
    $region10: #{bi_gru_forward.3} parent=1 // pred_check
      _
    $region11: #{bi_gru_forward.3} parent=1 // pred_check_branch
      %16 = sbr.rel (0) target = $region13
    $region12: #{bi_gru_forward.3} parent=1 // pred_region
      _
    $region13: #{bi_gru_forward.3} parent=1 // pred_fallthru
      _
    // Predicated region
    $region14: #{bi_gru_forward.3} parent=1 // pred_check
      _
    $region15: #{bi_gru_forward.3} parent=1 // pred_check_branch
      %18 = sbr.rel (0) target = $region17
    $region16: #{bi_gru_forward.3} parent=1 // pred_region
      _
    $region17: #{bi_gru_forward.3} parent=1 // pred_fallthru
      _
    // Predicated region
    $region18: #{bi_gru_forward.3} parent=1 // pred_check
      _
    $region19: #{bi_gru_forward.3} parent=1 // pred_check_branch
      %20 = sbr.rel (0) target = $region21
    $region20: #{bi_gru_forward.3} parent=1 // pred_region
      _
    $region21: #{bi_gru_forward.3} parent=1 // pred_fallthru
      _
    %v22 = vld [vmem:[%s0] sm:$0xf]
    %v25 = vunpack.c.l.s4 1983009808
    %v26 = vunpack.c.0.s8 %v25
    %v27 = vlaneseq
    %v28 = vshrl.u32 %v27, 7
    %v29 = vsub.s32 %v26, %v28
    %v30 = vrot.slane %v22, %v29
    %v31 = vcombine.high %v30, %v30
    %v34 = vpack.c.bf16 %v30, %v30
    %v35 = vpack.c.bf16 %v31, %v31
    %v36 = vld [vmem:[%s1] sm:$0xff]
    %v37 = vld [vmem:[%s1 + $0x8] sm:$0xff]
    %v38 = vld [vmem:[%s1 + $0x10] sm:$0xff]
    %v39 = vld [vmem:[%s1 + $0x18] sm:$0xff]
    %v40 = vld [vmem:[%s1 + $0x20] sm:$0xff]
    %v41 = vld [vmem:[%s1 + $0x28] sm:$0xff]
    %v42 = vld [vmem:[%s1 + $0x30] sm:$0xff]
    %v43 = vld [vmem:[%s1 + $0x38] sm:$0xff]
    %v44 = vld [vmem:[%s1 + $0x40] sm:$0xff]
    %v45 = vld [vmem:[%s1 + $0x48] sm:$0xff]
    %v46 = vld [vmem:[%s1 + $0x50] sm:$0xff]
    %v47 = vld [vmem:[%s1 + $0x58] sm:$0xff]
    %v48 = vld [vmem:[%s1 + $0x60] sm:$0xff]
    %v49 = vld [vmem:[%s1 + $0x68] sm:$0xff]
    %v50 = vld [vmem:[%s1 + $0x70] sm:$0xff]
    %v51 = vld [vmem:[%s1 + $0x78] sm:$0xff]
    %v52 = vld [vmem:[%s1 + $0x80] sm:$0xff]
    %v53 = vld [vmem:[%s1 + $0x88] sm:$0xff]
    %v54 = vld [vmem:[%s1 + $0x90] sm:$0xff]
    %v55 = vld [vmem:[%s1 + $0x98] sm:$0xff]
    %v56 = vld [vmem:[%s1 + $0xa0] sm:$0xff]
    %v57 = vld [vmem:[%s1 + $0xa8] sm:$0xff]
    %v58 = vld [vmem:[%s1 + $0xb0] sm:$0xff]
    %v59 = vld [vmem:[%s1 + $0xb8] sm:$0xff]
    %v60 = vld [vmem:[%s2] sm:$0x3]
    %v62 = vlaneseq
    %v63 = vshrl.u32 %v62, 7
    %v64 = vsub.s32 0, %v63
    %v65 = vrot.slane %v60, %v64
    %v66 = vlaneseq
    %v67 = vshrl.u32 %v66, 7
    %v68 = vsub.s32 1, %v67
    %v69 = vrot.slane %v60, %v68
    %v96 = vunpack.c.l.b16 %v36
    %v97 = vunpack.c.h.b16 %v36
    %v98 = vunpack.c.l.b16 %v37
    %v99 = vunpack.c.h.b16 %v37
    %v100 = vunpack.c.l.b16 %v38
    %v101 = vunpack.c.h.b16 %v38
    %v102 = vunpack.c.l.b16 %v39
    %v103 = vunpack.c.h.b16 %v39
    %v104 = vunpack.c.l.b16 %v40
    %v105 = vunpack.c.h.b16 %v40
    %v106 = vunpack.c.l.b16 %v41
    %v107 = vunpack.c.h.b16 %v41
    %v108 = vunpack.c.l.b16 %v42
    %v109 = vunpack.c.h.b16 %v42
    %v110 = vunpack.c.l.b16 %v43
    %v111 = vunpack.c.h.b16 %v43
    %v112 = vunpack.c.l.b16 %v44
    %v113 = vunpack.c.h.b16 %v44
    %v114 = vunpack.c.l.b16 %v45
    %v115 = vunpack.c.h.b16 %v45
    %v116 = vunpack.c.l.b16 %v46
    %v117 = vunpack.c.h.b16 %v46
    %v118 = vunpack.c.l.b16 %v47
    %v119 = vunpack.c.h.b16 %v47
    %v120 = vunpack.c.l.b16 %v48
    %v121 = vunpack.c.h.b16 %v48
    %v122 = vunpack.c.l.b16 %v49
    %v123 = vunpack.c.h.b16 %v49
    %v124 = vunpack.c.l.b16 %v50
    %v125 = vunpack.c.h.b16 %v50
    %v126 = vunpack.c.l.b16 %v51
    %v127 = vunpack.c.h.b16 %v51
    %v128 = vunpack.c.l.b16 %v52
    %v129 = vunpack.c.h.b16 %v52
    %v130 = vunpack.c.l.b16 %v53
    %v131 = vunpack.c.h.b16 %v53
    %v132 = vunpack.c.l.b16 %v54
    %v133 = vunpack.c.h.b16 %v54
    %v134 = vunpack.c.l.b16 %v55
    %v135 = vunpack.c.h.b16 %v55
    %v136 = vunpack.c.l.b16 %v56
    %v137 = vunpack.c.h.b16 %v56
    %v138 = vunpack.c.l.b16 %v57
    %v139 = vunpack.c.h.b16 %v57
    %v140 = vunpack.c.l.b16 %v58
    %v141 = vunpack.c.h.b16 %v58
    %v142 = vunpack.c.l.b16 %v59
    %v143 = vunpack.c.h.b16 %v59
    %v144 = vpack.c.b16 %v98, %v96
    %v145 = vpack.c.b16 %v99, %v97
    %v146 = vpack.c.b16 %v102, %v100
    %v147 = vpack.c.b16 %v103, %v101
    %v148 = vpack.c.b16 %v106, %v104
    %v149 = vpack.c.b16 %v107, %v105
    %v150 = vpack.c.b16 %v110, %v108
    %v151 = vpack.c.b16 %v111, %v109
    %v152 = vpack.c.b16 %v114, %v112
    %v153 = vpack.c.b16 %v115, %v113
    %v154 = vpack.c.b16 %v118, %v116
    %v155 = vpack.c.b16 %v119, %v117
    %v156 = vpack.c.b16 %v122, %v120
    %v157 = vpack.c.b16 %v123, %v121
    %v158 = vpack.c.b16 %v126, %v124
    %v159 = vpack.c.b16 %v127, %v125
    %v160 = vpack.c.b16 %v130, %v128
    %v161 = vpack.c.b16 %v131, %v129
    %v162 = vpack.c.b16 %v134, %v132
    %v163 = vpack.c.b16 %v135, %v133
    %v164 = vpack.c.b16 %v138, %v136
    %v165 = vpack.c.b16 %v139, %v137
    %v166 = vpack.c.b16 %v142, %v140
    %v167 = vpack.c.b16 %v143, %v141
    %vm192 = vcmask 523264
    %v194 = vsel %vm192, %v35, 0
    %196 = vmatprep.subr.bf16.mxu0 %v159
    %197 = vmatpush1.bf16.msra.mxu0 %v158
    %198 = vmatprep.subr.bf16.mxu0 %v157
    %199 = vmatpush1.bf16.msra.mxu0 %v156
    %200 = vmatprep.subr.bf16.mxu0 %v155
    %201 = vmatpush1.bf16.msra.mxu0 %v154
    %202 = vmatprep.subr.bf16.mxu0 %v153
    %203 = vmatpush1.bf16.msra.mxu0 %v152
    %204 = vmatprep.subr.bf16.mxu0 %v151
    %205 = vmatpush1.bf16.msra.mxu0 %v150
    %206 = vmatprep.subr.bf16.mxu0 %v149
    %207 = vmatpush1.bf16.msra.mxu0 %v148
    %208 = vmatprep.subr.bf16.mxu0 %v147
    %209 = vmatpush1.bf16.msra.mxu0 %v146
    %210 = vmatprep.subr.bf16.mxu0 %v145
    %211 = vmatpush1.bf16.msra.mxu0 %v144
    %212 = vmatprep.subr.bf16.mxu0 0
    %213 = vmatpush2.bf16.msra.mxu0 0
    %214 = vmatprep.subr.bf16.mxu0 0
    %215 = vmatpush2.bf16.msra.mxu0 0
    %216 = vmatprep.subr.bf16.mxu0 0
    %217 = vmatpush2.bf16.msra.mxu0 0
    %218 = vmatprep.subr.bf16.mxu0 0
    %219 = vmatpush2.bf16.msra.mxu0 0
    %220 = vmatprep.subr.bf16.mxu0 %v167
    %221 = vmatpush2.bf16.msra.mxu0 %v166
    %222 = vmatprep.subr.bf16.mxu0 %v165
    %223 = vmatpush2.bf16.msra.mxu0 %v164
    %224 = vmatprep.subr.bf16.mxu0 %v163
    %225 = vmatpush2.bf16.msra.mxu0 %v162
    %226 = vmatprep.subr.bf16.mxu0 %v161
    %227 = vmatpush2.bf16.msra.mxu0 %v160
    %228 = vmatprep.mubr.bf16.mxu0 %v194
    %229 = vmatmul.mubr.bf16.gmra.mxu0 %v34
    %v230 = vpop.f32.mrf.mxu0
    %v231 = vadd.f32 %v65, %v230
    %v232 = vpop.f32.mrf.mxu0
    %v233 = vadd.f32 %v69, %v232
    %v234 = vpop.f32.mrf.mxu0
    %v235 = vpop.f32.mrf.mxu0
    %236 = vdwg.mxu0
    %v237 = vmax.f32 %v231, 0.0
    %v238 = vmax.f32 %v233, 0.0
    %v239 = vpack.c.bf16 %v237, %v237
    %v240 = vpack.c.bf16 %v238, %v238
    %v241 = vld [vmem:[%s3] sm:$0xf]
    %v242 = vld [vmem:[%s3 + $0x4] sm:$0xf]
    %v243 = vld [vmem:[%s3 + $0x8] sm:$0xf]
    %v244 = vld [vmem:[%s3 + $0xc] sm:$0xf]
    %v245 = vld [vmem:[%s3 + $0x10] sm:$0xf]
    %v246 = vld [vmem:[%s3 + $0x14] sm:$0xf]
    %v247 = vld [vmem:[%s3 + $0x18] sm:$0xf]
    %v248 = vld [vmem:[%s3 + $0x1c] sm:$0xf]
    %v249 = vld [vmem:[%s3 + $0x20] sm:$0xf]
    %v250 = vld [vmem:[%s3 + $0x24] sm:$0xf]
    %v251 = vld [vmem:[%s3 + $0x28] sm:$0xf]
    %v252 = vld [vmem:[%s3 + $0x2c] sm:$0xf]
    %v253 = vld [vmem:[%s3 + $0x30] sm:$0xf]
    %v254 = vld [vmem:[%s3 + $0x34] sm:$0xf]
    %v255 = vld [vmem:[%s3 + $0x38] sm:$0xf]
    %v256 = vld [vmem:[%s3 + $0x3c] sm:$0xf]
    %v257 = vld [vmem:[%s3 + $0x40] sm:$0xf]
    %v258 = vld [vmem:[%s3 + $0x44] sm:$0xf]
    %v259 = vld [vmem:[%s4] sm:$0x1]
    %v261 = vlaneseq
    %v262 = vshrl.u32 %v261, 7
    %v263 = vsub.s32 0, %v262
    %v264 = vrot.slane %v259, %v263
    %v284 = vunpack.c.l.b16 %v241
    %v285 = vunpack.c.l.b16 %v242
    %v286 = vunpack.c.l.b16 %v243
    %v287 = vunpack.c.l.b16 %v244
    %v288 = vunpack.c.l.b16 %v245
    %v289 = vunpack.c.l.b16 %v246
    %v290 = vunpack.c.l.b16 %v247
    %v291 = vunpack.c.l.b16 %v248
    %v292 = vunpack.c.l.b16 %v249
    %v293 = vunpack.c.l.b16 %v250
    %v294 = vunpack.c.l.b16 %v251
    %v295 = vunpack.c.l.b16 %v252
    %v296 = vunpack.c.l.b16 %v253
    %v297 = vunpack.c.l.b16 %v254
    %v298 = vunpack.c.l.b16 %v255
    %v299 = vunpack.c.l.b16 %v256
    %v300 = vunpack.c.l.b16 %v257
    %v301 = vunpack.c.l.b16 %v258
    %v302 = vpack.c.b16 %v285, %v284
    %v303 = vpack.c.b16 %v287, %v286
    %v304 = vpack.c.b16 %v289, %v288
    %v305 = vpack.c.b16 %v291, %v290
    %v306 = vpack.c.b16 %v293, %v292
    %v307 = vpack.c.b16 %v295, %v294
    %v308 = vpack.c.b16 %v297, %v296
    %v309 = vpack.c.b16 %v299, %v298
    %v310 = vpack.c.b16 %v301, %v300
    %vm320 = vcmask 130048
    %v322 = vsel %vm320, %v240, 0
    %324 = vmatprep.subr.bf16.mxu0 0
    %325 = vmatpush1.bf16.msra.mxu0 %v309
    %326 = vmatprep.subr.bf16.mxu0 0
    %327 = vmatpush1.bf16.msra.mxu0 %v308
    %328 = vmatprep.subr.bf16.mxu0 0
    %329 = vmatpush1.bf16.msra.mxu0 %v307
    %330 = vmatprep.subr.bf16.mxu0 0
    %331 = vmatpush1.bf16.msra.mxu0 %v306
    %332 = vmatprep.subr.bf16.mxu0 0
    %333 = vmatpush1.bf16.msra.mxu0 %v305
    %334 = vmatprep.subr.bf16.mxu0 0
    %335 = vmatpush1.bf16.msra.mxu0 %v304
    %336 = vmatprep.subr.bf16.mxu0 0
    %337 = vmatpush1.bf16.msra.mxu0 %v303
    %338 = vmatprep.subr.bf16.mxu0 0
    %339 = vmatpush1.bf16.msra.mxu0 %v302
    %340 = vmatprep.subr.bf16.mxu0 0
    %341 = vmatpush2.bf16.msra.mxu0 0
    %342 = vmatprep.subr.bf16.mxu0 0
    %343 = vmatpush2.bf16.msra.mxu0 0
    %344 = vmatprep.subr.bf16.mxu0 0
    %345 = vmatpush2.bf16.msra.mxu0 0
    %346 = vmatprep.subr.bf16.mxu0 0
    %347 = vmatpush2.bf16.msra.mxu0 0
    %348 = vmatprep.subr.bf16.mxu0 0
    %349 = vmatpush2.bf16.msra.mxu0 0
    %350 = vmatprep.subr.bf16.mxu0 0
    %351 = vmatpush2.bf16.msra.mxu0 0
    %352 = vmatprep.subr.bf16.mxu0 0
    %353 = vmatpush2.bf16.msra.mxu0 0
    %354 = vmatprep.subr.bf16.mxu0 0
    %355 = vmatpush2.bf16.msra.mxu0 %v310
    %356 = vmatprep.mubr.bf16.mxu0 %v322
    %357 = vmatmul.mubr.bf16.gmra.mxu0 %v239
    %v358 = vpop.f32.mrf.mxu0
    %v359 = vadd.f32 %v264, %v358
    %v360 = vpop.f32.mrf.mxu0
    %v361 = vpop.f32.mrf.mxu0
    %v362 = vpop.f32.mrf.mxu0
    %363 = vdwg.mxu0
    %vm364 = vcmask 50176
    %365 = vst.msk [vmem:[#allocation2] sm:$0x3] %vm364, %v359
    // Predicated region
    $region22: #{bi_gru_forward.3} parent=1 // pred_check
      _
    $region23: #{bi_gru_forward.3} parent=1 // pred_check_branch
      %367 = sbr.rel (0) target = $region25
    $region24: #{bi_gru_forward.3} parent=1 // pred_region
      %s369 = ssub.s32 32, 32
      %370 = vsyncadd [#allocation3], %s369
      %s372 = sshll.u32 [#allocation2], 4
      %s373 = int_to_ptr.vmem [resolvable:$true] %s372
      %375 = dma.vmem_to_hbm [thread:$0]  %s373, 32, %s5, [#allocation3]
    $region25: #{bi_gru_forward.3} parent=1 // pred_fallthru
      _
    // Predicated region
    $region26: #{bi_gru_forward.3} parent=1 // pred_check
      _
    $region27: #{bi_gru_forward.3} parent=1 // pred_check_branch
      %377 = sbr.rel (0) target = $region29
    $region28: #{bi_gru_forward.3} parent=1 // pred_region
      %378 = dma.done [#allocation3], 32
    $region29: #{bi_gru_forward.3} parent=1 // pred_fallthru
      _
    %379 = vsyncpa [#allocation3], 1

// kernel: bi_gru_forward.2
$region0: #{bi_gru_forward.2}
  #allocation0 [shape = 'u32[]', space=smem, size = 0x4, offset = 0x4, fixed_abs, tag = 'smem constant byte address 0x4 - core index']
  #allocation1 [shape = 'u32[144,128]{1,0:T(1,128)}', space=vmem, size = 0x12000, scoped, tag = 'internal scratch']
  #allocation2 [shape = 'bf16[8,2,96]{2,1,0:T(2,128)(2,1)}', space=vmem, size = 0x1000, scoped, tag = 'scratch operand']
  #allocation3 [shape = 'bf16[8,2,96]{2,1,0:T(2,128)(2,1)}', space=vmem, size = 0x1000, scoped, tag = 'scratch operand']
  #allocation4 [shape = 'bf16[8,2,32]{2,1,0:T(2,128)(2,1)}', space=vmem, size = 0x1000, scoped, tag = 'scratch operand']
  #allocation5 [shape = 'bf16[8,2,32]{2,1,0:T(2,128)(2,1)}', space=vmem, size = 0x1000, scoped, tag = 'scratch operand']
  %s0 = inlined_call_operand.vmem [shape: bf16[8,2,64], index: 0, kind: input, shape index: {}]
  %s1 = inlined_call_operand.vmem [shape: bf16[64,96], index: 1, kind: input, shape index: {}]
  %s2 = inlined_call_operand.vmem [shape: f32[1,96], index: 2, kind: input, shape index: {}]
  %s3 = inlined_call_operand.vmem [shape: bf16[64,96], index: 3, kind: input, shape index: {}]
  %s4 = inlined_call_operand.vmem [shape: f32[1,96], index: 4, kind: input, shape index: {}]
  %s5 = inlined_call_operand.vmem [shape: bf16[64,192], index: 5, kind: input, shape index: {}]
  %s6 = inlined_call_operand.vmem [shape: f32[1,192], index: 6, kind: input, shape index: {}]
  %s7 = inlined_call_operand.vmem [shape: bf16[32,96], index: 7, kind: input, shape index: {}]
  %s8 = inlined_call_operand.vmem [shape: bf16[32,96], index: 8, kind: input, shape index: {}]
  %s9 = inlined_call_operand.vmem [shape: f32[1,96], index: 9, kind: input, shape index: {}]
  %s10 = inlined_call_operand.vmem [shape: bf16[32,96], index: 10, kind: input, shape index: {}]
  %s11 = inlined_call_operand.vmem [shape: bf16[32,96], index: 11, kind: input, shape index: {}]
  %s12 = inlined_call_operand.vmem [shape: f32[1,96], index: 12, kind: input, shape index: {}]
  %s13 = inlined_call_operand.vmem [shape: bf16[64,192], index: 13, kind: input, shape index: {}]
  %s14 = inlined_call_operand.vmem [shape: f32[1,192], index: 14, kind: input, shape index: {}]
  %s15 = inlined_call_operand.vmem [shape: f32[2,192], index: 15, kind: output, shape index: {}]
  %s16 = sld [smem:[#allocation0]]
  $region70: #{bi_gru_forward.2} parent=0
    _
  %s18 = ssub.s32 1, %s16
  %s19 = scalar_select 0, %s18, %s16
  // Predicated region
  $region2: #{bi_gru_forward.2} parent=0 // pred_check
    _
  $region3: #{bi_gru_forward.2} parent=0 // pred_check_branch
    %21 = sbr.rel (0) target = $region5
  $region4: #{bi_gru_forward.2} parent=0 // pred_region
    _
  $region5: #{bi_gru_forward.2} parent=0 // pred_fallthru
    _
  // Predicated region
  $region6: #{bi_gru_forward.2} parent=0 // pred_check
    _
  $region7: #{bi_gru_forward.2} parent=0 // pred_check_branch
    %23 = sbr.rel (0) target = $region9
  $region8: #{bi_gru_forward.2} parent=0 // pred_region
    _
  $region9: #{bi_gru_forward.2} parent=0 // pred_fallthru
    _
  // Predicated region
  $region10: #{bi_gru_forward.2} parent=0 // pred_check
    _
  $region11: #{bi_gru_forward.2} parent=0 // pred_check_branch
    %25 = sbr.rel (0) target = $region13
  $region12: #{bi_gru_forward.2} parent=0 // pred_region
    _
  $region13: #{bi_gru_forward.2} parent=0 // pred_fallthru
    _
  // Predicated region
  $region14: #{bi_gru_forward.2} parent=0 // pred_check
    _
  $region15: #{bi_gru_forward.2} parent=0 // pred_check_branch
    %27 = sbr.rel (0) target = $region17
  $region16: #{bi_gru_forward.2} parent=0 // pred_region
    _
  $region17: #{bi_gru_forward.2} parent=0 // pred_fallthru
    _
  // Predicated region
  $region18: #{bi_gru_forward.2} parent=0 // pred_check
    _
  $region19: #{bi_gru_forward.2} parent=0 // pred_check_branch
    %29 = sbr.rel (0) target = $region21
  $region20: #{bi_gru_forward.2} parent=0 // pred_region
    _
  $region21: #{bi_gru_forward.2} parent=0 // pred_fallthru
    _
  // Predicated region
  $region22: #{bi_gru_forward.2} parent=0 // pred_check
    _
  $region23: #{bi_gru_forward.2} parent=0 // pred_check_branch
    %31 = sbr.rel (0) target = $region25
  $region24: #{bi_gru_forward.2} parent=0 // pred_region
    _
  $region25: #{bi_gru_forward.2} parent=0 // pred_fallthru
    _
  // Predicated region
  $region26: #{bi_gru_forward.2} parent=0 // pred_check
    _
  $region27: #{bi_gru_forward.2} parent=0 // pred_check_branch
    %33 = sbr.rel (0) target = $region29
  $region28: #{bi_gru_forward.2} parent=0 // pred_region
    _
  $region29: #{bi_gru_forward.2} parent=0 // pred_fallthru
    _
  // Predicated region
  $region30: #{bi_gru_forward.2} parent=0 // pred_check
    _
  $region31: #{bi_gru_forward.2} parent=0 // pred_check_branch
    %35 = sbr.rel (0) target = $region33
  $region32: #{bi_gru_forward.2} parent=0 // pred_region
    _
  $region33: #{bi_gru_forward.2} parent=0 // pred_fallthru
    _
  // Predicated region
  $region34: #{bi_gru_forward.2} parent=0 // pred_check
    _
  $region35: #{bi_gru_forward.2} parent=0 // pred_check_branch
    %37 = sbr.rel (0) target = $region37
  $region36: #{bi_gru_forward.2} parent=0 // pred_region
    _
  $region37: #{bi_gru_forward.2} parent=0 // pred_fallthru
    _
  // Predicated region
  $region38: #{bi_gru_forward.2} parent=0 // pred_check
    _
  $region39: #{bi_gru_forward.2} parent=0 // pred_check_branch
    %39 = sbr.rel (0) target = $region41
  $region40: #{bi_gru_forward.2} parent=0 // pred_region
    _
  $region41: #{bi_gru_forward.2} parent=0 // pred_fallthru
    _
  // Predicated region
  $region42: #{bi_gru_forward.2} parent=0 // pred_check
    _
  $region43: #{bi_gru_forward.2} parent=0 // pred_check_branch
    %41 = sbr.rel (0) target = $region45
  $region44: #{bi_gru_forward.2} parent=0 // pred_region
    _
  $region45: #{bi_gru_forward.2} parent=0 // pred_fallthru
    _
  // Predicated region
  $region46: #{bi_gru_forward.2} parent=0 // pred_check
    _
  $region47: #{bi_gru_forward.2} parent=0 // pred_check_branch
    %43 = sbr.rel (0) target = $region49
  $region48: #{bi_gru_forward.2} parent=0 // pred_region
    _
  $region49: #{bi_gru_forward.2} parent=0 // pred_fallthru
    _
  // Predicated region
  $region50: #{bi_gru_forward.2} parent=0 // pred_check
    _
  $region51: #{bi_gru_forward.2} parent=0 // pred_check_branch
    %45 = sbr.rel (0) target = $region53
  $region52: #{bi_gru_forward.2} parent=0 // pred_region
    _
  $region53: #{bi_gru_forward.2} parent=0 // pred_fallthru
    _
  // Predicated region
  $region54: #{bi_gru_forward.2} parent=0 // pred_check
    _
  $region55: #{bi_gru_forward.2} parent=0 // pred_check_branch
    %47 = sbr.rel (0) target = $region57
  $region56: #{bi_gru_forward.2} parent=0 // pred_region
    _
  $region57: #{bi_gru_forward.2} parent=0 // pred_fallthru
    _
  // Predicated region
  $region58: #{bi_gru_forward.2} parent=0 // pred_check
    _
  $region59: #{bi_gru_forward.2} parent=0 // pred_check_branch
    %49 = sbr.rel (0) target = $region61
  $region60: #{bi_gru_forward.2} parent=0 // pred_region
    _
  $region61: #{bi_gru_forward.2} parent=0 // pred_fallthru
    _
  %v51 = vld [vmem:[%s0] sm:$0x1]
  %v52 = vld [vmem:[%s0 + $0x1] sm:$0x1]
  %v53 = vld [vmem:[%s0 + $0x2] sm:$0x1]
  %v54 = vld [vmem:[%s0 + $0x3] sm:$0x1]
  %v55 = vld [vmem:[%s0 + $0x4] sm:$0x1]
  %v56 = vld [vmem:[%s0 + $0x5] sm:$0x1]
  %v57 = vld [vmem:[%s0 + $0x6] sm:$0x1]
  %v58 = vld [vmem:[%s0 + $0x7] sm:$0x1]
  %v59 = vld [vmem:[%s1] sm:$0xf]
  %v60 = vld [vmem:[%s1 + $0x4] sm:$0xf]
  %v61 = vld [vmem:[%s1 + $0x8] sm:$0xf]
  %v62 = vld [vmem:[%s1 + $0xc] sm:$0xf]
  %v63 = vld [vmem:[%s1 + $0x10] sm:$0xf]
  %v64 = vld [vmem:[%s1 + $0x14] sm:$0xf]
  %v65 = vld [vmem:[%s1 + $0x18] sm:$0xf]
  %v66 = vld [vmem:[%s1 + $0x1c] sm:$0xf]
  %v67 = vld [vmem:[%s2] sm:$0x1]
  %v69 = vlaneseq
  %v70 = vshrl.u32 %v69, 7
  %v71 = vsub.s32 0, %v70
  %v72 = vrot.slane %v67, %v71
  %v81 = vcombine.low %v51, %v52
  %v82 = vcombine.low %v53, %v54
  %v83 = vcombine.low %v55, %v56
  %v84 = vcombine.low %v57, %v58
  %v86 = vunpack.c.l.s4 1966171168
  %v87 = vunpack.c.0.s8 %v86
  %v88 = vlaneseq
  %v89 = vshrl.u32 %v88, 7
  %v90 = vsub.s32 %v87, %v89
  %v91 = vrot.slane %v81, %v90
  %v93 = vunpack.c.l.s4 1966171168
  %v94 = vunpack.c.0.s8 %v93
  %v95 = vlaneseq
  %v96 = vshrl.u32 %v95, 7
  %v97 = vsub.s32 %v94, %v96
  %v98 = vrot.slane %v82, %v97
  %v100 = vunpack.c.l.s4 1966171168
  %v101 = vunpack.c.0.s8 %v100
  %v102 = vlaneseq
  %v103 = vshrl.u32 %v102, 7
  %v104 = vsub.s32 %v101, %v103
  %v105 = vrot.slane %v83, %v104
  %v107 = vunpack.c.l.s4 1966171168
  %v108 = vunpack.c.0.s8 %v107
  %v109 = vlaneseq
  %v110 = vshrl.u32 %v109, 7
  %v111 = vsub.s32 %v108, %v110
  %v112 = vrot.slane %v84, %v111
  %v113 = vcombine.low %v91, %v98
  %v114 = vcombine.low %v105, %v112
  %v116 = vunpack.c.l.s4 1966171168
  %v117 = vunpack.c.0.s8 %v116
  %v118 = vlaneseq
  %v119 = vshrl.u32 %v118, 7
  %v120 = vsub.s32 %v117, %v119
  %v121 = vrot.slane %v113, %v120
  %v123 = vunpack.c.l.s4 1966171168
  %v124 = vunpack.c.0.s8 %v123
  %v125 = vlaneseq
  %v126 = vshrl.u32 %v125, 7
  %v127 = vsub.s32 %v124, %v126
  %v128 = vrot.slane %v114, %v127
  %v129 = vcombine.low %v121, %v128
  %v138 = vunpack.c.l.b16 %v59
  %v139 = vunpack.c.l.b16 %v60
  %v140 = vunpack.c.l.b16 %v61
  %v141 = vunpack.c.l.b16 %v62
  %v142 = vunpack.c.l.b16 %v63
  %v143 = vunpack.c.l.b16 %v64
  %v144 = vunpack.c.l.b16 %v65
  %v145 = vunpack.c.l.b16 %v66
  %v146 = vpack.c.b16 %v139, %v138
  %v147 = vpack.c.b16 %v141, %v140
  %v148 = vpack.c.b16 %v143, %v142
  %v149 = vpack.c.b16 %v145, %v144
  %v154 = vcombine.low %v72, %v72
  %v156 = vunpack.c.l.s4 1983009808
  %v157 = vunpack.c.0.s8 %v156
  %v158 = vlaneseq
  %v159 = vshrl.u32 %v158, 7
  %v160 = vsub.s32 %v157, %v159
  %v161 = vrot.slane %v154, %v160
  %v162 = vcombine.low %v161, %v161
  %vm164 = vcmask 523264
  %v166 = vsel %vm164, %v129, 0
  %168 = vmatprep.subr.bf16.mxu0 0
  %169 = vmatpush1.bf16.msra.mxu0 0
  %170 = vmatprep.subr.bf16.mxu0 0
  %171 = vmatpush1.bf16.msra.mxu0 0
  %172 = vmatprep.subr.bf16.mxu0 0
  %173 = vmatpush1.bf16.msra.mxu0 0
  %174 = vmatprep.subr.bf16.mxu0 0
  %175 = vmatpush1.bf16.msra.mxu0 0
  %176 = vmatprep.subr.bf16.mxu0 0
  %177 = vmatpush1.bf16.msra.mxu0 %v149
  %178 = vmatprep.subr.bf16.mxu0 0
  %179 = vmatpush1.bf16.msra.mxu0 %v148
  %180 = vmatprep.subr.bf16.mxu0 0
  %181 = vmatpush1.bf16.msra.mxu0 %v147
  %182 = vmatprep.subr.bf16.mxu0 0
  %183 = vmatpush1.bf16.msra.mxu0 %v146
  %184 = vmatprep.subr.bf16.mxu0 0
  %185 = vmatpush2.bf16.msra.mxu0 0
  %186 = vmatprep.subr.bf16.mxu0 0
  %187 = vmatpush2.bf16.msra.mxu0 0
  %188 = vmatprep.subr.bf16.mxu0 0
  %189 = vmatpush2.bf16.msra.mxu0 0
  %190 = vmatprep.subr.bf16.mxu0 0
  %191 = vmatpush2.bf16.msra.mxu0 0
  %192 = vmatprep.subr.bf16.mxu0 0
  %193 = vmatpush2.bf16.msra.mxu0 0
  %194 = vmatprep.subr.bf16.mxu0 0
  %195 = vmatpush2.bf16.msra.mxu0 0
  %196 = vmatprep.subr.bf16.mxu0 0
  %197 = vmatpush2.bf16.msra.mxu0 0
  %198 = vmatprep.subr.bf16.mxu0 0
  %199 = vmatpush2.bf16.msra.mxu0 0
  %200 = vmatprep.mubr.bf16.mxu0 0
  %201 = vmatmul.mubr.bf16.gmra.mxu0 %v166
  %v202 = vpop.f32.mrf.mxu0
  %v203 = vadd.f32 %v162, %v202
  %v204 = vpop.f32.mrf.mxu0
  %v205 = vpop.f32.mrf.mxu0
  %v206 = vadd.f32 %v162, %v205
  %v207 = vpop.f32.mrf.mxu0
  %208 = vdwg.mxu0
  %v211 = vcombine.high %v203, %v203
  %v213 = vunpack.c.l.s4 1983009808
  %v214 = vunpack.c.0.s8 %v213
  %v215 = vlaneseq
  %v216 = vshrl.u32 %v215, 7
  %v217 = vsub.s32 %v214, %v216
  %v218 = vrot.slane %v203, %v217
  %v220 = vunpack.c.l.s4 1983009808
  %v221 = vunpack.c.0.s8 %v220
  %v222 = vlaneseq
  %v223 = vshrl.u32 %v222, 7
  %v224 = vsub.s32 %v221, %v223
  %v225 = vrot.slane %v211, %v224
  %v226 = vcombine.high %v218, %v218
  %v227 = vcombine.high %v225, %v225
  %v228 = vcombine.high %v206, %v206
  %v230 = vunpack.c.l.s4 1983009808
  %v231 = vunpack.c.0.s8 %v230
  %v232 = vlaneseq
  %v233 = vshrl.u32 %v232, 7
  %v234 = vsub.s32 %v231, %v233
  %v235 = vrot.slane %v206, %v234
  %v237 = vunpack.c.l.s4 1983009808
  %v238 = vunpack.c.0.s8 %v237
  %v239 = vlaneseq
  %v240 = vshrl.u32 %v239, 7
  %v241 = vsub.s32 %v238, %v240
  %v242 = vrot.slane %v228, %v241
  %v243 = vcombine.high %v235, %v235
  %v244 = vcombine.high %v242, %v242
  %v253 = vpack.c.bf16 %v218, %v218
  %v254 = vpack.c.bf16 %v226, %v226
  %v255 = vpack.c.bf16 %v225, %v225
  %v256 = vpack.c.bf16 %v227, %v227
  %v257 = vpack.c.bf16 %v235, %v235
  %v258 = vpack.c.bf16 %v243, %v243
  %v259 = vpack.c.bf16 %v242, %v242
  %v260 = vpack.c.bf16 %v244, %v244
  %vm261 = vcmask 778240
  %262 = vst.msk [vmem:[#allocation2] sm:$0x1] %vm261, %v253
  %263 = vst.msk [vmem:[#allocation2 + $0x1] sm:$0x1] %vm261, %v254
  %264 = vst.msk [vmem:[#allocation2 + $0x2] sm:$0x1] %vm261, %v255
  %265 = vst.msk [vmem:[#allocation2 + $0x3] sm:$0x1] %vm261, %v256
  %266 = vst.msk [vmem:[#allocation2 + $0x4] sm:$0x1] %vm261, %v257
  %267 = vst.msk [vmem:[#allocation2 + $0x5] sm:$0x1] %vm261, %v258
  %268 = vst.msk [vmem:[#allocation2 + $0x6] sm:$0x1] %vm261, %v259
  %269 = vst.msk [vmem:[#allocation2 + $0x7] sm:$0x1] %vm261, %v260
  %v270 = vld [vmem:[%s3] sm:$0xf]
  %v271 = vld [vmem:[%s3 + $0x4] sm:$0xf]
  %v272 = vld [vmem:[%s3 + $0x8] sm:$0xf]
  %v273 = vld [vmem:[%s3 + $0xc] sm:$0xf]
  %v274 = vld [vmem:[%s3 + $0x10] sm:$0xf]
  %v275 = vld [vmem:[%s3 + $0x14] sm:$0xf]
  %v276 = vld [vmem:[%s3 + $0x18] sm:$0xf]
  %v277 = vld [vmem:[%s3 + $0x1c] sm:$0xf]
  %v278 = vld [vmem:[%s4] sm:$0x1]
  %v280 = vlaneseq
  %v281 = vshrl.u32 %v280, 7
  %v282 = vsub.s32 0, %v281
  %v283 = vrot.slane %v278, %v282
  %v292 = vunpack.c.l.b16 %v270
  %v293 = vunpack.c.l.b16 %v271
  %v294 = vunpack.c.l.b16 %v272
  %v295 = vunpack.c.l.b16 %v273
  %v296 = vunpack.c.l.b16 %v274
  %v297 = vunpack.c.l.b16 %v275
  %v298 = vunpack.c.l.b16 %v276
  %v299 = vunpack.c.l.b16 %v277
  %v300 = vpack.c.b16 %v293, %v292
  %v301 = vpack.c.b16 %v295, %v294
  %v302 = vpack.c.b16 %v297, %v296
  %v303 = vpack.c.b16 %v299, %v298
  %v308 = vcombine.low %v283, %v283
  %v310 = vunpack.c.l.s4 1983009808
  %v311 = vunpack.c.0.s8 %v310
  %v312 = vlaneseq
  %v313 = vshrl.u32 %v312, 7
  %v314 = vsub.s32 %v311, %v313
  %v315 = vrot.slane %v308, %v314
  %v316 = vcombine.low %v315, %v315
  %318 = vmatprep.subr.bf16.mxu0 0
  %319 = vmatpush1.bf16.msra.mxu0 0
  %320 = vmatprep.subr.bf16.mxu0 0
  %321 = vmatpush1.bf16.msra.mxu0 0
  %322 = vmatprep.subr.bf16.mxu0 0
  %323 = vmatpush1.bf16.msra.mxu0 0
  %324 = vmatprep.subr.bf16.mxu0 0
  %325 = vmatpush1.bf16.msra.mxu0 0
  %326 = vmatprep.subr.bf16.mxu0 0
  %327 = vmatpush1.bf16.msra.mxu0 %v303
  %328 = vmatprep.subr.bf16.mxu0 0
  %329 = vmatpush1.bf16.msra.mxu0 %v302
  %330 = vmatprep.subr.bf16.mxu0 0
  %331 = vmatpush1.bf16.msra.mxu0 %v301
  %332 = vmatprep.subr.bf16.mxu0 0
  %333 = vmatpush1.bf16.msra.mxu0 %v300
  %334 = vmatprep.subr.bf16.mxu0 0
  %335 = vmatpush2.bf16.msra.mxu0 0
  %336 = vmatprep.subr.bf16.mxu0 0
  %337 = vmatpush2.bf16.msra.mxu0 0
  %338 = vmatprep.subr.bf16.mxu0 0
  %339 = vmatpush2.bf16.msra.mxu0 0
  %340 = vmatprep.subr.bf16.mxu0 0
  %341 = vmatpush2.bf16.msra.mxu0 0
  %342 = vmatprep.subr.bf16.mxu0 0
  %343 = vmatpush2.bf16.msra.mxu0 0
  %344 = vmatprep.subr.bf16.mxu0 0
  %345 = vmatpush2.bf16.msra.mxu0 0
  %346 = vmatprep.subr.bf16.mxu0 0
  %347 = vmatpush2.bf16.msra.mxu0 0
  %348 = vmatprep.subr.bf16.mxu0 0
  %349 = vmatpush2.bf16.msra.mxu0 0
  %350 = vmatprep.mubr.bf16.mxu0 0
  %351 = vmatmul.mubr.bf16.gmra.mxu0 %v166
  %v352 = vpop.f32.mrf.mxu0
  %v353 = vadd.f32 %v316, %v352
  %v354 = vpop.f32.mrf.mxu0
  %v355 = vpop.f32.mrf.mxu0
  %v356 = vadd.f32 %v316, %v355
  %v357 = vpop.f32.mrf.mxu0
  %358 = vdwg.mxu0
  %v361 = vcombine.high %v353, %v353
  %v363 = vunpack.c.l.s4 1983009808
  %v364 = vunpack.c.0.s8 %v363
  %v365 = vlaneseq
  %v366 = vshrl.u32 %v365, 7
  %v367 = vsub.s32 %v364, %v366
  %v368 = vrot.slane %v353, %v367
  %v370 = vunpack.c.l.s4 1983009808
  %v371 = vunpack.c.0.s8 %v370
  %v372 = vlaneseq
  %v373 = vshrl.u32 %v372, 7
  %v374 = vsub.s32 %v371, %v373
  %v375 = vrot.slane %v361, %v374
  %v376 = vcombine.high %v368, %v368
  %v377 = vcombine.high %v375, %v375
  %v378 = vcombine.high %v356, %v356
  %v380 = vunpack.c.l.s4 1983009808
  %v381 = vunpack.c.0.s8 %v380
  %v382 = vlaneseq
  %v383 = vshrl.u32 %v382, 7
  %v384 = vsub.s32 %v381, %v383
  %v385 = vrot.slane %v356, %v384
  %v387 = vunpack.c.l.s4 1983009808
  %v388 = vunpack.c.0.s8 %v387
  %v389 = vlaneseq
  %v390 = vshrl.u32 %v389, 7
  %v391 = vsub.s32 %v388, %v390
  %v392 = vrot.slane %v378, %v391
  %v393 = vcombine.high %v385, %v385
  %v394 = vcombine.high %v392, %v392
  %v403 = vpack.c.bf16 %v368, %v368
  %v404 = vpack.c.bf16 %v376, %v376
  %v405 = vpack.c.bf16 %v375, %v375
  %v406 = vpack.c.bf16 %v377, %v377
  %v407 = vpack.c.bf16 %v385, %v385
  %v408 = vpack.c.bf16 %v393, %v393
  %v409 = vpack.c.bf16 %v392, %v392
  %v410 = vpack.c.bf16 %v394, %v394
  %411 = vst.msk [vmem:[#allocation3] sm:$0x1] %vm261, %v403
  %412 = vst.msk [vmem:[#allocation3 + $0x1] sm:$0x1] %vm261, %v404
  %413 = vst.msk [vmem:[#allocation3 + $0x2] sm:$0x1] %vm261, %v405
  %414 = vst.msk [vmem:[#allocation3 + $0x3] sm:$0x1] %vm261, %v406
  %415 = vst.msk [vmem:[#allocation3 + $0x4] sm:$0x1] %vm261, %v407
  %416 = vst.msk [vmem:[#allocation3 + $0x5] sm:$0x1] %vm261, %v408
  %417 = vst.msk [vmem:[#allocation3 + $0x6] sm:$0x1] %vm261, %v409
  %418 = vst.msk [vmem:[#allocation3 + $0x7] sm:$0x1] %vm261, %v410
  %v419 = vld [vmem:[%s5] sm:$0xff]
  %v420 = vld [vmem:[%s5 + $0x8] sm:$0xff]
  %v421 = vld [vmem:[%s5 + $0x10] sm:$0xff]
  %v422 = vld [vmem:[%s5 + $0x18] sm:$0xff]
  %v423 = vld [vmem:[%s5 + $0x20] sm:$0xff]
  %v424 = vld [vmem:[%s5 + $0x28] sm:$0xff]
  %v425 = vld [vmem:[%s5 + $0x30] sm:$0xff]
  %v426 = vld [vmem:[%s5 + $0x38] sm:$0xff]
  %v427 = vld [vmem:[%s6] sm:$0x3]
  %v429 = vlaneseq
  %v430 = vshrl.u32 %v429, 7
  %v431 = vsub.s32 0, %v430
  %v432 = vrot.slane %v427, %v431
  %v433 = vlaneseq
  %v434 = vshrl.u32 %v433, 7
  %v435 = vsub.s32 1, %v434
  %v436 = vrot.slane %v427, %v435
  %v439 = vld [vmem:[#allocation2] sm:$0x1]
  %v440 = vunpack.c.l.bf16 %v439
  %s441 = scalar_lea.vmem [#allocation3], 7
  %v442 = vld [vmem:[%s441] sm:$0x1]
  %v443 = vunpack.c.l.bf16 %v442
  %v452 = vunpack.c.l.b16 %v419
  %v453 = vunpack.c.h.b16 %v419
  %v454 = vunpack.c.l.b16 %v420
  %v455 = vunpack.c.h.b16 %v420
  %v456 = vunpack.c.l.b16 %v421
  %v457 = vunpack.c.h.b16 %v421
  %v458 = vunpack.c.l.b16 %v422
  %v459 = vunpack.c.h.b16 %v422
  %v460 = vunpack.c.l.b16 %v423
  %v461 = vunpack.c.h.b16 %v423
  %v462 = vunpack.c.l.b16 %v424
  %v463 = vunpack.c.h.b16 %v424
  %v464 = vunpack.c.l.b16 %v425
  %v465 = vunpack.c.h.b16 %v425
  %v466 = vunpack.c.l.b16 %v426
  %v467 = vunpack.c.h.b16 %v426
  %v468 = vpack.c.b16 %v454, %v452
  %v469 = vpack.c.b16 %v455, %v453
  %v470 = vpack.c.b16 %v458, %v456
  %v471 = vpack.c.b16 %v459, %v457
  %v472 = vpack.c.b16 %v462, %v460
  %v473 = vpack.c.b16 %v463, %v461
  %v474 = vpack.c.b16 %v466, %v464
  %v475 = vpack.c.b16 %v467, %v465
  %v485 = vsel %vm164, 0, 0
  %487 = vmatprep.subr.bf16.mxu0 0
  %488 = vmatpush1.bf16.msra.mxu0 0
  %489 = vmatprep.subr.bf16.mxu0 0
  %490 = vmatpush1.bf16.msra.mxu0 0
  %491 = vmatprep.subr.bf16.mxu0 0
  %492 = vmatpush1.bf16.msra.mxu0 0
  %493 = vmatprep.subr.bf16.mxu0 0
  %494 = vmatpush1.bf16.msra.mxu0 0
  %495 = vmatprep.subr.bf16.mxu0 %v475
  %496 = vmatpush1.bf16.msra.mxu0 %v474
  %497 = vmatprep.subr.bf16.mxu0 %v473
  %498 = vmatpush1.bf16.msra.mxu0 %v472
  %499 = vmatprep.subr.bf16.mxu0 %v471
  %500 = vmatpush1.bf16.msra.mxu0 %v470
  %501 = vmatprep.subr.bf16.mxu0 %v469
  %502 = vmatpush1.bf16.msra.mxu0 %v468
  %503 = vmatprep.subr.bf16.mxu0 0
  %504 = vmatpush2.bf16.msra.mxu0 0
  %505 = vmatprep.subr.bf16.mxu0 0
  %506 = vmatpush2.bf16.msra.mxu0 0
  %507 = vmatprep.subr.bf16.mxu0 0
  %508 = vmatpush2.bf16.msra.mxu0 0
  %509 = vmatprep.subr.bf16.mxu0 0
  %510 = vmatpush2.bf16.msra.mxu0 0
  %511 = vmatprep.subr.bf16.mxu0 0
  %512 = vmatpush2.bf16.msra.mxu0 0
  %513 = vmatprep.subr.bf16.mxu0 0
  %514 = vmatpush2.bf16.msra.mxu0 0
  %515 = vmatprep.subr.bf16.mxu0 0
  %516 = vmatpush2.bf16.msra.mxu0 0
  %517 = vmatprep.subr.bf16.mxu0 0
  %518 = vmatpush2.bf16.msra.mxu0 0
  %519 = vmatprep.mubr.bf16.mxu0 0
  %520 = vmatmul.mubr.bf16.gmra.mxu0 %v485
  %v521 = vpop.f32.mrf.mxu0
  %v522 = vadd.f32 %v432, %v521
  %v523 = vpop.f32.mrf.mxu0
  %v524 = vadd.f32 %v436, %v523
  %v525 = vpop.f32.mrf.mxu0
  %v526 = vpop.f32.mrf.mxu0
  %527 = vdwg.mxu0
  %v530 = vunpack.c.l.s4 1983009808
  %v531 = vunpack.c.0.s8 %v530
  %v532 = vlaneseq
  %v533 = vshrl.u32 %v532, 7
  %v534 = vsub.s32 %v531, %v533
  %v535 = vrot.slane %v443, %v534
  %536 = vrot.lane.b32.xlu0 %v535, 32
  %v537 = vpop.permute.xlu0 %536
  %v541 = vunpack.c.l.s4 1983009808
  %v542 = vunpack.c.0.s8 %v541
  %v543 = vlaneseq
  %v544 = vshrl.u32 %v543, 7
  %v545 = vsub.s32 %v542, %v544
  %v546 = vrot.slane %v440, %v545
  %547 = vrot.lane.b32.xlu0 %v546, 32
  %v548 = vpop.permute.xlu0 %547
  %550 = vrot.lane.b32.xlu0 %v535, 64
  %v551 = vpop.permute.xlu0 %550
  %vm553 = vcmask 261120
  %v554 = vsel %vm553, %v440, %v537
  %v555 = vsel %vm164, %v554, %v548
  %vm556 = vcmask 785408
  %v557 = vsel %vm556, %v555, %v551
  %v558 = vadd.f32 %v557, %v522
  %v559 = vxor.u32 %v558, 2147483648
  %v560 = vmul.f32 %v559, 1.442695
  %v561 = vpow.pop %v560
  %v562 = vadd.f32 %v561, 1.0
  %v563 = vrcp.pop %v562
  %v564 = vmul.f32 1.0, %v563
  %565 = vrot.lane.b32.xlu0 %v546, 64
  %v566 = vpop.permute.xlu0 %565
  %568 = vrot.lane.b32.xlu0 %v535, 96
  %v569 = vpop.permute.xlu0 %568
  %v571 = vsel %vm553, %v566, %v569
  %v572 = vmul.f32 %v564, %v524
  %v573 = vadd.f32 %v571, %v572
  %v574 = vtanh.pop %v573
  %v575 = vsub.f32 1.0, %v564
  %577 = vrot.lane.b32.xlu0 %v574, 64
  %v578 = vpop.permute.xlu0 %577
  %v580 = vmul.f32 %v575, %v578
  %v581 = vmul.f32 %v564, 0.0
  %v582 = vadd.f32 %v580, %v581
  %v583 = vpack.c.bf16 %v582, %v582
  %v586 = vunpack.c.l.s4 1966171168
  %v587 = vunpack.c.0.s8 %v586
  %v588 = vlaneseq
  %v589 = vshrl.u32 %v588, 7
  %v590 = vsub.s32 %v587, %v589
  %v591 = vrot.slane %v583, %v590
  %v593 = vunpack.c.l.s4 1966171168
  %v594 = vunpack.c.0.s8 %v593
  %v595 = vlaneseq
  %v596 = vshrl.u32 %v595, 7
  %v597 = vsub.s32 %v594, %v596
  %v598 = vrot.slane %v591, %v597
  %599 = vrot.lane.b32.xlu0 %v598, 64
  %v600 = vpop.permute.xlu0 %599
  %vm602 = vcmask 253952
  %603 = vst.msk [vmem:[#allocation4] sm:$0x1] %vm602, %v600
  %604 = vrot.lane.b32.xlu0 %v598, 32
  %v605 = vpop.permute.xlu0 %604
  %s607 = scalar_lea.vmem [#allocation5], 7
  %608 = vst.msk [vmem:[%s607] sm:$0x1] %vm602, %v605
  %s609 = scalar_lea.vmem [#allocation2], 1
  %v610 = vld [vmem:[%s609] sm:$0x1]
  %v611 = vunpack.c.l.bf16 %v610
  %s612 = scalar_lea.vmem [#allocation3], 6
  %v613 = vld [vmem:[%s612] sm:$0x1]
  %v614 = vunpack.c.l.bf16 %v613
  %615 = vrot.lane.b32.xlu0 %v583, 64
  %v616 = vpop.permute.xlu0 %615
  %v618 = vsel %vm164, %v616, 0
  %620 = vmatprep.subr.bf16.mxu0 0
  %621 = vmatpush1.bf16.msra.mxu0 0
  %622 = vmatprep.subr.bf16.mxu0 0
  %623 = vmatpush1.bf16.msra.mxu0 0
  %624 = vmatprep.subr.bf16.mxu0 0
  %625 = vmatpush1.bf16.msra.mxu0 0
  %626 = vmatprep.subr.bf16.mxu0 0
  %627 = vmatpush1.bf16.msra.mxu0 0
  %628 = vmatprep.subr.bf16.mxu0 %v475
  %629 = vmatpush1.bf16.msra.mxu0 %v474
  %630 = vmatprep.subr.bf16.mxu0 %v473
  %631 = vmatpush1.bf16.msra.mxu0 %v472
  %632 = vmatprep.subr.bf16.mxu0 %v471
  %633 = vmatpush1.bf16.msra.mxu0 %v470
  %634 = vmatprep.subr.bf16.mxu0 %v469
  %635 = vmatpush1.bf16.msra.mxu0 %v468
  %636 = vmatprep.subr.bf16.mxu0 0
  %637 = vmatpush2.bf16.msra.mxu0 0
  %638 = vmatprep.subr.bf16.mxu0 0
  %639 = vmatpush2.bf16.msra.mxu0 0
  %640 = vmatprep.subr.bf16.mxu0 0
  %641 = vmatpush2.bf16.msra.mxu0 0
  %642 = vmatprep.subr.bf16.mxu0 0
  %643 = vmatpush2.bf16.msra.mxu0 0
  %644 = vmatprep.subr.bf16.mxu0 0
  %645 = vmatpush2.bf16.msra.mxu0 0
  %646 = vmatprep.subr.bf16.mxu0 0
  %647 = vmatpush2.bf16.msra.mxu0 0
  %648 = vmatprep.subr.bf16.mxu0 0
  %649 = vmatpush2.bf16.msra.mxu0 0
  %650 = vmatprep.subr.bf16.mxu0 0
  %651 = vmatpush2.bf16.msra.mxu0 0
  %652 = vmatprep.mubr.bf16.mxu0 0
  %653 = vmatmul.mubr.bf16.gmra.mxu0 %v618
  %v654 = vpop.f32.mrf.mxu0
  %v655 = vadd.f32 %v432, %v654
  %v656 = vpop.f32.mrf.mxu0
  %v657 = vadd.f32 %v436, %v656
  %v658 = vpop.f32.mrf.mxu0
  %v659 = vpop.f32.mrf.mxu0
  %660 = vdwg.mxu0
  %v663 = vunpack.c.l.s4 1983009808
  %v664 = vunpack.c.0.s8 %v663
  %v665 = vlaneseq
  %v666 = vshrl.u32 %v665, 7
  %v667 = vsub.s32 %v664, %v666
  %v668 = vrot.slane %v614, %v667
  %669 = vrot.lane.b32.xlu0 %v668, 32
  %v670 = vpop.permute.xlu0 %669
  %v674 = vunpack.c.l.s4 1983009808
  %v675 = vunpack.c.0.s8 %v674
  %v676 = vlaneseq
  %v677 = vshrl.u32 %v676, 7
  %v678 = vsub.s32 %v675, %v677
  %v679 = vrot.slane %v611, %v678
  %680 = vrot.lane.b32.xlu0 %v679, 32
  %v681 = vpop.permute.xlu0 %680
  %683 = vrot.lane.b32.xlu0 %v668, 64
  %v684 = vpop.permute.xlu0 %683
  %v686 = vsel %vm553, %v611, %v670
  %v687 = vsel %vm164, %v686, %v681
  %v688 = vsel %vm556, %v687, %v684
  %v689 = vadd.f32 %v688, %v655
  %v690 = vxor.u32 %v689, 2147483648
  %v691 = vmul.f32 %v690, 1.442695
  %v692 = vpow.pop %v691
  %v693 = vadd.f32 %v692, 1.0
  %v694 = vrcp.pop %v693
  %v695 = vmul.f32 1.0, %v694
  %696 = vrot.lane.b32.xlu0 %v679, 64
  %v697 = vpop.permute.xlu0 %696
  %699 = vrot.lane.b32.xlu0 %v668, 96
  %v700 = vpop.permute.xlu0 %699
  %v702 = vsel %vm553, %v697, %v700
  %v703 = vmul.f32 %v695, %v657
  %v704 = vadd.f32 %v702, %v703
  %v705 = vtanh.pop %v704
  %v706 = vsub.f32 1.0, %v695
  %708 = vrot.lane.b32.xlu0 %v705, 64
  %v709 = vpop.permute.xlu0 %708
  %v711 = vmul.f32 %v706, %v709
  %v712 = vmul.f32 %v695, %v582
  %v713 = vadd.f32 %v711, %v712
  %v714 = vpack.c.bf16 %v713, %v713
  %v717 = vunpack.c.l.s4 1966171168
  %v718 = vunpack.c.0.s8 %v717
  %v719 = vlaneseq
  %v720 = vshrl.u32 %v719, 7
  %v721 = vsub.s32 %v718, %v720
  %v722 = vrot.slane %v714, %v721
  %v724 = vunpack.c.l.s4 1966171168
  %v725 = vunpack.c.0.s8 %v724
  %v726 = vlaneseq
  %v727 = vshrl.u32 %v726, 7
  %v728 = vsub.s32 %v725, %v727
  %v729 = vrot.slane %v722, %v728
  %730 = vrot.lane.b32.xlu0 %v729, 64
  %v731 = vpop.permute.xlu0 %730
  %s733 = scalar_lea.vmem [#allocation4], 1
  %734 = vst.msk [vmem:[%s733] sm:$0x1] %vm602, %v731
  %735 = vrot.lane.b32.xlu0 %v729, 32
  %v736 = vpop.permute.xlu0 %735
  %s738 = scalar_lea.vmem [#allocation5], 6
  %739 = vst.msk [vmem:[%s738] sm:$0x1] %vm602, %v736
  %s740 = scalar_lea.vmem [#allocation2], 2
  %v741 = vld [vmem:[%s740] sm:$0x1]
  %v742 = vunpack.c.l.bf16 %v741
  %s743 = scalar_lea.vmem [#allocation3], 5
  %v744 = vld [vmem:[%s743] sm:$0x1]
  %v745 = vunpack.c.l.bf16 %v744
  %746 = vrot.lane.b32.xlu0 %v714, 64
  %v747 = vpop.permute.xlu0 %746
  %v749 = vsel %vm164, %v747, 0
  %751 = vmatprep.subr.bf16.mxu0 0
  %752 = vmatpush1.bf16.msra.mxu0 0
  %753 = vmatprep.subr.bf16.mxu0 0
  %754 = vmatpush1.bf16.msra.mxu0 0
  %755 = vmatprep.subr.bf16.mxu0 0
  %756 = vmatpush1.bf16.msra.mxu0 0
  %757 = vmatprep.subr.bf16.mxu0 0
  %758 = vmatpush1.bf16.msra.mxu0 0
  %759 = vmatprep.subr.bf16.mxu0 %v475
  %760 = vmatpush1.bf16.msra.mxu0 %v474
  %761 = vmatprep.subr.bf16.mxu0 %v473
  %762 = vmatpush1.bf16.msra.mxu0 %v472
  %763 = vmatprep.subr.bf16.mxu0 %v471
  %764 = vmatpush1.bf16.msra.mxu0 %v470
  %765 = vmatprep.subr.bf16.mxu0 %v469
  %766 = vmatpush1.bf16.msra.mxu0 %v468
  %767 = vmatprep.subr.bf16.mxu0 0
  %768 = vmatpush2.bf16.msra.mxu0 0
  %769 = vmatprep.subr.bf16.mxu0 0
  %770 = vmatpush2.bf16.msra.mxu0 0
  %771 = vmatprep.subr.bf16.mxu0 0
  %772 = vmatpush2.bf16.msra.mxu0 0
  %773 = vmatprep.subr.bf16.mxu0 0
  %774 = vmatpush2.bf16.msra.mxu0 0
  %775 = vmatprep.subr.bf16.mxu0 0
  %776 = vmatpush2.bf16.msra.mxu0 0
  %777 = vmatprep.subr.bf16.mxu0 0
  %778 = vmatpush2.bf16.msra.mxu0 0
  %779 = vmatprep.subr.bf16.mxu0 0
  %780 = vmatpush2.bf16.msra.mxu0 0
  %781 = vmatprep.subr.bf16.mxu0 0
  %782 = vmatpush2.bf16.msra.mxu0 0
  %783 = vmatprep.mubr.bf16.mxu0 0
  %784 = vmatmul.mubr.bf16.gmra.mxu0 %v749
  %v785 = vpop.f32.mrf.mxu0
  %v786 = vadd.f32 %v432, %v785
  %v787 = vpop.f32.mrf.mxu0
  %v788 = vadd.f32 %v436, %v787
  %v789 = vpop.f32.mrf.mxu0
  %v790 = vpop.f32.mrf.mxu0
  %791 = vdwg.mxu0
  %v794 = vunpack.c.l.s4 1983009808
  %v795 = vunpack.c.0.s8 %v794
  %v796 = vlaneseq
  %v797 = vshrl.u32 %v796, 7
  %v798 = vsub.s32 %v795, %v797
  %v799 = vrot.slane %v745, %v798
  %800 = vrot.lane.b32.xlu0 %v799, 32
  %v801 = vpop.permute.xlu0 %800
  %v805 = vunpack.c.l.s4 1983009808
  %v806 = vunpack.c.0.s8 %v805
  %v807 = vlaneseq
  %v808 = vshrl.u32 %v807, 7
  %v809 = vsub.s32 %v806, %v808
  %v810 = vrot.slane %v742, %v809
  %811 = vrot.lane.b32.xlu0 %v810, 32
  %v812 = vpop.permute.xlu0 %811
  %814 = vrot.lane.b32.xlu0 %v799, 64
  %v815 = vpop.permute.xlu0 %814
  %v817 = vsel %vm553, %v742, %v801
  %v818 = vsel %vm164, %v817, %v812
  %v819 = vsel %vm556, %v818, %v815
  %v820 = vadd.f32 %v819, %v786
  %v821 = vxor.u32 %v820, 2147483648
  %v822 = vmul.f32 %v821, 1.442695
  %v823 = vpow.pop %v822
  %v824 = vadd.f32 %v823, 1.0
  %v825 = vrcp.pop %v824
  %v826 = vmul.f32 1.0, %v825
  %827 = vrot.lane.b32.xlu0 %v810, 64
  %v828 = vpop.permute.xlu0 %827
  %830 = vrot.lane.b32.xlu0 %v799, 96
  %v831 = vpop.permute.xlu0 %830
  %v833 = vsel %vm553, %v828, %v831
  %v834 = vmul.f32 %v826, %v788
  %v835 = vadd.f32 %v833, %v834
  %v836 = vtanh.pop %v835
  %v837 = vsub.f32 1.0, %v826
  %839 = vrot.lane.b32.xlu0 %v836, 64
  %v840 = vpop.permute.xlu0 %839
  %v842 = vmul.f32 %v837, %v840
  %v843 = vmul.f32 %v826, %v713
  %v844 = vadd.f32 %v842, %v843
  %v845 = vpack.c.bf16 %v844, %v844
  %v848 = vunpack.c.l.s4 1966171168
  %v849 = vunpack.c.0.s8 %v848
  %v850 = vlaneseq
  %v851 = vshrl.u32 %v850, 7
  %v852 = vsub.s32 %v849, %v851
  %v853 = vrot.slane %v845, %v852
  %v855 = vunpack.c.l.s4 1966171168
  %v856 = vunpack.c.0.s8 %v855
  %v857 = vlaneseq
  %v858 = vshrl.u32 %v857, 7
  %v859 = vsub.s32 %v856, %v858
  %v860 = vrot.slane %v853, %v859
  %861 = vrot.lane.b32.xlu0 %v860, 64
  %v862 = vpop.permute.xlu0 %861
  %s864 = scalar_lea.vmem [#allocation4], 2
  %865 = vst.msk [vmem:[%s864] sm:$0x1] %vm602, %v862
  %866 = vrot.lane.b32.xlu0 %v860, 32
  %v867 = vpop.permute.xlu0 %866
  %s869 = scalar_lea.vmem [#allocation5], 5
  %870 = vst.msk [vmem:[%s869] sm:$0x1] %vm602, %v867
  %s871 = scalar_lea.vmem [#allocation2], 3
  %v872 = vld [vmem:[%s871] sm:$0x1]
  %v873 = vunpack.c.l.bf16 %v872
  %s874 = scalar_lea.vmem [#allocation3], 4
  %v875 = vld [vmem:[%s874] sm:$0x1]
  %v876 = vunpack.c.l.bf16 %v875
  %877 = vrot.lane.b32.xlu0 %v845, 64
  %v878 = vpop.permute.xlu0 %877
  %v880 = vsel %vm164, %v878, 0
  %882 = vmatprep.subr.bf16.mxu0 0
  %883 = vmatpush1.bf16.msra.mxu0 0
  %884 = vmatprep.subr.bf16.mxu0 0
  %885 = vmatpush1.bf16.msra.mxu0 0
  %886 = vmatprep.subr.bf16.mxu0 0
  %887 = vmatpush1.bf16.msra.mxu0 0
  %888 = vmatprep.subr.bf16.mxu0 0
  %889 = vmatpush1.bf16.msra.mxu0 0
  %890 = vmatprep.subr.bf16.mxu0 %v475
  %891 = vmatpush1.bf16.msra.mxu0 %v474
  %892 = vmatprep.subr.bf16.mxu0 %v473
  %893 = vmatpush1.bf16.msra.mxu0 %v472
  %894 = vmatprep.subr.bf16.mxu0 %v471
  %895 = vmatpush1.bf16.msra.mxu0 %v470
  %896 = vmatprep.subr.bf16.mxu0 %v469
  %897 = vmatpush1.bf16.msra.mxu0 %v468
  %898 = vmatprep.subr.bf16.mxu0 0
  %899 = vmatpush2.bf16.msra.mxu0 0
  %900 = vmatprep.subr.bf16.mxu0 0
  %901 = vmatpush2.bf16.msra.mxu0 0
  %902 = vmatprep.subr.bf16.mxu0 0
  %903 = vmatpush2.bf16.msra.mxu0 0
  %904 = vmatprep.subr.bf16.mxu0 0
  %905 = vmatpush2.bf16.msra.mxu0 0
  %906 = vmatprep.subr.bf16.mxu0 0
  %907 = vmatpush2.bf16.msra.mxu0 0
  %908 = vmatprep.subr.bf16.mxu0 0
  %909 = vmatpush2.bf16.msra.mxu0 0
  %910 = vmatprep.subr.bf16.mxu0 0
  %911 = vmatpush2.bf16.msra.mxu0 0
  %912 = vmatprep.subr.bf16.mxu0 0
  %913 = vmatpush2.bf16.msra.mxu0 0
  %914 = vmatprep.mubr.bf16.mxu0 0
  %915 = vmatmul.mubr.bf16.gmra.mxu0 %v880
  %v916 = vpop.f32.mrf.mxu0
  %v917 = vadd.f32 %v432, %v916
  %v918 = vpop.f32.mrf.mxu0
  %v919 = vadd.f32 %v436, %v918
  %v920 = vpop.f32.mrf.mxu0
  %v921 = vpop.f32.mrf.mxu0
  %922 = vdwg.mxu0
  %v925 = vunpack.c.l.s4 1983009808
  %v926 = vunpack.c.0.s8 %v925
  %v927 = vlaneseq
  %v928 = vshrl.u32 %v927, 7
  %v929 = vsub.s32 %v926, %v928
  %v930 = vrot.slane %v876, %v929
  %931 = vrot.lane.b32.xlu0 %v930, 32
  %v932 = vpop.permute.xlu0 %931
  %v936 = vunpack.c.l.s4 1983009808
  %v937 = vunpack.c.0.s8 %v936
  %v938 = vlaneseq
  %v939 = vshrl.u32 %v938, 7
  %v940 = vsub.s32 %v937, %v939
  %v941 = vrot.slane %v873, %v940
  %942 = vrot.lane.b32.xlu0 %v941, 32
  %v943 = vpop.permute.xlu0 %942
  %945 = vrot.lane.b32.xlu0 %v930, 64
  %v946 = vpop.permute.xlu0 %945
  %v948 = vsel %vm553, %v873, %v932
  %v949 = vsel %vm164, %v948, %v943
  %v950 = vsel %vm556, %v949, %v946
  %v951 = vadd.f32 %v950, %v917
  %v952 = vxor.u32 %v951, 2147483648
  %v953 = vmul.f32 %v952, 1.442695
  %v954 = vpow.pop %v953
  %v955 = vadd.f32 %v954, 1.0
  %v956 = vrcp.pop %v955
  %v957 = vmul.f32 1.0, %v956
  %958 = vrot.lane.b32.xlu0 %v941, 64
  %v959 = vpop.permute.xlu0 %958
  %961 = vrot.lane.b32.xlu0 %v930, 96
  %v962 = vpop.permute.xlu0 %961
  %v964 = vsel %vm553, %v959, %v962
  %v965 = vmul.f32 %v957, %v919
  %v966 = vadd.f32 %v964, %v965
  %v967 = vtanh.pop %v966
  %v968 = vsub.f32 1.0, %v957
  %970 = vrot.lane.b32.xlu0 %v967, 64
  %v971 = vpop.permute.xlu0 %970
  %v973 = vmul.f32 %v968, %v971
  %v974 = vmul.f32 %v957, %v844
  %v975 = vadd.f32 %v973, %v974
  %v976 = vpack.c.bf16 %v975, %v975
  %v979 = vunpack.c.l.s4 1966171168
  %v980 = vunpack.c.0.s8 %v979
  %v981 = vlaneseq
  %v982 = vshrl.u32 %v981, 7
  %v983 = vsub.s32 %v980, %v982
  %v984 = vrot.slane %v976, %v983
  %v986 = vunpack.c.l.s4 1966171168
  %v987 = vunpack.c.0.s8 %v986
  %v988 = vlaneseq
  %v989 = vshrl.u32 %v988, 7
  %v990 = vsub.s32 %v987, %v989
  %v991 = vrot.slane %v984, %v990
  %992 = vrot.lane.b32.xlu0 %v991, 64
  %v993 = vpop.permute.xlu0 %992
  %s995 = scalar_lea.vmem [#allocation4], 3
  %996 = vst.msk [vmem:[%s995] sm:$0x1] %vm602, %v993
  %997 = vrot.lane.b32.xlu0 %v991, 32
  %v998 = vpop.permute.xlu0 %997
  %s1000 = scalar_lea.vmem [#allocation5], 4
  %1001 = vst.msk [vmem:[%s1000] sm:$0x1] %vm602, %v998
  %s1002 = scalar_lea.vmem [#allocation2], 4
  %v1003 = vld [vmem:[%s1002] sm:$0x1]
  %v1004 = vunpack.c.l.bf16 %v1003
  %s1005 = scalar_lea.vmem [#allocation3], 3
  %v1006 = vld [vmem:[%s1005] sm:$0x1]
  %v1007 = vunpack.c.l.bf16 %v1006
  %1008 = vrot.lane.b32.xlu0 %v976, 64
  %v1009 = vpop.permute.xlu0 %1008
  %v1011 = vsel %vm164, %v1009, 0
  %1013 = vmatprep.subr.bf16.mxu0 0
  %1014 = vmatpush1.bf16.msra.mxu0 0
  %1015 = vmatprep.subr.bf16.mxu0 0
  %1016 = vmatpush1.bf16.msra.mxu0 0
  %1017 = vmatprep.subr.bf16.mxu0 0
  %1018 = vmatpush1.bf16.msra.mxu0 0
  %1019 = vmatprep.subr.bf16.mxu0 0
  %1020 = vmatpush1.bf16.msra.mxu0 0
  %1021 = vmatprep.subr.bf16.mxu0 %v475
  %1022 = vmatpush1.bf16.msra.mxu0 %v474
  %1023 = vmatprep.subr.bf16.mxu0 %v473
  %1024 = vmatpush1.bf16.msra.mxu0 %v472
  %1025 = vmatprep.subr.bf16.mxu0 %v471
  %1026 = vmatpush1.bf16.msra.mxu0 %v470
  %1027 = vmatprep.subr.bf16.mxu0 %v469
  %1028 = vmatpush1.bf16.msra.mxu0 %v468
  %1029 = vmatprep.subr.bf16.mxu0 0
  %1030 = vmatpush2.bf16.msra.mxu0 0
  %1031 = vmatprep.subr.bf16.mxu0 0
  %1032 = vmatpush2.bf16.msra.mxu0 0
  %1033 = vmatprep.subr.bf16.mxu0 0
  %1034 = vmatpush2.bf16.msra.mxu0 0
  %1035 = vmatprep.subr.bf16.mxu0 0
  %1036 = vmatpush2.bf16.msra.mxu0 0
  %1037 = vmatprep.subr.bf16.mxu0 0
  %1038 = vmatpush2.bf16.msra.mxu0 0
  %1039 = vmatprep.subr.bf16.mxu0 0
  %1040 = vmatpush2.bf16.msra.mxu0 0
  %1041 = vmatprep.subr.bf16.mxu0 0
  %1042 = vmatpush2.bf16.msra.mxu0 0
  %1043 = vmatprep.subr.bf16.mxu0 0
  %1044 = vmatpush2.bf16.msra.mxu0 0
  %1045 = vmatprep.mubr.bf16.mxu0 0
  %1046 = vmatmul.mubr.bf16.gmra.mxu0 %v1011
  %v1047 = vpop.f32.mrf.mxu0
  %v1048 = vadd.f32 %v432, %v1047
  %v1049 = vpop.f32.mrf.mxu0
  %v1050 = vadd.f32 %v436, %v1049
  %v1051 = vpop.f32.mrf.mxu0
  %v1052 = vpop.f32.mrf.mxu0
  %1053 = vdwg.mxu0
  %v1056 = vunpack.c.l.s4 1983009808
  %v1057 = vunpack.c.0.s8 %v1056
  %v1058 = vlaneseq
  %v1059 = vshrl.u32 %v1058, 7
  %v1060 = vsub.s32 %v1057, %v1059
  %v1061 = vrot.slane %v1007, %v1060
  %1062 = vrot.lane.b32.xlu0 %v1061, 32
  %v1063 = vpop.permute.xlu0 %1062
  %v1067 = vunpack.c.l.s4 1983009808
  %v1068 = vunpack.c.0.s8 %v1067
  %v1069 = vlaneseq
  %v1070 = vshrl.u32 %v1069, 7
  %v1071 = vsub.s32 %v1068, %v1070
  %v1072 = vrot.slane %v1004, %v1071
  %1073 = vrot.lane.b32.xlu0 %v1072, 32
  %v1074 = vpop.permute.xlu0 %1073
  %1076 = vrot.lane.b32.xlu0 %v1061, 64
  %v1077 = vpop.permute.xlu0 %1076
  %v1079 = vsel %vm553, %v1004, %v1063
  %v1080 = vsel %vm164, %v1079, %v1074
  %v1081 = vsel %vm556, %v1080, %v1077
  %v1082 = vadd.f32 %v1081, %v1048
  %v1083 = vxor.u32 %v1082, 2147483648
  %v1084 = vmul.f32 %v1083, 1.442695
  %v1085 = vpow.pop %v1084
  %v1086 = vadd.f32 %v1085, 1.0
  %v1087 = vrcp.pop %v1086
  %v1088 = vmul.f32 1.0, %v1087
  %1089 = vrot.lane.b32.xlu0 %v1072, 64
  %v1090 = vpop.permute.xlu0 %1089
  %1092 = vrot.lane.b32.xlu0 %v1061, 96
  %v1093 = vpop.permute.xlu0 %1092
  %v1095 = vsel %vm553, %v1090, %v1093
  %v1096 = vmul.f32 %v1088, %v1050
  %v1097 = vadd.f32 %v1095, %v1096
  %v1098 = vtanh.pop %v1097
  %v1099 = vsub.f32 1.0, %v1088
  %1101 = vrot.lane.b32.xlu0 %v1098, 64
  %v1102 = vpop.permute.xlu0 %1101
  %v1104 = vmul.f32 %v1099, %v1102
  %v1105 = vmul.f32 %v1088, %v975
  %v1106 = vadd.f32 %v1104, %v1105
  %v1107 = vpack.c.bf16 %v1106, %v1106
  %v1110 = vunpack.c.l.s4 1966171168
  %v1111 = vunpack.c.0.s8 %v1110
  %v1112 = vlaneseq
  %v1113 = vshrl.u32 %v1112, 7
  %v1114 = vsub.s32 %v1111, %v1113
  %v1115 = vrot.slane %v1107, %v1114
  %v1117 = vunpack.c.l.s4 1966171168
  %v1118 = vunpack.c.0.s8 %v1117
  %v1119 = vlaneseq
  %v1120 = vshrl.u32 %v1119, 7
  %v1121 = vsub.s32 %v1118, %v1120
  %v1122 = vrot.slane %v1115, %v1121
  %1123 = vrot.lane.b32.xlu0 %v1122, 64
  %v1124 = vpop.permute.xlu0 %1123
  %s1126 = scalar_lea.vmem [#allocation4], 4
  %1127 = vst.msk [vmem:[%s1126] sm:$0x1] %vm602, %v1124
  %1128 = vrot.lane.b32.xlu0 %v1122, 32
  %v1129 = vpop.permute.xlu0 %1128
  %s1131 = scalar_lea.vmem [#allocation5], 3
  %1132 = vst.msk [vmem:[%s1131] sm:$0x1] %vm602, %v1129
  %s1133 = scalar_lea.vmem [#allocation2], 5
  %v1134 = vld [vmem:[%s1133] sm:$0x1]
  %v1135 = vunpack.c.l.bf16 %v1134
  %s1136 = scalar_lea.vmem [#allocation3], 2
  %v1137 = vld [vmem:[%s1136] sm:$0x1]
  %v1138 = vunpack.c.l.bf16 %v1137
  %1139 = vrot.lane.b32.xlu0 %v1107, 64
  %v1140 = vpop.permute.xlu0 %1139
  %v1142 = vsel %vm164, %v1140, 0
  %1144 = vmatprep.subr.bf16.mxu0 0
  %1145 = vmatpush1.bf16.msra.mxu0 0
  %1146 = vmatprep.subr.bf16.mxu0 0
  %1147 = vmatpush1.bf16.msra.mxu0 0
  %1148 = vmatprep.subr.bf16.mxu0 0
  %1149 = vmatpush1.bf16.msra.mxu0 0
  %1150 = vmatprep.subr.bf16.mxu0 0
  %1151 = vmatpush1.bf16.msra.mxu0 0
  %1152 = vmatprep.subr.bf16.mxu0 %v475
  %1153 = vmatpush1.bf16.msra.mxu0 %v474
  %1154 = vmatprep.subr.bf16.mxu0 %v473
  %1155 = vmatpush1.bf16.msra.mxu0 %v472
  %1156 = vmatprep.subr.bf16.mxu0 %v471
  %1157 = vmatpush1.bf16.msra.mxu0 %v470
  %1158 = vmatprep.subr.bf16.mxu0 %v469
  %1159 = vmatpush1.bf16.msra.mxu0 %v468
  %1160 = vmatprep.subr.bf16.mxu0 0
  %1161 = vmatpush2.bf16.msra.mxu0 0
  %1162 = vmatprep.subr.bf16.mxu0 0
  %1163 = vmatpush2.bf16.msra.mxu0 0
  %1164 = vmatprep.subr.bf16.mxu0 0
  %1165 = vmatpush2.bf16.msra.mxu0 0
  %1166 = vmatprep.subr.bf16.mxu0 0
  %1167 = vmatpush2.bf16.msra.mxu0 0
  %1168 = vmatprep.subr.bf16.mxu0 0
  %1169 = vmatpush2.bf16.msra.mxu0 0
  %1170 = vmatprep.subr.bf16.mxu0 0
  %1171 = vmatpush2.bf16.msra.mxu0 0
  %1172 = vmatprep.subr.bf16.mxu0 0
  %1173 = vmatpush2.bf16.msra.mxu0 0
  %1174 = vmatprep.subr.bf16.mxu0 0
  %1175 = vmatpush2.bf16.msra.mxu0 0
  %1176 = vmatprep.mubr.bf16.mxu0 0
  %1177 = vmatmul.mubr.bf16.gmra.mxu0 %v1142
  %v1178 = vpop.f32.mrf.mxu0
  %v1179 = vadd.f32 %v432, %v1178
  %v1180 = vpop.f32.mrf.mxu0
  %v1181 = vadd.f32 %v436, %v1180
  %v1182 = vpop.f32.mrf.mxu0
  %v1183 = vpop.f32.mrf.mxu0
  %1184 = vdwg.mxu0
  %v1187 = vunpack.c.l.s4 1983009808
  %v1188 = vunpack.c.0.s8 %v1187
  %v1189 = vlaneseq
  %v1190 = vshrl.u32 %v1189, 7
  %v1191 = vsub.s32 %v1188, %v1190
  %v1192 = vrot.slane %v1138, %v1191
  %1193 = vrot.lane.b32.xlu0 %v1192, 32
  %v1194 = vpop.permute.xlu0 %1193
  %v1198 = vunpack.c.l.s4 1983009808
  %v1199 = vunpack.c.0.s8 %v1198
  %v1200 = vlaneseq
  %v1201 = vshrl.u32 %v1200, 7
  %v1202 = vsub.s32 %v1199, %v1201
  %v1203 = vrot.slane %v1135, %v1202
  %1204 = vrot.lane.b32.xlu0 %v1203, 32
  %v1205 = vpop.permute.xlu0 %1204
  %1207 = vrot.lane.b32.xlu0 %v1192, 64
  %v1208 = vpop.permute.xlu0 %1207
  %v1210 = vsel %vm553, %v1135, %v1194
  %v1211 = vsel %vm164, %v1210, %v1205
  %v1212 = vsel %vm556, %v1211, %v1208
  %v1213 = vadd.f32 %v1212, %v1179
  %v1214 = vxor.u32 %v1213, 2147483648
  %v1215 = vmul.f32 %v1214, 1.442695
  %v1216 = vpow.pop %v1215
  %v1217 = vadd.f32 %v1216, 1.0
  %v1218 = vrcp.pop %v1217
  %v1219 = vmul.f32 1.0, %v1218
  %1220 = vrot.lane.b32.xlu0 %v1203, 64
  %v1221 = vpop.permute.xlu0 %1220
  %1223 = vrot.lane.b32.xlu0 %v1192, 96
  %v1224 = vpop.permute.xlu0 %1223
  %v1226 = vsel %vm553, %v1221, %v1224
  %v1227 = vmul.f32 %v1219, %v1181
  %v1228 = vadd.f32 %v1226, %v1227
  %v1229 = vtanh.pop %v1228
  %v1230 = vsub.f32 1.0, %v1219
  %1232 = vrot.lane.b32.xlu0 %v1229, 64
  %v1233 = vpop.permute.xlu0 %1232
  %v1235 = vmul.f32 %v1230, %v1233
  %v1236 = vmul.f32 %v1219, %v1106
  %v1237 = vadd.f32 %v1235, %v1236
  %v1238 = vpack.c.bf16 %v1237, %v1237
  %v1241 = vunpack.c.l.s4 1966171168
  %v1242 = vunpack.c.0.s8 %v1241
  %v1243 = vlaneseq
  %v1244 = vshrl.u32 %v1243, 7
  %v1245 = vsub.s32 %v1242, %v1244
  %v1246 = vrot.slane %v1238, %v1245
  %v1248 = vunpack.c.l.s4 1966171168
  %v1249 = vunpack.c.0.s8 %v1248
  %v1250 = vlaneseq
  %v1251 = vshrl.u32 %v1250, 7
  %v1252 = vsub.s32 %v1249, %v1251
  %v1253 = vrot.slane %v1246, %v1252
  %1254 = vrot.lane.b32.xlu0 %v1253, 64
  %v1255 = vpop.permute.xlu0 %1254
  %s1257 = scalar_lea.vmem [#allocation4], 5
  %1258 = vst.msk [vmem:[%s1257] sm:$0x1] %vm602, %v1255
  %1259 = vrot.lane.b32.xlu0 %v1253, 32
  %v1260 = vpop.permute.xlu0 %1259
  %s1262 = scalar_lea.vmem [#allocation5], 2
  %1263 = vst.msk [vmem:[%s1262] sm:$0x1] %vm602, %v1260
  %s1264 = scalar_lea.vmem [#allocation2], 6
  %v1265 = vld [vmem:[%s1264] sm:$0x1]
  %v1266 = vunpack.c.l.bf16 %v1265
  %s1267 = scalar_lea.vmem [#allocation3], 1
  %v1268 = vld [vmem:[%s1267] sm:$0x1]
  %v1269 = vunpack.c.l.bf16 %v1268
  %1270 = vrot.lane.b32.xlu0 %v1238, 64
  %v1271 = vpop.permute.xlu0 %1270
  %v1273 = vsel %vm164, %v1271, 0
  %1275 = vmatprep.subr.bf16.mxu0 0
  %1276 = vmatpush1.bf16.msra.mxu0 0
  %1277 = vmatprep.subr.bf16.mxu0 0
  %1278 = vmatpush1.bf16.msra.mxu0 0
  %1279 = vmatprep.subr.bf16.mxu0 0
  %1280 = vmatpush1.bf16.msra.mxu0 0
  %1281 = vmatprep.subr.bf16.mxu0 0
  %1282 = vmatpush1.bf16.msra.mxu0 0
  %1283 = vmatprep.subr.bf16.mxu0 %v475
  %1284 = vmatpush1.bf16.msra.mxu0 %v474
  %1285 = vmatprep.subr.bf16.mxu0 %v473
  %1286 = vmatpush1.bf16.msra.mxu0 %v472
  %1287 = vmatprep.subr.bf16.mxu0 %v471
  %1288 = vmatpush1.bf16.msra.mxu0 %v470
  %1289 = vmatprep.subr.bf16.mxu0 %v469
  %1290 = vmatpush1.bf16.msra.mxu0 %v468
  %1291 = vmatprep.subr.bf16.mxu0 0
  %1292 = vmatpush2.bf16.msra.mxu0 0
  %1293 = vmatprep.subr.bf16.mxu0 0
  %1294 = vmatpush2.bf16.msra.mxu0 0
  %1295 = vmatprep.subr.bf16.mxu0 0
  %1296 = vmatpush2.bf16.msra.mxu0 0
  %1297 = vmatprep.subr.bf16.mxu0 0
  %1298 = vmatpush2.bf16.msra.mxu0 0
  %1299 = vmatprep.subr.bf16.mxu0 0
  %1300 = vmatpush2.bf16.msra.mxu0 0
  %1301 = vmatprep.subr.bf16.mxu0 0
  %1302 = vmatpush2.bf16.msra.mxu0 0
  %1303 = vmatprep.subr.bf16.mxu0 0
  %1304 = vmatpush2.bf16.msra.mxu0 0
  %1305 = vmatprep.subr.bf16.mxu0 0
  %1306 = vmatpush2.bf16.msra.mxu0 0
  %1307 = vmatprep.mubr.bf16.mxu0 0
  %1308 = vmatmul.mubr.bf16.gmra.mxu0 %v1273
  %v1309 = vpop.f32.mrf.mxu0
  %v1310 = vadd.f32 %v432, %v1309
  %v1311 = vpop.f32.mrf.mxu0
  %v1312 = vadd.f32 %v436, %v1311
  %v1313 = vpop.f32.mrf.mxu0
  %v1314 = vpop.f32.mrf.mxu0
  %1315 = vdwg.mxu0
  %v1318 = vunpack.c.l.s4 1983009808
  %v1319 = vunpack.c.0.s8 %v1318
  %v1320 = vlaneseq
  %v1321 = vshrl.u32 %v1320, 7
  %v1322 = vsub.s32 %v1319, %v1321
  %v1323 = vrot.slane %v1269, %v1322
  %1324 = vrot.lane.b32.xlu0 %v1323, 32
  %v1325 = vpop.permute.xlu0 %1324
  %v1329 = vunpack.c.l.s4 1983009808
  %v1330 = vunpack.c.0.s8 %v1329
  %v1331 = vlaneseq
  %v1332 = vshrl.u32 %v1331, 7
  %v1333 = vsub.s32 %v1330, %v1332
  %v1334 = vrot.slane %v1266, %v1333
  %1335 = vrot.lane.b32.xlu0 %v1334, 32
  %v1336 = vpop.permute.xlu0 %1335
  %1338 = vrot.lane.b32.xlu0 %v1323, 64
  %v1339 = vpop.permute.xlu0 %1338
  %v1341 = vsel %vm553, %v1266, %v1325
  %v1342 = vsel %vm164, %v1341, %v1336
  %v1343 = vsel %vm556, %v1342, %v1339
  %v1344 = vadd.f32 %v1343, %v1310
  %v1345 = vxor.u32 %v1344, 2147483648
  %v1346 = vmul.f32 %v1345, 1.442695
  %v1347 = vpow.pop %v1346
  %v1348 = vadd.f32 %v1347, 1.0
  %v1349 = vrcp.pop %v1348
  %v1350 = vmul.f32 1.0, %v1349
  %1351 = vrot.lane.b32.xlu0 %v1334, 64
  %v1352 = vpop.permute.xlu0 %1351
  %1354 = vrot.lane.b32.xlu0 %v1323, 96
  %v1355 = vpop.permute.xlu0 %1354
  %v1357 = vsel %vm553, %v1352, %v1355
  %v1358 = vmul.f32 %v1350, %v1312
  %v1359 = vadd.f32 %v1357, %v1358
  %v1360 = vtanh.pop %v1359
  %v1361 = vsub.f32 1.0, %v1350
  %1363 = vrot.lane.b32.xlu0 %v1360, 64
  %v1364 = vpop.permute.xlu0 %1363
  %v1366 = vmul.f32 %v1361, %v1364
  %v1367 = vmul.f32 %v1350, %v1237
  %v1368 = vadd.f32 %v1366, %v1367
  %v1369 = vpack.c.bf16 %v1368, %v1368
  %v1372 = vunpack.c.l.s4 1966171168
  %v1373 = vunpack.c.0.s8 %v1372
  %v1374 = vlaneseq
  %v1375 = vshrl.u32 %v1374, 7
  %v1376 = vsub.s32 %v1373, %v1375
  %v1377 = vrot.slane %v1369, %v1376
  %v1379 = vunpack.c.l.s4 1966171168
  %v1380 = vunpack.c.0.s8 %v1379
  %v1381 = vlaneseq
  %v1382 = vshrl.u32 %v1381, 7
  %v1383 = vsub.s32 %v1380, %v1382
  %v1384 = vrot.slane %v1377, %v1383
  %1385 = vrot.lane.b32.xlu0 %v1384, 64
  %v1386 = vpop.permute.xlu0 %1385
  %s1388 = scalar_lea.vmem [#allocation4], 6
  %1389 = vst.msk [vmem:[%s1388] sm:$0x1] %vm602, %v1386
  %1390 = vrot.lane.b32.xlu0 %v1384, 32
  %v1391 = vpop.permute.xlu0 %1390
  %s1393 = scalar_lea.vmem [#allocation5], 1
  %1394 = vst.msk [vmem:[%s1393] sm:$0x1] %vm602, %v1391
  %s1395 = scalar_lea.vmem [#allocation2], 7
  %v1396 = vld [vmem:[%s1395] sm:$0x1]
  %v1397 = vunpack.c.l.bf16 %v1396
  %v1398 = vld [vmem:[#allocation3] sm:$0x1]
  %v1399 = vunpack.c.l.bf16 %v1398
  %1400 = vrot.lane.b32.xlu0 %v1369, 64
  %v1401 = vpop.permute.xlu0 %1400
  %v1403 = vsel %vm164, %v1401, 0
  %1405 = vmatprep.subr.bf16.mxu0 0
  %1406 = vmatpush1.bf16.msra.mxu0 0
  %1407 = vmatprep.subr.bf16.mxu0 0
  %1408 = vmatpush1.bf16.msra.mxu0 0
  %1409 = vmatprep.subr.bf16.mxu0 0
  %1410 = vmatpush1.bf16.msra.mxu0 0
  %1411 = vmatprep.subr.bf16.mxu0 0
  %1412 = vmatpush1.bf16.msra.mxu0 0
  %1413 = vmatprep.subr.bf16.mxu0 %v475
  %1414 = vmatpush1.bf16.msra.mxu0 %v474
  %1415 = vmatprep.subr.bf16.mxu0 %v473
  %1416 = vmatpush1.bf16.msra.mxu0 %v472
  %1417 = vmatprep.subr.bf16.mxu0 %v471
  %1418 = vmatpush1.bf16.msra.mxu0 %v470
  %1419 = vmatprep.subr.bf16.mxu0 %v469
  %1420 = vmatpush1.bf16.msra.mxu0 %v468
  %1421 = vmatprep.subr.bf16.mxu0 0
  %1422 = vmatpush2.bf16.msra.mxu0 0
  %1423 = vmatprep.subr.bf16.mxu0 0
  %1424 = vmatpush2.bf16.msra.mxu0 0
  %1425 = vmatprep.subr.bf16.mxu0 0
  %1426 = vmatpush2.bf16.msra.mxu0 0
  %1427 = vmatprep.subr.bf16.mxu0 0
  %1428 = vmatpush2.bf16.msra.mxu0 0
  %1429 = vmatprep.subr.bf16.mxu0 0
  %1430 = vmatpush2.bf16.msra.mxu0 0
  %1431 = vmatprep.subr.bf16.mxu0 0
  %1432 = vmatpush2.bf16.msra.mxu0 0
  %1433 = vmatprep.subr.bf16.mxu0 0
  %1434 = vmatpush2.bf16.msra.mxu0 0
  %1435 = vmatprep.subr.bf16.mxu0 0
  %1436 = vmatpush2.bf16.msra.mxu0 0
  %1437 = vmatprep.mubr.bf16.mxu0 0
  %1438 = vmatmul.mubr.bf16.gmra.mxu0 %v1403
  %v1439 = vpop.f32.mrf.mxu0
  %v1440 = vadd.f32 %v432, %v1439
  %v1441 = vpop.f32.mrf.mxu0
  %v1442 = vadd.f32 %v436, %v1441
  %v1443 = vpop.f32.mrf.mxu0
  %v1444 = vpop.f32.mrf.mxu0
  %1445 = vdwg.mxu0
  %v1448 = vunpack.c.l.s4 1983009808
  %v1449 = vunpack.c.0.s8 %v1448
  %v1450 = vlaneseq
  %v1451 = vshrl.u32 %v1450, 7
  %v1452 = vsub.s32 %v1449, %v1451
  %v1453 = vrot.slane %v1399, %v1452
  %1454 = vrot.lane.b32.xlu0 %v1453, 32
  %v1455 = vpop.permute.xlu0 %1454
  %v1459 = vunpack.c.l.s4 1983009808
  %v1460 = vunpack.c.0.s8 %v1459
  %v1461 = vlaneseq
  %v1462 = vshrl.u32 %v1461, 7
  %v1463 = vsub.s32 %v1460, %v1462
  %v1464 = vrot.slane %v1397, %v1463
  %1465 = vrot.lane.b32.xlu0 %v1464, 32
  %v1466 = vpop.permute.xlu0 %1465
  %1468 = vrot.lane.b32.xlu0 %v1453, 64
  %v1469 = vpop.permute.xlu0 %1468
  %v1471 = vsel %vm553, %v1397, %v1455
  %v1472 = vsel %vm164, %v1471, %v1466
  %v1473 = vsel %vm556, %v1472, %v1469
  %v1474 = vadd.f32 %v1473, %v1440
  %v1475 = vxor.u32 %v1474, 2147483648
  %v1476 = vmul.f32 %v1475, 1.442695
  %v1477 = vpow.pop %v1476
  %v1478 = vadd.f32 %v1477, 1.0
  %v1479 = vrcp.pop %v1478
  %v1480 = vmul.f32 1.0, %v1479
  %1481 = vrot.lane.b32.xlu0 %v1464, 64
  %v1482 = vpop.permute.xlu0 %1481
  %1484 = vrot.lane.b32.xlu0 %v1453, 96
  %v1485 = vpop.permute.xlu0 %1484
  %v1487 = vsel %vm553, %v1482, %v1485
  %v1488 = vmul.f32 %v1480, %v1442
  %v1489 = vadd.f32 %v1487, %v1488
  %v1490 = vtanh.pop %v1489
  %v1491 = vsub.f32 1.0, %v1480
  %1493 = vrot.lane.b32.xlu0 %v1490, 64
  %v1494 = vpop.permute.xlu0 %1493
  %v1496 = vmul.f32 %v1491, %v1494
  %v1497 = vmul.f32 %v1480, %v1368
  %v1498 = vadd.f32 %v1496, %v1497
  %v1499 = vpack.c.bf16 %v1498, %v1498
  %v1502 = vunpack.c.l.s4 1966171168
  %v1503 = vunpack.c.0.s8 %v1502
  %v1504 = vlaneseq
  %v1505 = vshrl.u32 %v1504, 7
  %v1506 = vsub.s32 %v1503, %v1505
  %v1507 = vrot.slane %v1499, %v1506
  %v1509 = vunpack.c.l.s4 1966171168
  %v1510 = vunpack.c.0.s8 %v1509
  %v1511 = vlaneseq
  %v1512 = vshrl.u32 %v1511, 7
  %v1513 = vsub.s32 %v1510, %v1512
  %v1514 = vrot.slane %v1507, %v1513
  %1515 = vrot.lane.b32.xlu0 %v1514, 64
  %v1516 = vpop.permute.xlu0 %1515
  %s1518 = scalar_lea.vmem [#allocation4], 7
  %1519 = vst.msk [vmem:[%s1518] sm:$0x1] %vm602, %v1516
  %1520 = vrot.lane.b32.xlu0 %v1514, 32
  %v1521 = vpop.permute.xlu0 %1520
  %1523 = vst.msk [vmem:[#allocation5] sm:$0x1] %vm602, %v1521
  %v1524 = vld [vmem:[#allocation4] sm:$0x1]
  %v1525 = vld [vmem:[#allocation4 + $0x1] sm:$0x1]
  %v1526 = vld [vmem:[#allocation4 + $0x2] sm:$0x1]
  %v1527 = vld [vmem:[#allocation4 + $0x3] sm:$0x1]
  %v1528 = vld [vmem:[#allocation4 + $0x4] sm:$0x1]
  %v1529 = vld [vmem:[#allocation4 + $0x5] sm:$0x1]
  %v1530 = vld [vmem:[#allocation4 + $0x6] sm:$0x1]
  %v1531 = vld [vmem:[#allocation4 + $0x7] sm:$0x1]
  %v1532 = vld [vmem:[#allocation5] sm:$0x1]
  %v1533 = vld [vmem:[#allocation5 + $0x1] sm:$0x1]
  %v1534 = vld [vmem:[#allocation5 + $0x2] sm:$0x1]
  %v1535 = vld [vmem:[#allocation5 + $0x3] sm:$0x1]
  %v1536 = vld [vmem:[#allocation5 + $0x4] sm:$0x1]
  %v1537 = vld [vmem:[#allocation5 + $0x5] sm:$0x1]
  %v1538 = vld [vmem:[#allocation5 + $0x6] sm:$0x1]
  %v1539 = vld [vmem:[#allocation5 + $0x7] sm:$0x1]
  %v1540 = vld [vmem:[%s7] sm:$0xf]
  %v1541 = vld [vmem:[%s7 + $0x4] sm:$0xf]
  %v1542 = vld [vmem:[%s7 + $0x8] sm:$0xf]
  %v1543 = vld [vmem:[%s7 + $0xc] sm:$0xf]
  %v1544 = vld [vmem:[%s8] sm:$0xf]
  %v1545 = vld [vmem:[%s8 + $0x4] sm:$0xf]
  %v1546 = vld [vmem:[%s8 + $0x8] sm:$0xf]
  %v1547 = vld [vmem:[%s8 + $0xc] sm:$0xf]
  %v1556 = vcombine.low %v1532, %v1533
  %v1557 = vcombine.low %v1534, %v1535
  %v1558 = vcombine.low %v1536, %v1537
  %v1559 = vcombine.low %v1538, %v1539
  %v1561 = vunpack.c.l.s4 1966171168
  %v1562 = vunpack.c.0.s8 %v1561
  %v1563 = vlaneseq
  %v1564 = vshrl.u32 %v1563, 7
  %v1565 = vsub.s32 %v1562, %v1564
  %v1566 = vrot.slane %v1556, %v1565
  %v1568 = vunpack.c.l.s4 1966171168
  %v1569 = vunpack.c.0.s8 %v1568
  %v1570 = vlaneseq
  %v1571 = vshrl.u32 %v1570, 7
  %v1572 = vsub.s32 %v1569, %v1571
  %v1573 = vrot.slane %v1557, %v1572
  %v1575 = vunpack.c.l.s4 1966171168
  %v1576 = vunpack.c.0.s8 %v1575
  %v1577 = vlaneseq
  %v1578 = vshrl.u32 %v1577, 7
  %v1579 = vsub.s32 %v1576, %v1578
  %v1580 = vrot.slane %v1558, %v1579
  %v1582 = vunpack.c.l.s4 1966171168
  %v1583 = vunpack.c.0.s8 %v1582
  %v1584 = vlaneseq
  %v1585 = vshrl.u32 %v1584, 7
  %v1586 = vsub.s32 %v1583, %v1585
  %v1587 = vrot.slane %v1559, %v1586
  %v1588 = vcombine.low %v1566, %v1573
  %v1589 = vcombine.low %v1580, %v1587
  %v1591 = vunpack.c.l.s4 1966171168
  %v1592 = vunpack.c.0.s8 %v1591
  %v1593 = vlaneseq
  %v1594 = vshrl.u32 %v1593, 7
  %v1595 = vsub.s32 %v1592, %v1594
  %v1596 = vrot.slane %v1588, %v1595
  %v1598 = vunpack.c.l.s4 1966171168
  %v1599 = vunpack.c.0.s8 %v1598
  %v1600 = vlaneseq
  %v1601 = vshrl.u32 %v1600, 7
  %v1602 = vsub.s32 %v1599, %v1601
  %v1603 = vrot.slane %v1589, %v1602
  %v1604 = vcombine.low %v1596, %v1603
  %v1609 = vunpack.c.l.b16 %v1544
  %v1610 = vunpack.c.l.b16 %v1545
  %v1611 = vunpack.c.l.b16 %v1546
  %v1612 = vunpack.c.l.b16 %v1547
  %v1613 = vpack.c.b16 %v1610, %v1609
  %v1614 = vpack.c.b16 %v1612, %v1611
  %v1618 = vsel %vm553, %v1604, 0
  %1620 = vmatprep.subr.bf16.mxu0 0
  %1621 = vmatpush1.bf16.msra.mxu0 0
  %1622 = vmatprep.subr.bf16.mxu0 0
  %1623 = vmatpush1.bf16.msra.mxu0 0
  %1624 = vmatprep.subr.bf16.mxu0 0
  %1625 = vmatpush1.bf16.msra.mxu0 0
  %1626 = vmatprep.subr.bf16.mxu0 0
  %1627 = vmatpush1.bf16.msra.mxu0 0
  %1628 = vmatprep.subr.bf16.mxu0 0
  %1629 = vmatpush1.bf16.msra.mxu0 0
  %1630 = vmatprep.subr.bf16.mxu0 0
  %1631 = vmatpush1.bf16.msra.mxu0 0
  %1632 = vmatprep.subr.bf16.mxu0 0
  %1633 = vmatpush1.bf16.msra.mxu0 %v1614
  %1634 = vmatprep.subr.bf16.mxu0 0
  %1635 = vmatpush1.bf16.msra.mxu0 %v1613
  %1636 = vmatprep.subr.bf16.mxu0 0
  %1637 = vmatpush2.bf16.msra.mxu0 0
  %1638 = vmatprep.subr.bf16.mxu0 0
  %1639 = vmatpush2.bf16.msra.mxu0 0
  %1640 = vmatprep.subr.bf16.mxu0 0
  %1641 = vmatpush2.bf16.msra.mxu0 0
  %1642 = vmatprep.subr.bf16.mxu0 0
  %1643 = vmatpush2.bf16.msra.mxu0 0
  %1644 = vmatprep.subr.bf16.mxu0 0
  %1645 = vmatpush2.bf16.msra.mxu0 0
  %1646 = vmatprep.subr.bf16.mxu0 0
  %1647 = vmatpush2.bf16.msra.mxu0 0
  %1648 = vmatprep.subr.bf16.mxu0 0
  %1649 = vmatpush2.bf16.msra.mxu0 0
  %1650 = vmatprep.subr.bf16.mxu0 0
  %1651 = vmatpush2.bf16.msra.mxu0 0
  %1652 = vmatprep.mubr.bf16.mxu0 0
  %1653 = vmatmul.mubr.bf16.gmra.mxu0 %v1618
  %v1654 = vpop.f32.mrf.mxu0
  %v1655 = vadd.f32 0.0, %v1654
  %v1656 = vpop.f32.mrf.mxu0
  %v1657 = vpop.f32.mrf.mxu0
  %v1658 = vadd.f32 0.0, %v1657
  %v1659 = vpop.f32.mrf.mxu0
  %1660 = vdwg.mxu0
  %v1669 = vcombine.low %v1524, %v1525
  %v1670 = vcombine.low %v1526, %v1527
  %v1671 = vcombine.low %v1528, %v1529
  %v1672 = vcombine.low %v1530, %v1531
  %v1674 = vunpack.c.l.s4 1966171168
  %v1675 = vunpack.c.0.s8 %v1674
  %v1676 = vlaneseq
  %v1677 = vshrl.u32 %v1676, 7
  %v1678 = vsub.s32 %v1675, %v1677
  %v1679 = vrot.slane %v1669, %v1678
  %v1681 = vunpack.c.l.s4 1966171168
  %v1682 = vunpack.c.0.s8 %v1681
  %v1683 = vlaneseq
  %v1684 = vshrl.u32 %v1683, 7
  %v1685 = vsub.s32 %v1682, %v1684
  %v1686 = vrot.slane %v1670, %v1685
  %v1688 = vunpack.c.l.s4 1966171168
  %v1689 = vunpack.c.0.s8 %v1688
  %v1690 = vlaneseq
  %v1691 = vshrl.u32 %v1690, 7
  %v1692 = vsub.s32 %v1689, %v1691
  %v1693 = vrot.slane %v1671, %v1692
  %v1695 = vunpack.c.l.s4 1966171168
  %v1696 = vunpack.c.0.s8 %v1695
  %v1697 = vlaneseq
  %v1698 = vshrl.u32 %v1697, 7
  %v1699 = vsub.s32 %v1696, %v1698
  %v1700 = vrot.slane %v1672, %v1699
  %v1701 = vcombine.low %v1679, %v1686
  %v1702 = vcombine.low %v1693, %v1700
  %v1704 = vunpack.c.l.s4 1966171168
  %v1705 = vunpack.c.0.s8 %v1704
  %v1706 = vlaneseq
  %v1707 = vshrl.u32 %v1706, 7
  %v1708 = vsub.s32 %v1705, %v1707
  %v1709 = vrot.slane %v1701, %v1708
  %v1711 = vunpack.c.l.s4 1966171168
  %v1712 = vunpack.c.0.s8 %v1711
  %v1713 = vlaneseq
  %v1714 = vshrl.u32 %v1713, 7
  %v1715 = vsub.s32 %v1712, %v1714
  %v1716 = vrot.slane %v1702, %v1715
  %v1717 = vcombine.low %v1709, %v1716
  %v1722 = vunpack.c.l.b16 %v1540
  %v1723 = vunpack.c.l.b16 %v1541
  %v1724 = vunpack.c.l.b16 %v1542
  %v1725 = vunpack.c.l.b16 %v1543
  %v1726 = vpack.c.b16 %v1723, %v1722
  %v1727 = vpack.c.b16 %v1725, %v1724
  %v1731 = vsel %vm553, %v1717, 0
  %1733 = vmatprep.subr.bf16.mxu0 0
  %1734 = vmatpush1.bf16.msra.mxu0 0
  %1735 = vmatprep.subr.bf16.mxu0 0
  %1736 = vmatpush1.bf16.msra.mxu0 0
  %1737 = vmatprep.subr.bf16.mxu0 0
  %1738 = vmatpush1.bf16.msra.mxu0 0
  %1739 = vmatprep.subr.bf16.mxu0 0
  %1740 = vmatpush1.bf16.msra.mxu0 0
  %1741 = vmatprep.subr.bf16.mxu0 0
  %1742 = vmatpush1.bf16.msra.mxu0 0
  %1743 = vmatprep.subr.bf16.mxu0 0
  %1744 = vmatpush1.bf16.msra.mxu0 0
  %1745 = vmatprep.subr.bf16.mxu0 0
  %1746 = vmatpush1.bf16.msra.mxu0 %v1727
  %1747 = vmatprep.subr.bf16.mxu0 0
  %1748 = vmatpush1.bf16.msra.mxu0 %v1726
  %1749 = vmatprep.subr.bf16.mxu0 0
  %1750 = vmatpush2.bf16.msra.mxu0 0
  %1751 = vmatprep.subr.bf16.mxu0 0
  %1752 = vmatpush2.bf16.msra.mxu0 0
  %1753 = vmatprep.subr.bf16.mxu0 0
  %1754 = vmatpush2.bf16.msra.mxu0 0
  %1755 = vmatprep.subr.bf16.mxu0 0
  %1756 = vmatpush2.bf16.msra.mxu0 0
  %1757 = vmatprep.subr.bf16.mxu0 0
  %1758 = vmatpush2.bf16.msra.mxu0 0
  %1759 = vmatprep.subr.bf16.mxu0 0
  %1760 = vmatpush2.bf16.msra.mxu0 0
  %1761 = vmatprep.subr.bf16.mxu0 0
  %1762 = vmatpush2.bf16.msra.mxu0 0
  %1763 = vmatprep.subr.bf16.mxu0 0
  %1764 = vmatpush2.bf16.msra.mxu0 0
  %1765 = vmatprep.mubr.bf16.mxu0 0
  %1766 = vmatmul.mubr.bf16.gmra.mxu0 %v1731
  %v1767 = vpop.f32.mrf.mxu0
  %v1768 = vadd.f32 %v1655, %v1767
  %v1769 = vpop.f32.mrf.mxu0
  %v1770 = vpop.f32.mrf.mxu0
  %v1771 = vadd.f32 %v1658, %v1770
  %v1772 = vpop.f32.mrf.mxu0
  %1773 = vdwg.mxu0
  %v1776 = vcombine.high %v1768, %v1768
  %v1778 = vunpack.c.l.s4 1983009808
  %v1779 = vunpack.c.0.s8 %v1778
  %v1780 = vlaneseq
  %v1781 = vshrl.u32 %v1780, 7
  %v1782 = vsub.s32 %v1779, %v1781
  %v1783 = vrot.slane %v1768, %v1782
  %v1785 = vunpack.c.l.s4 1983009808
  %v1786 = vunpack.c.0.s8 %v1785
  %v1787 = vlaneseq
  %v1788 = vshrl.u32 %v1787, 7
  %v1789 = vsub.s32 %v1786, %v1788
  %v1790 = vrot.slane %v1776, %v1789
  %v1791 = vcombine.high %v1783, %v1783
  %v1792 = vcombine.high %v1790, %v1790
  %v1793 = vcombine.high %v1771, %v1771
  %v1795 = vunpack.c.l.s4 1983009808
  %v1796 = vunpack.c.0.s8 %v1795
  %v1797 = vlaneseq
  %v1798 = vshrl.u32 %v1797, 7
  %v1799 = vsub.s32 %v1796, %v1798
  %v1800 = vrot.slane %v1771, %v1799
  %v1802 = vunpack.c.l.s4 1983009808
  %v1803 = vunpack.c.0.s8 %v1802
  %v1804 = vlaneseq
  %v1805 = vshrl.u32 %v1804, 7
  %v1806 = vsub.s32 %v1803, %v1805
  %v1807 = vrot.slane %v1793, %v1806
  %v1808 = vcombine.high %v1800, %v1800
  %v1809 = vcombine.high %v1807, %v1807
  %v1818 = vld [vmem:[%s9] sm:$0x1]
  %v1820 = vlaneseq
  %v1821 = vshrl.u32 %v1820, 7
  %v1822 = vsub.s32 0, %v1821
  %v1823 = vrot.slane %v1818, %v1822
  %v1825 = vadd.f32 %v1783, %v1823
  %v1826 = vadd.f32 %v1791, %v1823
  %v1827 = vadd.f32 %v1790, %v1823
  %v1828 = vadd.f32 %v1792, %v1823
  %v1829 = vadd.f32 %v1800, %v1823
  %v1830 = vadd.f32 %v1808, %v1823
  %v1831 = vadd.f32 %v1807, %v1823
  %v1832 = vadd.f32 %v1809, %v1823
  %v1833 = vpack.c.bf16 %v1825, %v1825
  %v1834 = vpack.c.bf16 %v1826, %v1826
  %v1835 = vpack.c.bf16 %v1827, %v1827
  %v1836 = vpack.c.bf16 %v1828, %v1828
  %v1837 = vpack.c.bf16 %v1829, %v1829
  %v1838 = vpack.c.bf16 %v1830, %v1830
  %v1839 = vpack.c.bf16 %v1831, %v1831
  %v1840 = vpack.c.bf16 %v1832, %v1832
  %1841 = vst.msk [vmem:[#allocation2] sm:$0x1] %vm261, %v1833
  %1842 = vst.msk [vmem:[#allocation2 + $0x1] sm:$0x1] %vm261, %v1834
  %1843 = vst.msk [vmem:[#allocation2 + $0x2] sm:$0x1] %vm261, %v1835
  %1844 = vst.msk [vmem:[#allocation2 + $0x3] sm:$0x1] %vm261, %v1836
  %1845 = vst.msk [vmem:[#allocation2 + $0x4] sm:$0x1] %vm261, %v1837
  %1846 = vst.msk [vmem:[#allocation2 + $0x5] sm:$0x1] %vm261, %v1838
  %1847 = vst.msk [vmem:[#allocation2 + $0x6] sm:$0x1] %vm261, %v1839
  %1848 = vst.msk [vmem:[#allocation2 + $0x7] sm:$0x1] %vm261, %v1840
  %v1849 = vld [vmem:[%s10] sm:$0xf]
  %v1850 = vld [vmem:[%s10 + $0x4] sm:$0xf]
  %v1851 = vld [vmem:[%s10 + $0x8] sm:$0xf]
  %v1852 = vld [vmem:[%s10 + $0xc] sm:$0xf]
  %v1853 = vld [vmem:[%s11] sm:$0xf]
  %v1854 = vld [vmem:[%s11 + $0x4] sm:$0xf]
  %v1855 = vld [vmem:[%s11 + $0x8] sm:$0xf]
  %v1856 = vld [vmem:[%s11 + $0xc] sm:$0xf]
  %v1861 = vunpack.c.l.b16 %v1853
  %v1862 = vunpack.c.l.b16 %v1854
  %v1863 = vunpack.c.l.b16 %v1855
  %v1864 = vunpack.c.l.b16 %v1856
  %v1865 = vpack.c.b16 %v1862, %v1861
  %v1866 = vpack.c.b16 %v1864, %v1863
  %1869 = vmatprep.subr.bf16.mxu0 0
  %1870 = vmatpush1.bf16.msra.mxu0 0
  %1871 = vmatprep.subr.bf16.mxu0 0
  %1872 = vmatpush1.bf16.msra.mxu0 0
  %1873 = vmatprep.subr.bf16.mxu0 0
  %1874 = vmatpush1.bf16.msra.mxu0 0
  %1875 = vmatprep.subr.bf16.mxu0 0
  %1876 = vmatpush1.bf16.msra.mxu0 0
  %1877 = vmatprep.subr.bf16.mxu0 0
  %1878 = vmatpush1.bf16.msra.mxu0 0
  %1879 = vmatprep.subr.bf16.mxu0 0
  %1880 = vmatpush1.bf16.msra.mxu0 0
  %1881 = vmatprep.subr.bf16.mxu0 0
  %1882 = vmatpush1.bf16.msra.mxu0 %v1866
  %1883 = vmatprep.subr.bf16.mxu0 0
  %1884 = vmatpush1.bf16.msra.mxu0 %v1865
  %1885 = vmatprep.subr.bf16.mxu0 0
  %1886 = vmatpush2.bf16.msra.mxu0 0
  %1887 = vmatprep.subr.bf16.mxu0 0
  %1888 = vmatpush2.bf16.msra.mxu0 0
  %1889 = vmatprep.subr.bf16.mxu0 0
  %1890 = vmatpush2.bf16.msra.mxu0 0
  %1891 = vmatprep.subr.bf16.mxu0 0
  %1892 = vmatpush2.bf16.msra.mxu0 0
  %1893 = vmatprep.subr.bf16.mxu0 0
  %1894 = vmatpush2.bf16.msra.mxu0 0
  %1895 = vmatprep.subr.bf16.mxu0 0
  %1896 = vmatpush2.bf16.msra.mxu0 0
  %1897 = vmatprep.subr.bf16.mxu0 0
  %1898 = vmatpush2.bf16.msra.mxu0 0
  %1899 = vmatprep.subr.bf16.mxu0 0
  %1900 = vmatpush2.bf16.msra.mxu0 0
  %1901 = vmatprep.mubr.bf16.mxu0 0
  %1902 = vmatmul.mubr.bf16.gmra.mxu0 %v1618
  %v1903 = vpop.f32.mrf.mxu0
  %v1904 = vadd.f32 0.0, %v1903
  %v1905 = vpop.f32.mrf.mxu0
  %v1906 = vpop.f32.mrf.mxu0
  %v1907 = vadd.f32 0.0, %v1906
  %v1908 = vpop.f32.mrf.mxu0
  %1909 = vdwg.mxu0
  %v1914 = vunpack.c.l.b16 %v1849
  %v1915 = vunpack.c.l.b16 %v1850
  %v1916 = vunpack.c.l.b16 %v1851
  %v1917 = vunpack.c.l.b16 %v1852
  %v1918 = vpack.c.b16 %v1915, %v1914
  %v1919 = vpack.c.b16 %v1917, %v1916
  %1922 = vmatprep.subr.bf16.mxu0 0
  %1923 = vmatpush1.bf16.msra.mxu0 0
  %1924 = vmatprep.subr.bf16.mxu0 0
  %1925 = vmatpush1.bf16.msra.mxu0 0
  %1926 = vmatprep.subr.bf16.mxu0 0
  %1927 = vmatpush1.bf16.msra.mxu0 0
  %1928 = vmatprep.subr.bf16.mxu0 0
  %1929 = vmatpush1.bf16.msra.mxu0 0
  %1930 = vmatprep.subr.bf16.mxu0 0
  %1931 = vmatpush1.bf16.msra.mxu0 0
  %1932 = vmatprep.subr.bf16.mxu0 0
  %1933 = vmatpush1.bf16.msra.mxu0 0
  %1934 = vmatprep.subr.bf16.mxu0 0
  %1935 = vmatpush1.bf16.msra.mxu0 %v1919
  %1936 = vmatprep.subr.bf16.mxu0 0
  %1937 = vmatpush1.bf16.msra.mxu0 %v1918
  %1938 = vmatprep.subr.bf16.mxu0 0
  %1939 = vmatpush2.bf16.msra.mxu0 0
  %1940 = vmatprep.subr.bf16.mxu0 0
  %1941 = vmatpush2.bf16.msra.mxu0 0
  %1942 = vmatprep.subr.bf16.mxu0 0
  %1943 = vmatpush2.bf16.msra.mxu0 0
  %1944 = vmatprep.subr.bf16.mxu0 0
  %1945 = vmatpush2.bf16.msra.mxu0 0
  %1946 = vmatprep.subr.bf16.mxu0 0
  %1947 = vmatpush2.bf16.msra.mxu0 0
  %1948 = vmatprep.subr.bf16.mxu0 0
  %1949 = vmatpush2.bf16.msra.mxu0 0
  %1950 = vmatprep.subr.bf16.mxu0 0
  %1951 = vmatpush2.bf16.msra.mxu0 0
  %1952 = vmatprep.subr.bf16.mxu0 0
  %1953 = vmatpush2.bf16.msra.mxu0 0
  %1954 = vmatprep.mubr.bf16.mxu0 0
  %1955 = vmatmul.mubr.bf16.gmra.mxu0 %v1731
  %v1956 = vpop.f32.mrf.mxu0
  %v1957 = vadd.f32 %v1904, %v1956
  %v1958 = vpop.f32.mrf.mxu0
  %v1959 = vpop.f32.mrf.mxu0
  %v1960 = vadd.f32 %v1907, %v1959
  %v1961 = vpop.f32.mrf.mxu0
  %1962 = vdwg.mxu0
  %v1965 = vcombine.high %v1957, %v1957
  %v1967 = vunpack.c.l.s4 1983009808
  %v1968 = vunpack.c.0.s8 %v1967
  %v1969 = vlaneseq
  %v1970 = vshrl.u32 %v1969, 7
  %v1971 = vsub.s32 %v1968, %v1970
  %v1972 = vrot.slane %v1957, %v1971
  %v1974 = vunpack.c.l.s4 1983009808
  %v1975 = vunpack.c.0.s8 %v1974
  %v1976 = vlaneseq
  %v1977 = vshrl.u32 %v1976, 7
  %v1978 = vsub.s32 %v1975, %v1977
  %v1979 = vrot.slane %v1965, %v1978
  %v1980 = vcombine.high %v1972, %v1972
  %v1981 = vcombine.high %v1979, %v1979
  %v1982 = vcombine.high %v1960, %v1960
  %v1984 = vunpack.c.l.s4 1983009808
  %v1985 = vunpack.c.0.s8 %v1984
  %v1986 = vlaneseq
  %v1987 = vshrl.u32 %v1986, 7
  %v1988 = vsub.s32 %v1985, %v1987
  %v1989 = vrot.slane %v1960, %v1988
  %v1991 = vunpack.c.l.s4 1983009808
  %v1992 = vunpack.c.0.s8 %v1991
  %v1993 = vlaneseq
  %v1994 = vshrl.u32 %v1993, 7
  %v1995 = vsub.s32 %v1992, %v1994
  %v1996 = vrot.slane %v1982, %v1995
  %v1997 = vcombine.high %v1989, %v1989
  %v1998 = vcombine.high %v1996, %v1996
  %v2007 = vld [vmem:[%s12] sm:$0x1]
  %v2009 = vlaneseq
  %v2010 = vshrl.u32 %v2009, 7
  %v2011 = vsub.s32 0, %v2010
  %v2012 = vrot.slane %v2007, %v2011
  %v2014 = vadd.f32 %v1972, %v2012
  %v2015 = vadd.f32 %v1980, %v2012
  %v2016 = vadd.f32 %v1979, %v2012
  %v2017 = vadd.f32 %v1981, %v2012
  %v2018 = vadd.f32 %v1989, %v2012
  %v2019 = vadd.f32 %v1997, %v2012
  %v2020 = vadd.f32 %v1996, %v2012
  %v2021 = vadd.f32 %v1998, %v2012
  %v2022 = vpack.c.bf16 %v2014, %v2014
  %v2023 = vpack.c.bf16 %v2015, %v2015
  %v2024 = vpack.c.bf16 %v2016, %v2016
  %v2025 = vpack.c.bf16 %v2017, %v2017
  %v2026 = vpack.c.bf16 %v2018, %v2018
  %v2027 = vpack.c.bf16 %v2019, %v2019
  %v2028 = vpack.c.bf16 %v2020, %v2020
  %v2029 = vpack.c.bf16 %v2021, %v2021
  %2030 = vst.msk [vmem:[#allocation3] sm:$0x1] %vm261, %v2022
  %2031 = vst.msk [vmem:[#allocation3 + $0x1] sm:$0x1] %vm261, %v2023
  %2032 = vst.msk [vmem:[#allocation3 + $0x2] sm:$0x1] %vm261, %v2024
  %2033 = vst.msk [vmem:[#allocation3 + $0x3] sm:$0x1] %vm261, %v2025
  %2034 = vst.msk [vmem:[#allocation3 + $0x4] sm:$0x1] %vm261, %v2026
  %2035 = vst.msk [vmem:[#allocation3 + $0x5] sm:$0x1] %vm261, %v2027
  %2036 = vst.msk [vmem:[#allocation3 + $0x6] sm:$0x1] %vm261, %v2028
  %2037 = vst.msk [vmem:[#allocation3 + $0x7] sm:$0x1] %vm261, %v2029
  %v2038 = vld [vmem:[%s13] sm:$0xff]
  %v2039 = vld [vmem:[%s13 + $0x8] sm:$0xff]
  %v2040 = vld [vmem:[%s13 + $0x10] sm:$0xff]
  %v2041 = vld [vmem:[%s13 + $0x18] sm:$0xff]
  %v2042 = vld [vmem:[%s13 + $0x20] sm:$0xff]
  %v2043 = vld [vmem:[%s13 + $0x28] sm:$0xff]
  %v2044 = vld [vmem:[%s13 + $0x30] sm:$0xff]
  %v2045 = vld [vmem:[%s13 + $0x38] sm:$0xff]
  %v2046 = vld [vmem:[%s14] sm:$0x3]
  %v2048 = vlaneseq
  %v2049 = vshrl.u32 %v2048, 7
  %v2050 = vsub.s32 0, %v2049
  %v2051 = vrot.slane %v2046, %v2050
  %v2052 = vlaneseq
  %v2053 = vshrl.u32 %v2052, 7
  %v2054 = vsub.s32 1, %v2053
  %v2055 = vrot.slane %v2046, %v2054
  %v2058 = vld [vmem:[#allocation2] sm:$0x1]
  %v2059 = vunpack.c.l.bf16 %v2058
  %v2060 = vld [vmem:[%s441] sm:$0x1]
  %v2061 = vunpack.c.l.bf16 %v2060
  %v2070 = vunpack.c.l.b16 %v2038
  %v2071 = vunpack.c.h.b16 %v2038
  %v2072 = vunpack.c.l.b16 %v2039
  %v2073 = vunpack.c.h.b16 %v2039
  %v2074 = vunpack.c.l.b16 %v2040
  %v2075 = vunpack.c.h.b16 %v2040
  %v2076 = vunpack.c.l.b16 %v2041
  %v2077 = vunpack.c.h.b16 %v2041
  %v2078 = vunpack.c.l.b16 %v2042
  %v2079 = vunpack.c.h.b16 %v2042
  %v2080 = vunpack.c.l.b16 %v2043
  %v2081 = vunpack.c.h.b16 %v2043
  %v2082 = vunpack.c.l.b16 %v2044
  %v2083 = vunpack.c.h.b16 %v2044
  %v2084 = vunpack.c.l.b16 %v2045
  %v2085 = vunpack.c.h.b16 %v2045
  %v2086 = vpack.c.b16 %v2072, %v2070
  %v2087 = vpack.c.b16 %v2073, %v2071
  %v2088 = vpack.c.b16 %v2076, %v2074
  %v2089 = vpack.c.b16 %v2077, %v2075
  %v2090 = vpack.c.b16 %v2080, %v2078
  %v2091 = vpack.c.b16 %v2081, %v2079
  %v2092 = vpack.c.b16 %v2084, %v2082
  %v2093 = vpack.c.b16 %v2085, %v2083
  %2102 = vmatprep.subr.bf16.mxu0 0
  %2103 = vmatpush1.bf16.msra.mxu0 0
  %2104 = vmatprep.subr.bf16.mxu0 0
  %2105 = vmatpush1.bf16.msra.mxu0 0
  %2106 = vmatprep.subr.bf16.mxu0 0
  %2107 = vmatpush1.bf16.msra.mxu0 0
  %2108 = vmatprep.subr.bf16.mxu0 0
  %2109 = vmatpush1.bf16.msra.mxu0 0
  %2110 = vmatprep.subr.bf16.mxu0 %v2093
  %2111 = vmatpush1.bf16.msra.mxu0 %v2092
  %2112 = vmatprep.subr.bf16.mxu0 %v2091
  %2113 = vmatpush1.bf16.msra.mxu0 %v2090
  %2114 = vmatprep.subr.bf16.mxu0 %v2089
  %2115 = vmatpush1.bf16.msra.mxu0 %v2088
  %2116 = vmatprep.subr.bf16.mxu0 %v2087
  %2117 = vmatpush1.bf16.msra.mxu0 %v2086
  %2118 = vmatprep.subr.bf16.mxu0 0
  %2119 = vmatpush2.bf16.msra.mxu0 0
  %2120 = vmatprep.subr.bf16.mxu0 0
  %2121 = vmatpush2.bf16.msra.mxu0 0
  %2122 = vmatprep.subr.bf16.mxu0 0
  %2123 = vmatpush2.bf16.msra.mxu0 0
  %2124 = vmatprep.subr.bf16.mxu0 0
  %2125 = vmatpush2.bf16.msra.mxu0 0
  %2126 = vmatprep.subr.bf16.mxu0 0
  %2127 = vmatpush2.bf16.msra.mxu0 0
  %2128 = vmatprep.subr.bf16.mxu0 0
  %2129 = vmatpush2.bf16.msra.mxu0 0
  %2130 = vmatprep.subr.bf16.mxu0 0
  %2131 = vmatpush2.bf16.msra.mxu0 0
  %2132 = vmatprep.subr.bf16.mxu0 0
  %2133 = vmatpush2.bf16.msra.mxu0 0
  %2134 = vmatprep.mubr.bf16.mxu0 0
  %2135 = vmatmul.mubr.bf16.gmra.mxu0 %v485
  %v2136 = vpop.f32.mrf.mxu0
  %v2137 = vadd.f32 %v2051, %v2136
  %v2138 = vpop.f32.mrf.mxu0
  %v2139 = vadd.f32 %v2055, %v2138
  %v2140 = vpop.f32.mrf.mxu0
  %v2141 = vpop.f32.mrf.mxu0
  %2142 = vdwg.mxu0
  %v2145 = vunpack.c.l.s4 1983009808
  %v2146 = vunpack.c.0.s8 %v2145
  %v2147 = vlaneseq
  %v2148 = vshrl.u32 %v2147, 7
  %v2149 = vsub.s32 %v2146, %v2148
  %v2150 = vrot.slane %v2061, %v2149
  %2151 = vrot.lane.b32.xlu0 %v2150, 32
  %v2152 = vpop.permute.xlu0 %2151
  %v2156 = vunpack.c.l.s4 1983009808
  %v2157 = vunpack.c.0.s8 %v2156
  %v2158 = vlaneseq
  %v2159 = vshrl.u32 %v2158, 7
  %v2160 = vsub.s32 %v2157, %v2159
  %v2161 = vrot.slane %v2059, %v2160
  %2162 = vrot.lane.b32.xlu0 %v2161, 32
  %v2163 = vpop.permute.xlu0 %2162
  %2165 = vrot.lane.b32.xlu0 %v2150, 64
  %v2166 = vpop.permute.xlu0 %2165
  %v2168 = vsel %vm553, %v2059, %v2152
  %v2169 = vsel %vm164, %v2168, %v2163
  %v2170 = vsel %vm556, %v2169, %v2166
  %v2171 = vadd.f32 %v2170, %v2137
  %v2172 = vxor.u32 %v2171, 2147483648
  %v2173 = vmul.f32 %v2172, 1.442695
  %v2174 = vpow.pop %v2173
  %v2175 = vadd.f32 %v2174, 1.0
  %v2176 = vrcp.pop %v2175
  %v2177 = vmul.f32 1.0, %v2176
  %2178 = vrot.lane.b32.xlu0 %v2161, 64
  %v2179 = vpop.permute.xlu0 %2178
  %2181 = vrot.lane.b32.xlu0 %v2150, 96
  %v2182 = vpop.permute.xlu0 %2181
  %v2184 = vsel %vm553, %v2179, %v2182
  %v2185 = vmul.f32 %v2177, %v2139
  %v2186 = vadd.f32 %v2184, %v2185
  %v2187 = vtanh.pop %v2186
  %v2188 = vsub.f32 1.0, %v2177
  %2190 = vrot.lane.b32.xlu0 %v2187, 64
  %v2191 = vpop.permute.xlu0 %2190
  %v2193 = vmul.f32 %v2188, %v2191
  %v2194 = vmul.f32 %v2177, 0.0
  %v2195 = vadd.f32 %v2193, %v2194
  %v2196 = vadd.f32 %v2195, 0.0
  %v2197 = vld [vmem:[%s609] sm:$0x1]
  %v2198 = vunpack.c.l.bf16 %v2197
  %v2199 = vld [vmem:[%s612] sm:$0x1]
  %v2200 = vunpack.c.l.bf16 %v2199
  %v2201 = vpack.c.bf16 %v2195, %v2195
  %2203 = vrot.lane.b32.xlu0 %v2201, 64
  %v2204 = vpop.permute.xlu0 %2203
  %v2206 = vsel %vm164, %v2204, 0
  %2208 = vmatprep.subr.bf16.mxu0 0
  %2209 = vmatpush1.bf16.msra.mxu0 0
  %2210 = vmatprep.subr.bf16.mxu0 0
  %2211 = vmatpush1.bf16.msra.mxu0 0
  %2212 = vmatprep.subr.bf16.mxu0 0
  %2213 = vmatpush1.bf16.msra.mxu0 0
  %2214 = vmatprep.subr.bf16.mxu0 0
  %2215 = vmatpush1.bf16.msra.mxu0 0
  %2216 = vmatprep.subr.bf16.mxu0 %v2093
  %2217 = vmatpush1.bf16.msra.mxu0 %v2092
  %2218 = vmatprep.subr.bf16.mxu0 %v2091
  %2219 = vmatpush1.bf16.msra.mxu0 %v2090
  %2220 = vmatprep.subr.bf16.mxu0 %v2089
  %2221 = vmatpush1.bf16.msra.mxu0 %v2088
  %2222 = vmatprep.subr.bf16.mxu0 %v2087
  %2223 = vmatpush1.bf16.msra.mxu0 %v2086
  %2224 = vmatprep.subr.bf16.mxu0 0
  %2225 = vmatpush2.bf16.msra.mxu0 0
  %2226 = vmatprep.subr.bf16.mxu0 0
  %2227 = vmatpush2.bf16.msra.mxu0 0
  %2228 = vmatprep.subr.bf16.mxu0 0
  %2229 = vmatpush2.bf16.msra.mxu0 0
  %2230 = vmatprep.subr.bf16.mxu0 0
  %2231 = vmatpush2.bf16.msra.mxu0 0
  %2232 = vmatprep.subr.bf16.mxu0 0
  %2233 = vmatpush2.bf16.msra.mxu0 0
  %2234 = vmatprep.subr.bf16.mxu0 0
  %2235 = vmatpush2.bf16.msra.mxu0 0
  %2236 = vmatprep.subr.bf16.mxu0 0
  %2237 = vmatpush2.bf16.msra.mxu0 0
  %2238 = vmatprep.subr.bf16.mxu0 0
  %2239 = vmatpush2.bf16.msra.mxu0 0
  %2240 = vmatprep.mubr.bf16.mxu0 0
  %2241 = vmatmul.mubr.bf16.gmra.mxu0 %v2206
  %v2242 = vpop.f32.mrf.mxu0
  %v2243 = vadd.f32 %v2051, %v2242
  %v2244 = vpop.f32.mrf.mxu0
  %v2245 = vadd.f32 %v2055, %v2244
  %v2246 = vpop.f32.mrf.mxu0
  %v2247 = vpop.f32.mrf.mxu0
  %2248 = vdwg.mxu0
  %v2251 = vunpack.c.l.s4 1983009808
  %v2252 = vunpack.c.0.s8 %v2251
  %v2253 = vlaneseq
  %v2254 = vshrl.u32 %v2253, 7
  %v2255 = vsub.s32 %v2252, %v2254
  %v2256 = vrot.slane %v2200, %v2255
  %2257 = vrot.lane.b32.xlu0 %v2256, 32
  %v2258 = vpop.permute.xlu0 %2257
  %v2262 = vunpack.c.l.s4 1983009808
  %v2263 = vunpack.c.0.s8 %v2262
  %v2264 = vlaneseq
  %v2265 = vshrl.u32 %v2264, 7
  %v2266 = vsub.s32 %v2263, %v2265
  %v2267 = vrot.slane %v2198, %v2266
  %2268 = vrot.lane.b32.xlu0 %v2267, 32
  %v2269 = vpop.permute.xlu0 %2268
  %2271 = vrot.lane.b32.xlu0 %v2256, 64
  %v2272 = vpop.permute.xlu0 %2271
  %v2274 = vsel %vm553, %v2198, %v2258
  %v2275 = vsel %vm164, %v2274, %v2269
  %v2276 = vsel %vm556, %v2275, %v2272
  %v2277 = vadd.f32 %v2276, %v2243
  %v2278 = vxor.u32 %v2277, 2147483648
  %v2279 = vmul.f32 %v2278, 1.442695
  %v2280 = vpow.pop %v2279
  %v2281 = vadd.f32 %v2280, 1.0
  %v2282 = vrcp.pop %v2281
  %v2283 = vmul.f32 1.0, %v2282
  %2284 = vrot.lane.b32.xlu0 %v2267, 64
  %v2285 = vpop.permute.xlu0 %2284
  %2287 = vrot.lane.b32.xlu0 %v2256, 96
  %v2288 = vpop.permute.xlu0 %2287
  %v2290 = vsel %vm553, %v2285, %v2288
  %v2291 = vmul.f32 %v2283, %v2245
  %v2292 = vadd.f32 %v2290, %v2291
  %v2293 = vtanh.pop %v2292
  %v2294 = vsub.f32 1.0, %v2283
  %2296 = vrot.lane.b32.xlu0 %v2293, 64
  %v2297 = vpop.permute.xlu0 %2296
  %v2299 = vmul.f32 %v2294, %v2297
  %v2300 = vmul.f32 %v2283, %v2195
  %v2301 = vadd.f32 %v2299, %v2300
  %v2302 = vadd.f32 %v2196, %v2301
  %v2303 = vmax.f32 %v2195, %v2301
  %v2304 = vld [vmem:[%s740] sm:$0x1]
  %v2305 = vunpack.c.l.bf16 %v2304
  %v2306 = vld [vmem:[%s743] sm:$0x1]
  %v2307 = vunpack.c.l.bf16 %v2306
  %v2308 = vpack.c.bf16 %v2301, %v2301
  %2310 = vrot.lane.b32.xlu0 %v2308, 64
  %v2311 = vpop.permute.xlu0 %2310
  %v2313 = vsel %vm164, %v2311, 0
  %2315 = vmatprep.subr.bf16.mxu0 0
  %2316 = vmatpush1.bf16.msra.mxu0 0
  %2317 = vmatprep.subr.bf16.mxu0 0
  %2318 = vmatpush1.bf16.msra.mxu0 0
  %2319 = vmatprep.subr.bf16.mxu0 0
  %2320 = vmatpush1.bf16.msra.mxu0 0
  %2321 = vmatprep.subr.bf16.mxu0 0
  %2322 = vmatpush1.bf16.msra.mxu0 0
  %2323 = vmatprep.subr.bf16.mxu0 %v2093
  %2324 = vmatpush1.bf16.msra.mxu0 %v2092
  %2325 = vmatprep.subr.bf16.mxu0 %v2091
  %2326 = vmatpush1.bf16.msra.mxu0 %v2090
  %2327 = vmatprep.subr.bf16.mxu0 %v2089
  %2328 = vmatpush1.bf16.msra.mxu0 %v2088
  %2329 = vmatprep.subr.bf16.mxu0 %v2087
  %2330 = vmatpush1.bf16.msra.mxu0 %v2086
  %2331 = vmatprep.subr.bf16.mxu0 0
  %2332 = vmatpush2.bf16.msra.mxu0 0
  %2333 = vmatprep.subr.bf16.mxu0 0
  %2334 = vmatpush2.bf16.msra.mxu0 0
  %2335 = vmatprep.subr.bf16.mxu0 0
  %2336 = vmatpush2.bf16.msra.mxu0 0
  %2337 = vmatprep.subr.bf16.mxu0 0
  %2338 = vmatpush2.bf16.msra.mxu0 0
  %2339 = vmatprep.subr.bf16.mxu0 0
  %2340 = vmatpush2.bf16.msra.mxu0 0
  %2341 = vmatprep.subr.bf16.mxu0 0
  %2342 = vmatpush2.bf16.msra.mxu0 0
  %2343 = vmatprep.subr.bf16.mxu0 0
  %2344 = vmatpush2.bf16.msra.mxu0 0
  %2345 = vmatprep.subr.bf16.mxu0 0
  %2346 = vmatpush2.bf16.msra.mxu0 0
  %2347 = vmatprep.mubr.bf16.mxu0 0
  %2348 = vmatmul.mubr.bf16.gmra.mxu0 %v2313
  %v2349 = vpop.f32.mrf.mxu0
  %v2350 = vadd.f32 %v2051, %v2349
  %v2351 = vpop.f32.mrf.mxu0
  %v2352 = vadd.f32 %v2055, %v2351
  %v2353 = vpop.f32.mrf.mxu0
  %v2354 = vpop.f32.mrf.mxu0
  %2355 = vdwg.mxu0
  %v2358 = vunpack.c.l.s4 1983009808
  %v2359 = vunpack.c.0.s8 %v2358
  %v2360 = vlaneseq
  %v2361 = vshrl.u32 %v2360, 7
  %v2362 = vsub.s32 %v2359, %v2361
  %v2363 = vrot.slane %v2307, %v2362
  %2364 = vrot.lane.b32.xlu0 %v2363, 32
  %v2365 = vpop.permute.xlu0 %2364
  %v2369 = vunpack.c.l.s4 1983009808
  %v2370 = vunpack.c.0.s8 %v2369
  %v2371 = vlaneseq
  %v2372 = vshrl.u32 %v2371, 7
  %v2373 = vsub.s32 %v2370, %v2372
  %v2374 = vrot.slane %v2305, %v2373
  %2375 = vrot.lane.b32.xlu0 %v2374, 32
  %v2376 = vpop.permute.xlu0 %2375
  %2378 = vrot.lane.b32.xlu0 %v2363, 64
  %v2379 = vpop.permute.xlu0 %2378
  %v2381 = vsel %vm553, %v2305, %v2365
  %v2382 = vsel %vm164, %v2381, %v2376
  %v2383 = vsel %vm556, %v2382, %v2379
  %v2384 = vadd.f32 %v2383, %v2350
  %v2385 = vxor.u32 %v2384, 2147483648
  %v2386 = vmul.f32 %v2385, 1.442695
  %v2387 = vpow.pop %v2386
  %v2388 = vadd.f32 %v2387, 1.0
  %v2389 = vrcp.pop %v2388
  %v2390 = vmul.f32 1.0, %v2389
  %2391 = vrot.lane.b32.xlu0 %v2374, 64
  %v2392 = vpop.permute.xlu0 %2391
  %2394 = vrot.lane.b32.xlu0 %v2363, 96
  %v2395 = vpop.permute.xlu0 %2394
  %v2397 = vsel %vm553, %v2392, %v2395
  %v2398 = vmul.f32 %v2390, %v2352
  %v2399 = vadd.f32 %v2397, %v2398
  %v2400 = vtanh.pop %v2399
  %v2401 = vsub.f32 1.0, %v2390
  %2403 = vrot.lane.b32.xlu0 %v2400, 64
  %v2404 = vpop.permute.xlu0 %2403
  %v2406 = vmul.f32 %v2401, %v2404
  %v2407 = vmul.f32 %v2390, %v2301
  %v2408 = vadd.f32 %v2406, %v2407
  %v2409 = vadd.f32 %v2302, %v2408
  %v2410 = vmax.f32 %v2303, %v2408
  %v2411 = vld [vmem:[%s871] sm:$0x1]
  %v2412 = vunpack.c.l.bf16 %v2411
  %v2413 = vld [vmem:[%s874] sm:$0x1]
  %v2414 = vunpack.c.l.bf16 %v2413
  %v2415 = vpack.c.bf16 %v2408, %v2408
  %2417 = vrot.lane.b32.xlu0 %v2415, 64
  %v2418 = vpop.permute.xlu0 %2417
  %v2420 = vsel %vm164, %v2418, 0
  %2422 = vmatprep.subr.bf16.mxu0 0
  %2423 = vmatpush1.bf16.msra.mxu0 0
  %2424 = vmatprep.subr.bf16.mxu0 0
  %2425 = vmatpush1.bf16.msra.mxu0 0
  %2426 = vmatprep.subr.bf16.mxu0 0
  %2427 = vmatpush1.bf16.msra.mxu0 0
  %2428 = vmatprep.subr.bf16.mxu0 0
  %2429 = vmatpush1.bf16.msra.mxu0 0
  %2430 = vmatprep.subr.bf16.mxu0 %v2093
  %2431 = vmatpush1.bf16.msra.mxu0 %v2092
  %2432 = vmatprep.subr.bf16.mxu0 %v2091
  %2433 = vmatpush1.bf16.msra.mxu0 %v2090
  %2434 = vmatprep.subr.bf16.mxu0 %v2089
  %2435 = vmatpush1.bf16.msra.mxu0 %v2088
  %2436 = vmatprep.subr.bf16.mxu0 %v2087
  %2437 = vmatpush1.bf16.msra.mxu0 %v2086
  %2438 = vmatprep.subr.bf16.mxu0 0
  %2439 = vmatpush2.bf16.msra.mxu0 0
  %2440 = vmatprep.subr.bf16.mxu0 0
  %2441 = vmatpush2.bf16.msra.mxu0 0
  %2442 = vmatprep.subr.bf16.mxu0 0
  %2443 = vmatpush2.bf16.msra.mxu0 0
  %2444 = vmatprep.subr.bf16.mxu0 0
  %2445 = vmatpush2.bf16.msra.mxu0 0
  %2446 = vmatprep.subr.bf16.mxu0 0
  %2447 = vmatpush2.bf16.msra.mxu0 0
  %2448 = vmatprep.subr.bf16.mxu0 0
  %2449 = vmatpush2.bf16.msra.mxu0 0
  %2450 = vmatprep.subr.bf16.mxu0 0
  %2451 = vmatpush2.bf16.msra.mxu0 0
  %2452 = vmatprep.subr.bf16.mxu0 0
  %2453 = vmatpush2.bf16.msra.mxu0 0
  %2454 = vmatprep.mubr.bf16.mxu0 0
  %2455 = vmatmul.mubr.bf16.gmra.mxu0 %v2420
  %v2456 = vpop.f32.mrf.mxu0
  %v2457 = vadd.f32 %v2051, %v2456
  %v2458 = vpop.f32.mrf.mxu0
  %v2459 = vadd.f32 %v2055, %v2458
  %v2460 = vpop.f32.mrf.mxu0
  %v2461 = vpop.f32.mrf.mxu0
  %2462 = vdwg.mxu0
  %v2465 = vunpack.c.l.s4 1983009808
  %v2466 = vunpack.c.0.s8 %v2465
  %v2467 = vlaneseq
  %v2468 = vshrl.u32 %v2467, 7
  %v2469 = vsub.s32 %v2466, %v2468
  %v2470 = vrot.slane %v2414, %v2469
  %2471 = vrot.lane.b32.xlu0 %v2470, 32
  %v2472 = vpop.permute.xlu0 %2471
  %v2476 = vunpack.c.l.s4 1983009808
  %v2477 = vunpack.c.0.s8 %v2476
  %v2478 = vlaneseq
  %v2479 = vshrl.u32 %v2478, 7
  %v2480 = vsub.s32 %v2477, %v2479
  %v2481 = vrot.slane %v2412, %v2480
  %2482 = vrot.lane.b32.xlu0 %v2481, 32
  %v2483 = vpop.permute.xlu0 %2482
  %2485 = vrot.lane.b32.xlu0 %v2470, 64
  %v2486 = vpop.permute.xlu0 %2485
  %v2488 = vsel %vm553, %v2412, %v2472
  %v2489 = vsel %vm164, %v2488, %v2483
  %v2490 = vsel %vm556, %v2489, %v2486
  %v2491 = vadd.f32 %v2490, %v2457
  %v2492 = vxor.u32 %v2491, 2147483648
  %v2493 = vmul.f32 %v2492, 1.442695
  %v2494 = vpow.pop %v2493
  %v2495 = vadd.f32 %v2494, 1.0
  %v2496 = vrcp.pop %v2495
  %v2497 = vmul.f32 1.0, %v2496
  %2498 = vrot.lane.b32.xlu0 %v2481, 64
  %v2499 = vpop.permute.xlu0 %2498
  %2501 = vrot.lane.b32.xlu0 %v2470, 96
  %v2502 = vpop.permute.xlu0 %2501
  %v2504 = vsel %vm553, %v2499, %v2502
  %v2505 = vmul.f32 %v2497, %v2459
  %v2506 = vadd.f32 %v2504, %v2505
  %v2507 = vtanh.pop %v2506
  %v2508 = vsub.f32 1.0, %v2497
  %2510 = vrot.lane.b32.xlu0 %v2507, 64
  %v2511 = vpop.permute.xlu0 %2510
  %v2513 = vmul.f32 %v2508, %v2511
  %v2514 = vmul.f32 %v2497, %v2408
  %v2515 = vadd.f32 %v2513, %v2514
  %v2516 = vadd.f32 %v2409, %v2515
  %v2517 = vmax.f32 %v2410, %v2515
  %v2518 = vld [vmem:[%s1002] sm:$0x1]
  %v2519 = vunpack.c.l.bf16 %v2518
  %v2520 = vld [vmem:[%s1005] sm:$0x1]
  %v2521 = vunpack.c.l.bf16 %v2520
  %v2522 = vpack.c.bf16 %v2515, %v2515
  %2524 = vrot.lane.b32.xlu0 %v2522, 64
  %v2525 = vpop.permute.xlu0 %2524
  %v2527 = vsel %vm164, %v2525, 0
  %2529 = vmatprep.subr.bf16.mxu0 0
  %2530 = vmatpush1.bf16.msra.mxu0 0
  %2531 = vmatprep.subr.bf16.mxu0 0
  %2532 = vmatpush1.bf16.msra.mxu0 0
  %2533 = vmatprep.subr.bf16.mxu0 0
  %2534 = vmatpush1.bf16.msra.mxu0 0
  %2535 = vmatprep.subr.bf16.mxu0 0
  %2536 = vmatpush1.bf16.msra.mxu0 0
  %2537 = vmatprep.subr.bf16.mxu0 %v2093
  %2538 = vmatpush1.bf16.msra.mxu0 %v2092
  %2539 = vmatprep.subr.bf16.mxu0 %v2091
  %2540 = vmatpush1.bf16.msra.mxu0 %v2090
  %2541 = vmatprep.subr.bf16.mxu0 %v2089
  %2542 = vmatpush1.bf16.msra.mxu0 %v2088
  %2543 = vmatprep.subr.bf16.mxu0 %v2087
  %2544 = vmatpush1.bf16.msra.mxu0 %v2086
  %2545 = vmatprep.subr.bf16.mxu0 0
  %2546 = vmatpush2.bf16.msra.mxu0 0
  %2547 = vmatprep.subr.bf16.mxu0 0
  %2548 = vmatpush2.bf16.msra.mxu0 0
  %2549 = vmatprep.subr.bf16.mxu0 0
  %2550 = vmatpush2.bf16.msra.mxu0 0
  %2551 = vmatprep.subr.bf16.mxu0 0
  %2552 = vmatpush2.bf16.msra.mxu0 0
  %2553 = vmatprep.subr.bf16.mxu0 0
  %2554 = vmatpush2.bf16.msra.mxu0 0
  %2555 = vmatprep.subr.bf16.mxu0 0
  %2556 = vmatpush2.bf16.msra.mxu0 0
  %2557 = vmatprep.subr.bf16.mxu0 0
  %2558 = vmatpush2.bf16.msra.mxu0 0
  %2559 = vmatprep.subr.bf16.mxu0 0
  %2560 = vmatpush2.bf16.msra.mxu0 0
  %2561 = vmatprep.mubr.bf16.mxu0 0
  %2562 = vmatmul.mubr.bf16.gmra.mxu0 %v2527
  %v2563 = vpop.f32.mrf.mxu0
  %v2564 = vadd.f32 %v2051, %v2563
  %v2565 = vpop.f32.mrf.mxu0
  %v2566 = vadd.f32 %v2055, %v2565
  %v2567 = vpop.f32.mrf.mxu0
  %v2568 = vpop.f32.mrf.mxu0
  %2569 = vdwg.mxu0
  %v2572 = vunpack.c.l.s4 1983009808
  %v2573 = vunpack.c.0.s8 %v2572
  %v2574 = vlaneseq
  %v2575 = vshrl.u32 %v2574, 7
  %v2576 = vsub.s32 %v2573, %v2575
  %v2577 = vrot.slane %v2521, %v2576
  %2578 = vrot.lane.b32.xlu0 %v2577, 32
  %v2579 = vpop.permute.xlu0 %2578
  %v2583 = vunpack.c.l.s4 1983009808
  %v2584 = vunpack.c.0.s8 %v2583
  %v2585 = vlaneseq
  %v2586 = vshrl.u32 %v2585, 7
  %v2587 = vsub.s32 %v2584, %v2586
  %v2588 = vrot.slane %v2519, %v2587
  %2589 = vrot.lane.b32.xlu0 %v2588, 32
  %v2590 = vpop.permute.xlu0 %2589
  %2592 = vrot.lane.b32.xlu0 %v2577, 64
  %v2593 = vpop.permute.xlu0 %2592
  %v2595 = vsel %vm553, %v2519, %v2579
  %v2596 = vsel %vm164, %v2595, %v2590
  %v2597 = vsel %vm556, %v2596, %v2593
  %v2598 = vadd.f32 %v2597, %v2564
  %v2599 = vxor.u32 %v2598, 2147483648
  %v2600 = vmul.f32 %v2599, 1.442695
  %v2601 = vpow.pop %v2600
  %v2602 = vadd.f32 %v2601, 1.0
  %v2603 = vrcp.pop %v2602
  %v2604 = vmul.f32 1.0, %v2603
  %2605 = vrot.lane.b32.xlu0 %v2588, 64
  %v2606 = vpop.permute.xlu0 %2605
  %2608 = vrot.lane.b32.xlu0 %v2577, 96
  %v2609 = vpop.permute.xlu0 %2608
  %v2611 = vsel %vm553, %v2606, %v2609
  %v2612 = vmul.f32 %v2604, %v2566
  %v2613 = vadd.f32 %v2611, %v2612
  %v2614 = vtanh.pop %v2613
  %v2615 = vsub.f32 1.0, %v2604
  %2617 = vrot.lane.b32.xlu0 %v2614, 64
  %v2618 = vpop.permute.xlu0 %2617
  %v2620 = vmul.f32 %v2615, %v2618
  %v2621 = vmul.f32 %v2604, %v2515
  %v2622 = vadd.f32 %v2620, %v2621
  %v2623 = vadd.f32 %v2516, %v2622
  %v2624 = vmax.f32 %v2517, %v2622
  %v2625 = vld [vmem:[%s1133] sm:$0x1]
  %v2626 = vunpack.c.l.bf16 %v2625
  %v2627 = vld [vmem:[%s1136] sm:$0x1]
  %v2628 = vunpack.c.l.bf16 %v2627
  %v2629 = vpack.c.bf16 %v2622, %v2622
  %2631 = vrot.lane.b32.xlu0 %v2629, 64
  %v2632 = vpop.permute.xlu0 %2631
  %v2634 = vsel %vm164, %v2632, 0
  %2636 = vmatprep.subr.bf16.mxu0 0
  %2637 = vmatpush1.bf16.msra.mxu0 0
  %2638 = vmatprep.subr.bf16.mxu0 0
  %2639 = vmatpush1.bf16.msra.mxu0 0
  %2640 = vmatprep.subr.bf16.mxu0 0
  %2641 = vmatpush1.bf16.msra.mxu0 0
  %2642 = vmatprep.subr.bf16.mxu0 0
  %2643 = vmatpush1.bf16.msra.mxu0 0
  %2644 = vmatprep.subr.bf16.mxu0 %v2093
  %2645 = vmatpush1.bf16.msra.mxu0 %v2092
  %2646 = vmatprep.subr.bf16.mxu0 %v2091
  %2647 = vmatpush1.bf16.msra.mxu0 %v2090
  %2648 = vmatprep.subr.bf16.mxu0 %v2089
  %2649 = vmatpush1.bf16.msra.mxu0 %v2088
  %2650 = vmatprep.subr.bf16.mxu0 %v2087
  %2651 = vmatpush1.bf16.msra.mxu0 %v2086
  %2652 = vmatprep.subr.bf16.mxu0 0
  %2653 = vmatpush2.bf16.msra.mxu0 0
  %2654 = vmatprep.subr.bf16.mxu0 0
  %2655 = vmatpush2.bf16.msra.mxu0 0
  %2656 = vmatprep.subr.bf16.mxu0 0
  %2657 = vmatpush2.bf16.msra.mxu0 0
  %2658 = vmatprep.subr.bf16.mxu0 0
  %2659 = vmatpush2.bf16.msra.mxu0 0
  %2660 = vmatprep.subr.bf16.mxu0 0
  %2661 = vmatpush2.bf16.msra.mxu0 0
  %2662 = vmatprep.subr.bf16.mxu0 0
  %2663 = vmatpush2.bf16.msra.mxu0 0
  %2664 = vmatprep.subr.bf16.mxu0 0
  %2665 = vmatpush2.bf16.msra.mxu0 0
  %2666 = vmatprep.subr.bf16.mxu0 0
  %2667 = vmatpush2.bf16.msra.mxu0 0
  %2668 = vmatprep.mubr.bf16.mxu0 0
  %2669 = vmatmul.mubr.bf16.gmra.mxu0 %v2634
  %v2670 = vpop.f32.mrf.mxu0
  %v2671 = vadd.f32 %v2051, %v2670
  %v2672 = vpop.f32.mrf.mxu0
  %v2673 = vadd.f32 %v2055, %v2672
  %v2674 = vpop.f32.mrf.mxu0
  %v2675 = vpop.f32.mrf.mxu0
  %2676 = vdwg.mxu0
  %v2679 = vunpack.c.l.s4 1983009808
  %v2680 = vunpack.c.0.s8 %v2679
  %v2681 = vlaneseq
  %v2682 = vshrl.u32 %v2681, 7
  %v2683 = vsub.s32 %v2680, %v2682
  %v2684 = vrot.slane %v2628, %v2683
  %2685 = vrot.lane.b32.xlu0 %v2684, 32
  %v2686 = vpop.permute.xlu0 %2685
  %v2690 = vunpack.c.l.s4 1983009808
  %v2691 = vunpack.c.0.s8 %v2690
  %v2692 = vlaneseq
  %v2693 = vshrl.u32 %v2692, 7
  %v2694 = vsub.s32 %v2691, %v2693
  %v2695 = vrot.slane %v2626, %v2694
  %2696 = vrot.lane.b32.xlu0 %v2695, 32
  %v2697 = vpop.permute.xlu0 %2696
  %2699 = vrot.lane.b32.xlu0 %v2684, 64
  %v2700 = vpop.permute.xlu0 %2699
  %v2702 = vsel %vm553, %v2626, %v2686
  %v2703 = vsel %vm164, %v2702, %v2697
  %v2704 = vsel %vm556, %v2703, %v2700
  %v2705 = vadd.f32 %v2704, %v2671
  %v2706 = vxor.u32 %v2705, 2147483648
  %v2707 = vmul.f32 %v2706, 1.442695
  %v2708 = vpow.pop %v2707
  %v2709 = vadd.f32 %v2708, 1.0
  %v2710 = vrcp.pop %v2709
  %v2711 = vmul.f32 1.0, %v2710
  %2712 = vrot.lane.b32.xlu0 %v2695, 64
  %v2713 = vpop.permute.xlu0 %2712
  %2715 = vrot.lane.b32.xlu0 %v2684, 96
  %v2716 = vpop.permute.xlu0 %2715
  %v2718 = vsel %vm553, %v2713, %v2716
  %v2719 = vmul.f32 %v2711, %v2673
  %v2720 = vadd.f32 %v2718, %v2719
  %v2721 = vtanh.pop %v2720
  %v2722 = vsub.f32 1.0, %v2711
  %2724 = vrot.lane.b32.xlu0 %v2721, 64
  %v2725 = vpop.permute.xlu0 %2724
  %v2727 = vmul.f32 %v2722, %v2725
  %v2728 = vmul.f32 %v2711, %v2622
  %v2729 = vadd.f32 %v2727, %v2728
  %v2730 = vadd.f32 %v2623, %v2729
  %v2731 = vmax.f32 %v2624, %v2729
  %v2732 = vld [vmem:[%s1264] sm:$0x1]
  %v2733 = vunpack.c.l.bf16 %v2732
  %v2734 = vld [vmem:[%s1267] sm:$0x1]
  %v2735 = vunpack.c.l.bf16 %v2734
  %v2736 = vpack.c.bf16 %v2729, %v2729
  %2738 = vrot.lane.b32.xlu0 %v2736, 64
  %v2739 = vpop.permute.xlu0 %2738
  %v2741 = vsel %vm164, %v2739, 0
  %2743 = vmatprep.subr.bf16.mxu0 0
  %2744 = vmatpush1.bf16.msra.mxu0 0
  %2745 = vmatprep.subr.bf16.mxu0 0
  %2746 = vmatpush1.bf16.msra.mxu0 0
  %2747 = vmatprep.subr.bf16.mxu0 0
  %2748 = vmatpush1.bf16.msra.mxu0 0
  %2749 = vmatprep.subr.bf16.mxu0 0
  %2750 = vmatpush1.bf16.msra.mxu0 0
  %2751 = vmatprep.subr.bf16.mxu0 %v2093
  %2752 = vmatpush1.bf16.msra.mxu0 %v2092
  %2753 = vmatprep.subr.bf16.mxu0 %v2091
  %2754 = vmatpush1.bf16.msra.mxu0 %v2090
  %2755 = vmatprep.subr.bf16.mxu0 %v2089
  %2756 = vmatpush1.bf16.msra.mxu0 %v2088
  %2757 = vmatprep.subr.bf16.mxu0 %v2087
  %2758 = vmatpush1.bf16.msra.mxu0 %v2086
  %2759 = vmatprep.subr.bf16.mxu0 0
  %2760 = vmatpush2.bf16.msra.mxu0 0
  %2761 = vmatprep.subr.bf16.mxu0 0
  %2762 = vmatpush2.bf16.msra.mxu0 0
  %2763 = vmatprep.subr.bf16.mxu0 0
  %2764 = vmatpush2.bf16.msra.mxu0 0
  %2765 = vmatprep.subr.bf16.mxu0 0
  %2766 = vmatpush2.bf16.msra.mxu0 0
  %2767 = vmatprep.subr.bf16.mxu0 0
  %2768 = vmatpush2.bf16.msra.mxu0 0
  %2769 = vmatprep.subr.bf16.mxu0 0
  %2770 = vmatpush2.bf16.msra.mxu0 0
  %2771 = vmatprep.subr.bf16.mxu0 0
  %2772 = vmatpush2.bf16.msra.mxu0 0
  %2773 = vmatprep.subr.bf16.mxu0 0
  %2774 = vmatpush2.bf16.msra.mxu0 0
  %2775 = vmatprep.mubr.bf16.mxu0 0
  %2776 = vmatmul.mubr.bf16.gmra.mxu0 %v2741
  %v2777 = vpop.f32.mrf.mxu0
  %v2778 = vadd.f32 %v2051, %v2777
  %v2779 = vpop.f32.mrf.mxu0
  %v2780 = vadd.f32 %v2055, %v2779
  %v2781 = vpop.f32.mrf.mxu0
  %v2782 = vpop.f32.mrf.mxu0
  %2783 = vdwg.mxu0
  %v2786 = vunpack.c.l.s4 1983009808
  %v2787 = vunpack.c.0.s8 %v2786
  %v2788 = vlaneseq
  %v2789 = vshrl.u32 %v2788, 7
  %v2790 = vsub.s32 %v2787, %v2789
  %v2791 = vrot.slane %v2735, %v2790
  %2792 = vrot.lane.b32.xlu0 %v2791, 32
  %v2793 = vpop.permute.xlu0 %2792
  %v2797 = vunpack.c.l.s4 1983009808
  %v2798 = vunpack.c.0.s8 %v2797
  %v2799 = vlaneseq
  %v2800 = vshrl.u32 %v2799, 7
  %v2801 = vsub.s32 %v2798, %v2800
  %v2802 = vrot.slane %v2733, %v2801
  %2803 = vrot.lane.b32.xlu0 %v2802, 32
  %v2804 = vpop.permute.xlu0 %2803
  %2806 = vrot.lane.b32.xlu0 %v2791, 64
  %v2807 = vpop.permute.xlu0 %2806
  %v2809 = vsel %vm553, %v2733, %v2793
  %v2810 = vsel %vm164, %v2809, %v2804
  %v2811 = vsel %vm556, %v2810, %v2807
  %v2812 = vadd.f32 %v2811, %v2778
  %v2813 = vxor.u32 %v2812, 2147483648
  %v2814 = vmul.f32 %v2813, 1.442695
  %v2815 = vpow.pop %v2814
  %v2816 = vadd.f32 %v2815, 1.0
  %v2817 = vrcp.pop %v2816
  %v2818 = vmul.f32 1.0, %v2817
  %2819 = vrot.lane.b32.xlu0 %v2802, 64
  %v2820 = vpop.permute.xlu0 %2819
  %2822 = vrot.lane.b32.xlu0 %v2791, 96
  %v2823 = vpop.permute.xlu0 %2822
  %v2825 = vsel %vm553, %v2820, %v2823
  %v2826 = vmul.f32 %v2818, %v2780
  %v2827 = vadd.f32 %v2825, %v2826
  %v2828 = vtanh.pop %v2827
  %v2829 = vsub.f32 1.0, %v2818
  %2831 = vrot.lane.b32.xlu0 %v2828, 64
  %v2832 = vpop.permute.xlu0 %2831
  %v2834 = vmul.f32 %v2829, %v2832
  %v2835 = vmul.f32 %v2818, %v2729
  %v2836 = vadd.f32 %v2834, %v2835
  %v2837 = vadd.f32 %v2730, %v2836
  %v2838 = vmax.f32 %v2731, %v2836
  %v2839 = vld [vmem:[%s1395] sm:$0x1]
  %v2840 = vunpack.c.l.bf16 %v2839
  %v2841 = vld [vmem:[#allocation3] sm:$0x1]
  %v2842 = vunpack.c.l.bf16 %v2841
  %v2843 = vpack.c.bf16 %v2836, %v2836
  %2845 = vrot.lane.b32.xlu0 %v2843, 64
  %v2846 = vpop.permute.xlu0 %2845
  %v2848 = vsel %vm164, %v2846, 0
  %2850 = vmatprep.subr.bf16.mxu0 0
  %2851 = vmatpush1.bf16.msra.mxu0 0
  %2852 = vmatprep.subr.bf16.mxu0 0
  %2853 = vmatpush1.bf16.msra.mxu0 0
  %2854 = vmatprep.subr.bf16.mxu0 0
  %2855 = vmatpush1.bf16.msra.mxu0 0
  %2856 = vmatprep.subr.bf16.mxu0 0
  %2857 = vmatpush1.bf16.msra.mxu0 0
  %2858 = vmatprep.subr.bf16.mxu0 %v2093
  %2859 = vmatpush1.bf16.msra.mxu0 %v2092
  %2860 = vmatprep.subr.bf16.mxu0 %v2091
  %2861 = vmatpush1.bf16.msra.mxu0 %v2090
  %2862 = vmatprep.subr.bf16.mxu0 %v2089
  %2863 = vmatpush1.bf16.msra.mxu0 %v2088
  %2864 = vmatprep.subr.bf16.mxu0 %v2087
  %2865 = vmatpush1.bf16.msra.mxu0 %v2086
  %2866 = vmatprep.subr.bf16.mxu0 0
  %2867 = vmatpush2.bf16.msra.mxu0 0
  %2868 = vmatprep.subr.bf16.mxu0 0
  %2869 = vmatpush2.bf16.msra.mxu0 0
  %2870 = vmatprep.subr.bf16.mxu0 0
  %2871 = vmatpush2.bf16.msra.mxu0 0
  %2872 = vmatprep.subr.bf16.mxu0 0
  %2873 = vmatpush2.bf16.msra.mxu0 0
  %2874 = vmatprep.subr.bf16.mxu0 0
  %2875 = vmatpush2.bf16.msra.mxu0 0
  %2876 = vmatprep.subr.bf16.mxu0 0
  %2877 = vmatpush2.bf16.msra.mxu0 0
  %2878 = vmatprep.subr.bf16.mxu0 0
  %2879 = vmatpush2.bf16.msra.mxu0 0
  %2880 = vmatprep.subr.bf16.mxu0 0
  %2881 = vmatpush2.bf16.msra.mxu0 0
  %2882 = vmatprep.mubr.bf16.mxu0 0
  %2883 = vmatmul.mubr.bf16.gmra.mxu0 %v2848
  %v2884 = vpop.f32.mrf.mxu0
  %v2885 = vadd.f32 %v2051, %v2884
  %v2886 = vpop.f32.mrf.mxu0
  %v2887 = vadd.f32 %v2055, %v2886
  %v2888 = vpop.f32.mrf.mxu0
  %v2889 = vpop.f32.mrf.mxu0
  %2890 = vdwg.mxu0
  %v2893 = vunpack.c.l.s4 1983009808
  %v2894 = vunpack.c.0.s8 %v2893
  %v2895 = vlaneseq
  %v2896 = vshrl.u32 %v2895, 7
  %v2897 = vsub.s32 %v2894, %v2896
  %v2898 = vrot.slane %v2842, %v2897
  %2899 = vrot.lane.b32.xlu0 %v2898, 32
  %v2900 = vpop.permute.xlu0 %2899
  %v2904 = vunpack.c.l.s4 1983009808
  %v2905 = vunpack.c.0.s8 %v2904
  %v2906 = vlaneseq
  %v2907 = vshrl.u32 %v2906, 7
  %v2908 = vsub.s32 %v2905, %v2907
  %v2909 = vrot.slane %v2840, %v2908
  %2910 = vrot.lane.b32.xlu0 %v2909, 32
  %v2911 = vpop.permute.xlu0 %2910
  %2913 = vrot.lane.b32.xlu0 %v2898, 64
  %v2914 = vpop.permute.xlu0 %2913
  %v2916 = vsel %vm553, %v2840, %v2900
  %v2917 = vsel %vm164, %v2916, %v2911
  %v2918 = vsel %vm556, %v2917, %v2914
  %v2919 = vadd.f32 %v2918, %v2885
  %v2920 = vxor.u32 %v2919, 2147483648
  %v2921 = vmul.f32 %v2920, 1.442695
  %v2922 = vpow.pop %v2921
  %v2923 = vadd.f32 %v2922, 1.0
  %v2924 = vrcp.pop %v2923
  %v2925 = vmul.f32 1.0, %v2924
  %2926 = vrot.lane.b32.xlu0 %v2909, 64
  %v2927 = vpop.permute.xlu0 %2926
  %2929 = vrot.lane.b32.xlu0 %v2898, 96
  %v2930 = vpop.permute.xlu0 %2929
  %v2932 = vsel %vm553, %v2927, %v2930
  %v2933 = vmul.f32 %v2925, %v2887
  %v2934 = vadd.f32 %v2932, %v2933
  %v2935 = vtanh.pop %v2934
  %v2936 = vsub.f32 1.0, %v2925
  %2938 = vrot.lane.b32.xlu0 %v2935, 64
  %v2939 = vpop.permute.xlu0 %2938
  %v2941 = vmul.f32 %v2936, %v2939
  %v2942 = vmul.f32 %v2925, %v2836
  %v2943 = vadd.f32 %v2941, %v2942
  %v2944 = vadd.f32 %v2837, %v2943
  %v2945 = vmax.f32 %v2838, %v2943
  %v2946 = vmul.f32 %v2944, 0.125
  %2948 = vrot.lane.b32.xlu0 %v2943, 64
  %v2949 = vpop.permute.xlu0 %2948
  %2952 = vrot.lane.b32.xlu0 %v2946, 64
  %v2953 = vpop.permute.xlu0 %2952
  %v2954 = vsel %vm164, %v2949, %v2945
  %v2956 = vcombine.low %v2954, %v2953
  %v2958 = vunpack.c.l.s4 1983009808
  %v2959 = vunpack.c.0.s8 %v2958
  %v2960 = vlaneseq
  %v2961 = vshrl.u32 %v2960, 7
  %v2962 = vsub.s32 %v2959, %v2961
  %v2963 = vrot.slane %v2956, %v2962
  %vm2965 = vcmask 1041408
  %vm2966 = vcmask 519170
  %vm2967 = vmor %vm2966, %vm2965
  %2968 = vst.msk [vmem:[%s15] sm:$0xf] %vm2967, %v2963
  // Predicated region
  $region62: #{bi_gru_forward.2} parent=0 // pred_check
    _
  $region63: #{bi_gru_forward.2} parent=0 // pred_check_branch
    %2970 = sbr.rel (0) target = $region65
  $region64: #{bi_gru_forward.2} parent=0 // pred_region
    _
  $region65: #{bi_gru_forward.2} parent=0 // pred_fallthru
    _
  // Predicated region
  $region66: #{bi_gru_forward.2} parent=0 // pred_check
    _
  $region67: #{bi_gru_forward.2} parent=0 // pred_check_branch
    %2972 = sbr.rel (0) target = $region69
  $region68: #{bi_gru_forward.2} parent=0 // pred_region
    _
  $region69: #{bi_gru_forward.2} parent=0 // pred_fallthru
    _

</llo_original>
